<compile_context>
chip_gen: v5e
topology: v5e:2x2
jax: 0.10.0
libtpu: 0.0.40
codegen_flags: <defaults>
</compile_context>

<pallas_src>
from functools import partial

import jax
import jax.numpy as jnp
from jax.experimental import pallas as pl
from jax.experimental.pallas import tpu as pltpu

NODE_TILE = 512   # target rows per grid step for node-tiled kernels
EDGE_TILE = 512   # target rows per grid step for edge-tiled kernels / scatter chunks


# --------------------------------------------------------------------------- #
# helpers: padding / tiling (handles non-multiple row counts correctly)
# --------------------------------------------------------------------------- #
def _round_up(x, m):
    return ((x + m - 1) // m) * m


def _pick_tile(n, target):
    # biggest tile <= target; rows are zero-padded to a multiple of the tile so
    # the grid never silently drops a remainder.
    return target if n >= target else _round_up(n, 8)


def _pad_rows(x, n_pad):
    n = x.shape[0]
    if n == n_pad:
        return x
    return jnp.pad(x, ((0, n_pad - n), (0, 0)))


def _pad_idx(idx, n_pad, fill):
    e = idx.shape[0]
    idx = idx.astype(jnp.int32)
    if e == n_pad:
        return idx
    return jnp.concatenate([idx, jnp.full((n_pad - e,), fill, jnp.int32)])


# --------------------------------------------------------------------------- #
# in-kernel building blocks (traced inline, everything stays in VMEM/vregs)
# --------------------------------------------------------------------------- #
def _gcp_block(s, vx, vy, vz, wd, ws, wn, bs, wu, wg, bg, apply_nonlin):
    """GVP-style GCP on one resident tile.  vx/vy/vz: (T, vi) per xyz comp."""
    t = s.shape[0]
    # stack xyz along rows: one weight push per projection instead of three
    v_st = jnp.concatenate([vx, vy, vz], axis=0)                       # (3T, vi)
    vd_st = jnp.dot(v_st, wd, preferred_element_type=jnp.float32)      # (3T, h)
    vdx, vdy, vdz = vd_st[:t], vd_st[t:2 * t], vd_st[2 * t:]
    vnorm = jnp.sqrt(vdx * vdx + vdy * vdy + vdz * vdz + 1e-8)         # EUP
    so = (jnp.dot(s, ws, preferred_element_type=jnp.float32)
          + jnp.dot(vnorm, wn, preferred_element_type=jnp.float32) + bs)
    vu_st = jnp.dot(vd_st, wu, preferred_element_type=jnp.float32)     # (3T, vo)
    gate = jax.nn.sigmoid(
        jnp.dot(so, wg, preferred_element_type=jnp.float32) + bg)
    vox = vu_st[:t] * gate
    voy = vu_st[t:2 * t] * gate
    voz = vu_st[2 * t:] * gate
    if apply_nonlin:
        so = so * jax.nn.sigmoid(so)  # SiLU scalar nonlinearity
    return so, vox, voy, voz


# --------------------------------------------------------------------------- #
# Pallas kernels
# --------------------------------------------------------------------------- #
def _gcp_norm_kernel(s_ref, v_ref, g_ref, b_ref, so_ref, vo_ref, *, nchan):
    """GCPLayerNorm: LayerNorm on scalars, RMS-of-vector-norms on vectors."""
    s = s_ref[...].astype(jnp.float32)
    mu = jnp.mean(s, axis=-1, keepdims=True)
    var = jnp.mean(jnp.square(s - mu), axis=-1, keepdims=True)
    so_ref[...] = ((s - mu) * jax.lax.rsqrt(var + 1e-5) * g_ref[...]
                   + b_ref[...]).astype(so_ref.dtype)
    v = v_ref[...].astype(jnp.float32)
    msq = jnp.sum(v * v, axis=-1, keepdims=True) / nchan
    vo_ref[...] = (v * jax.lax.rsqrt(msq + 1e-8)).astype(vo_ref.dtype)


def _message_kernel(sr_ref, se_ref, sc_ref, vr_ref, ve_ref, vc_ref,
                    wd0_ref, ws0_ref, wn0_ref, bs0_ref, wu0_ref, wg0_ref, bg0_ref,
                    wd1_ref, ws1_ref, wn1_ref, bs1_ref, wu1_ref, wg1_ref, bg1_ref,
                    wa_ref, ba_ref,
                    out_ref, *, nv, ev):
    """Fused message path on one edge tile:
       concat -> GCP0 -> GCP1 -> residual add -> scalar attention -> slab."""
    # concat gathered features in VMEM (no HBM concat pass)
    s_cat = jnp.concatenate([sr_ref[...], se_ref[...], sc_ref[...]], axis=-1)
    vr, ve, vc = vr_ref[...], ve_ref[...], vc_ref[...]

    def cat_comp(k):
        return jnp.concatenate([vr[:, k * nv:(k + 1) * nv],
                                ve[:, k * ev:(k + 1) * ev],
                                vc[:, k * nv:(k + 1) * nv]], axis=-1)

    vx, vy, vz = cat_comp(0), cat_comp(1), cat_comp(2)

    s0, v0x, v0y, v0z = _gcp_block(
        s_cat, vx, vy, vz,
        wd0_ref[...], ws0_ref[...], wn0_ref[...], bs0_ref[...],
        wu0_ref[...], wg0_ref[...], bg0_ref[...], apply_nonlin=True)
    s1, v1x, v1y, v1z = _gcp_block(
        s0, v0x, v0y, v0z,
        wd1_ref[...], ws1_ref[...], wn1_ref[...], bs1_ref[...],
        wu1_ref[...], wg1_ref[...], bg1_ref[...], apply_nonlin=True)

    ms = s0 + s1
    mvx, mvy, mvz = v0x + v1x, v0y + v1y, v0z + v1z

    # scalar_message_attention: single-lane logit as a VPU/XLU lane reduction
    # (avoids a (d,1) matmul kernel + extra HBM round trip of the message).
    logit = jnp.sum(ms * wa_ref[...], axis=-1, keepdims=True) + ba_ref[...]
    ms = ms * jax.nn.sigmoid(logit)

    # single combined output slab [scalar | vx | vy | vz] -> feeds scatter
    out_ref[...] = jnp.concatenate([ms, mvx, mvy, mvz],
                                   axis=-1).astype(out_ref.dtype)


def _scatter_sum_kernel(row_ref, msg_ref, out_ref):
    """scatter(msg, row, reduce='sum') as a one-hot matmul, chunked over edges
    with the (N, D) output block resident as an accumulator."""
    @pl.when(pl.program_id(0) == 0)
    def _():
        out_ref[...] = jnp.zeros_like(out_ref)

    n = out_ref.shape[0]
    e = msg_ref.shape[0]
    node_ids = jax.lax.broadcasted_iota(jnp.int32, (n, e), 0)
    onehot = (node_ids == row_ref[...]).astype(jnp.float32)          # [N, chunk]
    out_ref[...] += jnp.dot(onehot, msg_ref[...],
                            preferred_element_type=jnp.float32).astype(out_ref.dtype)
    # TODO(synk): for very large node counts the N dimension should also be
    # chunked (second grid axis) to bound the one-hot VMEM footprint on v7x.


def _node_update_kernel(agg_ref, sn_ref, vn_ref,
                        wdf_ref, wsf_ref, wnf_ref, bsf_ref, wuf_ref, wgf_ref,
                        bgf_ref, wr_ref, br_ref,
                        os_ref, ov_ref, *, nv, so_dim, vo_dim):
    """Fused node path: [agg | node_rep] -> ff-GCP -> res_mlp + vec residual."""
    agg = agg_ref[...]
    h_s = agg[:, :so_dim]
    h_v = agg[:, so_dim:]
    sn = sn_ref[...]
    vn = vn_ref[...]

    s_cat = jnp.concatenate([h_s, sn], axis=-1)      # hidden first, then node

    def cat_comp(k):
        return jnp.concatenate([h_v[:, k * vo_dim:(k + 1) * vo_dim],
                                vn[:, k * nv:(k + 1) * nv]], axis=-1)

    vx, vy, vz = cat_comp(0), cat_comp(1), cat_comp(2)

    ff_s, ffvx, ffvy, ffvz = _gcp_block(
        s_cat, vx, vy, vz,
        wdf_ref[...], wsf_ref[...], wnf_ref[...], bsf_ref[...],
        wuf_ref[...], wgf_ref[...], bgf_ref[...], apply_nonlin=False)

    # res_mlp on concat(node_scalar, ff_scalar)  (node first, as in the module)
    rs = jnp.concatenate([sn, ff_s], axis=-1)
    out_s = jnp.dot(rs, wr_ref[...], preferred_element_type=jnp.float32) + br_ref[...]
    os_ref[...] = out_s.astype(os_ref.dtype)

    # plain vector residual (requires out vector dims == in vector dims)
    ov_ref[...] = jnp.concatenate([vn[:, 0:nv] + ffvx,
                                   vn[:, nv:2 * nv] + ffvy,
                                   vn[:, 2 * nv:3 * nv] + ffvz],
                                  axis=-1).astype(ov_ref.dtype)


# --------------------------------------------------------------------------- #
# pallas_call wrappers
# --------------------------------------------------------------------------- #
def _rep(shape):
    return pl.BlockSpec(shape, lambda i: (0, 0))


def gcp_layernorm(p, s, v, tile):
    b, si = s.shape
    v3 = v.shape[1]
    return pl.pallas_call(
        partial(_gcp_norm_kernel, nchan=v3 // 3),
        grid=(b // tile,),
        in_specs=[pl.BlockSpec((tile, si), lambda i: (i, 0)),
                  pl.BlockSpec((tile, v3), lambda i: (i, 0)),
                  _rep((1, si)), _rep((1, si))],
        out_specs=(pl.BlockSpec((tile, si), lambda i: (i, 0)),
                   pl.BlockSpec((tile, v3), lambda i: (i, 0))),
        out_shape=(jax.ShapeDtypeStruct((b, si), s.dtype),
                   jax.ShapeDtypeStruct((b, v3), v.dtype)),
        compiler_params=pltpu.CompilerParams(dimension_semantics=("parallel",)),
    )(s, v, p["gamma"], p["beta"])


def fused_message(p0, p1, pa, s_row, edge_s, s_col, v_row, edge_v, v_col, tile):
    e, ns = s_row.shape
    es = edge_s.shape[1]
    nv = v_row.shape[1] // 3
    ev = edge_v.shape[1] // 3
    so = p0["ws"].shape[1]
    vo = p0["wu"].shape[1]
    d = so + 3 * vo
    row_spec = lambda w: pl.BlockSpec((tile, w), lambda i: (i, 0))
    return pl.pallas_call(
        partial(_message_kernel, nv=nv, ev=ev),
        grid=(e // tile,),
        in_specs=[row_spec(ns), row_spec(es), row_spec(ns),
                  row_spec(3 * nv), row_spec(3 * ev), row_spec(3 * nv),
                  _rep(p0["wd"].shape), _rep(p0["ws"].shape), _rep(p0["wn"].shape),
                  _rep(p0["bs"].shape), _rep(p0["wu"].shape), _rep(p0["wg"].shape),
                  _rep(p0["bg"].shape),
                  _rep(p1["wd"].shape), _rep(p1["ws"].shape), _rep(p1["wn"].shape),
                  _rep(p1["bs"].shape), _rep(p1["wu"].shape), _rep(p1["wg"].shape),
                  _rep(p1["bg"].shape),
                  _rep(pa["w"].shape), _rep(pa["b"].shape)],
        out_specs=pl.BlockSpec((tile, d), lambda i: (i, 0)),
        out_shape=jax.ShapeDtypeStruct((e, d), s_row.dtype),
        compiler_params=pltpu.CompilerParams(dimension_semantics=("parallel",)),
    )(s_row, edge_s, s_col, v_row, edge_v, v_col,
      p0["wd"], p0["ws"], p0["wn"], p0["bs"], p0["wu"], p0["wg"], p0["bg"],
      p1["wd"], p1["ws"], p1["wn"], p1["bs"], p1["wu"], p1["wg"], p1["bg"],
      pa["w"], pa["b"])


def scatter_sum(msg, row, n_out, tile):
    e, d = msg.shape
    return pl.pallas_call(
        _scatter_sum_kernel,
        grid=(e // tile,),
        in_specs=[pl.BlockSpec((1, tile), lambda i: (0, i)),
                  pl.BlockSpec((tile, d), lambda i: (i, 0))],
        out_specs=pl.BlockSpec((n_out, d), lambda i: (0, 0)),
        out_shape=jax.ShapeDtypeStruct((n_out, d), msg.dtype),
        compiler_params=pltpu.CompilerParams(dimension_semantics=("arbitrary",)),
    )(row.reshape(1, e), msg)


def fused_node_update(pf, pr, agg, node_s_n, node_v_n, tile):
    n, d = agg.shape
    ns = node_s_n.shape[1]
    nv = node_v_n.shape[1] // 3
    so = pf["ws"].shape[1]
    vo = pf["wu"].shape[1]
    ns_out = pr["w"].shape[1]
    return pl.pallas_call(
        partial(_node_update_kernel, nv=nv, so_dim=so, vo_dim=vo),
        grid=(n // tile,),
        in_specs=[pl.BlockSpec((tile, d), lambda i: (i, 0)),
                  pl.BlockSpec((tile, ns), lambda i: (i, 0)),
                  pl.BlockSpec((tile, 3 * nv), lambda i: (i, 0)),
                  _rep(pf["wd"].shape), _rep(pf["ws"].shape), _rep(pf["wn"].shape),
                  _rep(pf["bs"].shape), _rep(pf["wu"].shape), _rep(pf["wg"].shape),
                  _rep(pf["bg"].shape),
                  _rep(pr["w"].shape), _rep(pr["b"].shape)],
        out_specs=(pl.BlockSpec((tile, ns_out), lambda i: (i, 0)),
                   pl.BlockSpec((tile, 3 * vo), lambda i: (i, 0))),
        out_shape=(jax.ShapeDtypeStruct((n, ns_out), node_s_n.dtype),
                   jax.ShapeDtypeStruct((n, 3 * vo), node_v_n.dtype)),
        compiler_params=pltpu.CompilerParams(dimension_semantics=("parallel",)),
    )(agg, node_s_n, node_v_n,
      pf["wd"], pf["ws"], pf["wn"], pf["bs"], pf["wu"], pf["wg"], pf["bg"],
      pr["w"], pr["b"])


# --------------------------------------------------------------------------- #
# Parameter init (deterministic, in-script)
# --------------------------------------------------------------------------- #
def _normal(key, shape, scale):
    return (scale * jax.random.normal(key, shape)).astype(jnp.float32)


def init_gcp_params(key, si, vi, so, vo):
    h = vi
    ks = jax.random.split(key, 5)
    return dict(
        wd=_normal(ks[0], (vi, h), vi ** -0.5),
        ws=_normal(ks[1], (si, so), si ** -0.5),
        wn=_normal(ks[2], (h, so), h ** -0.5),
        bs=jnp.zeros((1, so), jnp.float32),
        wu=_normal(ks[3], (h, vo), h ** -0.5),
        wg=_normal(ks[4], (so, vo), so ** -0.5),
        bg=jnp.zeros((1, vo), jnp.float32),
    )


def init_params(key, ns, nv, es, ev, ns_out, nv_out):
    ks = jax.random.split(key, 5)
    msg_si = 2 * ns + es
    msg_vi = 2 * nv + ev
    return dict(
        norm=dict(gamma=jnp.ones((1, ns), jnp.float32),
                  beta=jnp.zeros((1, ns), jnp.float32)),
        msg_gcp0=init_gcp_params(ks[0], msg_si, msg_vi, ns_out, nv_out),
        msg_gcp1=init_gcp_params(ks[1], ns_out, nv_out, ns_out, nv_out),
        # attention weight stored row-major (1, ns_out) for the in-kernel lane reduction
        attn=dict(w=_normal(ks[2], (1, ns_out), ns_out ** -0.5),
                  b=jnp.zeros((1, 1), jnp.float32)),
        ff_gcp=init_gcp_params(ks[3], ns + ns_out, nv + nv_out, ns_out, nv_out),
        res_mlp=dict(w=_normal(ks[4], (ns + ns_out, ns_out), (ns + ns_out) ** -0.5),
                     b=jnp.zeros((1, ns_out), jnp.float32)),
    )


# --------------------------------------------------------------------------- #
# Forward pass
# --------------------------------------------------------------------------- #
def gcp_u_interactions_forward(params, node_s, node_v, edge_s, edge_v,
                               edge_index, frames):
    N, nv = node_v.shape[0], node_v.shape[1]
    E, ev = edge_v.shape[0], edge_v.shape[1]

    # torch [B, C, 3] -> kernel layout [B, 3*C] (x|y|z segments)
    node_v2 = jnp.transpose(node_v, (0, 2, 1)).reshape(N, 3 * nv)
    edge_v2 = jnp.transpose(edge_v, (0, 2, 1)).reshape(E, 3 * ev)

    # tiling / padding (remainder rows handled by zero padding, never dropped)
    tn = _pick_tile(N, NODE_TILE)
    n_pad = _round_up(N, tn)
    te = _pick_tile(E, EDGE_TILE)
    e_pad = _round_up(E, te)

    node_s_p = _pad_rows(node_s, n_pad)
    node_v_p = _pad_rows(node_v2, n_pad)

    # pre-norm (GCPLayerNorm)
    node_s_n, node_v_n = gcp_layernorm(params["norm"], node_s_p, node_v_p, tn)

    # gathers (XLA take); padded edges gather node 0 and are dropped at scatter
    row, col = edge_index[0], edge_index[1]
    row_g = _pad_idx(row, e_pad, 0)
    col_g = _pad_idx(col, e_pad, 0)
    row_sc = _pad_idx(row, e_pad, n_pad)     # sentinel -> one-hot all-zero

    s_row = jnp.take(node_s_n, row_g, axis=0)
    s_col = jnp.take(node_s_n, col_g, axis=0)
    v_row = jnp.take(node_v_n, row_g, axis=0)
    v_col = jnp.take(node_v_n, col_g, axis=0)
    edge_s_p = _pad_rows(edge_s, e_pad)
    edge_v_p = _pad_rows(edge_v2, e_pad)

    # fused message path (GCP0 -> GCP1 -> residual -> scalar attention)
    msg = fused_message(params["msg_gcp0"], params["msg_gcp1"], params["attn"],
                        s_row, edge_s_p, s_col, v_row, edge_v_p, v_col, te)

    # aggregate (scatter sum over `row`), chunked over edges
    agg = scatter_sum(msg, row_sc, n_pad, te)

    # fused node path (ff-GCP -> res_mlp + vector residual); dropout p=0.0 = id
    out_s_p, out_v_p = fused_node_update(params["ff_gcp"], params["res_mlp"],
                                         agg, node_s_n, node_v_n, tn)

    out_s = out_s_p[:N]
    nv_out = out_v_p.shape[1] // 3
    out_v = jnp.transpose(out_v_p[:N].reshape(N, 3, nv_out), (0, 2, 1))
    return out_s, out_v


# --------------------------------------------------------------------------- #
# Pure-JAX reference (same math, no Pallas) for a correctness check
# --------------------------------------------------------------------------- #
def _reference_forward(params, node_s, node_v, edge_s, edge_v, edge_index):
    N, nv = node_v.shape[0], node_v.shape[1]
    E, ev = edge_v.shape[0], edge_v.shape[1]
    node_v2 = jnp.transpose(node_v, (0, 2, 1)).reshape(N, 3 * nv)
    edge_v2 = jnp.transpose(edge_v, (0, 2, 1)).reshape(E, 3 * ev)

    def comps(a, c):
        return a[:, 0:c], a[:, c:2 * c], a[:, 2 * c:3 * c]

    def gcp(p, s, vx, vy, vz, nonlin):
        vdx, vdy, vdz = vx @ p["wd"], vy @ p["wd"], vz @ p["wd"]
        vn = jnp.sqrt(vdx ** 2 + vdy ** 2 + vdz ** 2 + 1e-8)
        so = s @ p["ws"] + vn @ p["wn"] + p["bs"]
        gate = jax.nn.sigmoid(so @ p["wg"] + p["bg"])
        vox, voy, voz = (vdx @ p["wu"]) * gate, (vdy @ p["wu"]) * gate, (vdz @ p["wu"]) * gate
        if nonlin:
            so = so * jax.nn.sigmoid(so)
        return so, vox, voy, voz

    pn = params["norm"]
    mu = jnp.mean(node_s, -1, keepdims=True)
    var = jnp.mean((node_s - mu) ** 2, -1, keepdims=True)
    sn = (node_s - mu) * jax.lax.rsqrt(var + 1e-5) * pn["gamma"] + pn["beta"]
    msq = jnp.sum(node_v2 * node_v2, -1, keepdims=True) / nv
    vn_ = node_v2 * jax.lax.rsqrt(msq + 1e-8)

    row, col = edge_index[0], edge_index[1]
    vrx, vry, vrz = comps(vn_[row], nv)
    vcx, vcy, vcz = comps(vn_[col], nv)
    vex, vey, vez = comps(edge_v2, ev)
    s_cat = jnp.concatenate([sn[row], edge_s, sn[col]], -1)
    vx = jnp.concatenate([vrx, vex, vcx], -1)
    vy = jnp.concatenate([vry, vey, vcy], -1)
    vz = jnp.concatenate([vrz, vez, vcz], -1)

    s0, v0x, v0y, v0z = gcp(params["msg_gcp0"], s_cat, vx, vy, vz, True)
    s1, v1x, v1y, v1z = gcp(params["msg_gcp1"], s0, v0x, v0y, v0z, True)
    ms = s0 + s1
    mvx, mvy, mvz = v0x + v1x, v0y + v1y, v0z + v1z
    logit = jnp.sum(ms * params["attn"]["w"], -1, keepdims=True) + params["attn"]["b"]
    ms = ms * jax.nn.sigmoid(logit)

    msg = jnp.concatenate([ms, mvx, mvy, mvz], -1)
    agg = jax.ops.segment_sum(msg, row, num_segments=N)
    so_dim, vo = ms.shape[1], mvx.shape[1]
    h_s, h_v = agg[:, :so_dim], agg[:, so_dim:]
    hvx, hvy, hvz = comps(h_v, vo)
    nvx, nvy, nvz = comps(vn_, nv)
    ffs, ffvx, ffvy, ffvz = gcp(params["ff_gcp"],
                                jnp.concatenate([h_s, sn], -1),
                                jnp.concatenate([hvx, nvx], -1),
                                jnp.concatenate([hvy, nvy], -1),
                                jnp.concatenate([hvz, nvz], -1), False)
    out_s = jnp.concatenate([sn, ffs], -1) @ params["res_mlp"]["w"] + params["res_mlp"]["b"]
    out_v2 = jnp.concatenate([nvx + ffvx, nvy + ffvy, nvz + ffvz], -1)
    out_v = jnp.transpose(out_v2.reshape(N, 3, vo), (0, 2, 1))
    return out_s, out_v


# --------------------------------------------------------------------------- #
if __name__ == "__main__":
    key = jax.random.PRNGKey(0)
    N, E = 16, 32
    ns, nv, es, ev = 32, 4, 16, 2
    ns_out, nv_out = 32, 4

    k = jax.random.split(key, 8)
    node_s = jax.random.normal(k[0], (N, ns), jnp.float32)
    node_v = jax.random.normal(k[1], (N, nv, 3), jnp.float32)
    edge_s = jax.random.normal(k[2], (E, es), jnp.float32)
    edge_v = jax.random.normal(k[3], (E, ev, 3), jnp.float32)
    row = jax.random.randint(k[4], (E,), 0, N)
    col = jax.random.randint(k[5], (E,), 0, N)
    edge_index = jnp.stack([row, col])
    frames = jax.random.normal(k[6], (E, 3, 3), jnp.float32)  # unused (see TODO)

    params = init_params(k[7], ns, nv, es, ev, ns_out, nv_out)

    fwd = jax.jit(lambda a, b, c, d, e, f: gcp_u_interactions_forward(
        params, a, b, c, d, e, f))
    out_s, out_v = fwd(node_s, node_v, edge_s, edge_v, edge_index, frames)
    jax.block_until_ready((out_s, out_v))

    assert out_s.shape == (N, ns_out) and out_s.dtype == jnp.float32
    assert out_v.shape == (N, nv_out, 3) and out_v.dtype == jnp.float32
    assert bool(jnp.all(jnp.isfinite(out_s))) and bool(jnp.all(jnp.isfinite(out_v)))

    # numerical check against the pure-JAX reference of the same math
    ref_s, ref_v = _reference_forward(params, node_s, node_v, edge_s, edge_v,
                                      edge_index)
    assert bool(jnp.allclose(out_s, ref_s, atol=2e-2, rtol=2e-2))
    assert bool(jnp.allclose(out_v, ref_v, atol=2e-2, rtol=2e-2))

    print("KERNEL_OK")
</pallas_src>

<mosaic_0001>
module attributes {stable_mosaic.version = 11 : i64} {
  func.func @_gcp_norm_kernel(%arg0: i32, %arg1: memref<16x32xf32, #tpu.memory_space<vmem>>, %arg2: memref<16x12xf32, #tpu.memory_space<vmem>>, %arg3: memref<1x32xf32, #tpu.memory_space<vmem>>, %arg4: memref<1x32xf32, #tpu.memory_space<vmem>>, %arg5: memref<16x32xf32, #tpu.memory_space<vmem>>, %arg6: memref<16x12xf32, #tpu.memory_space<vmem>>) attributes {dimension_semantics = [#tpu.dimension_semantics<parallel>], iteration_bounds = array<i64: 1>, scalar_prefetch = 0 : i64, scratch_operands = 0 : i64, tpu.core_type = #tpu.core_type<tc>, window_params = [{transform_indices = @transform_0, window_bounds = array<i64: 16, 32>}, {transform_indices = @transform_1, window_bounds = array<i64: 16, 12>}, {pipeline_mode = #tpu.pipeline_mode<synchronous>, transform_indices = @transform_2, window_bounds = array<i64: 1, 32>}, {pipeline_mode = #tpu.pipeline_mode<synchronous>, transform_indices = @transform_3, window_bounds = array<i64: 1, 32>}, {transform_indices = @transform_4, window_bounds = array<i64: 16, 32>}, {transform_indices = @transform_5, window_bounds = array<i64: 16, 12>}]} {
    %c0 = arith.constant 0 : index
    %c0_0 = arith.constant 0 : index
    %0 = vector.load %arg1[%c0, %c0_0] : memref<16x32xf32, #tpu.memory_space<vmem>>, vector<16x32xf32>
    %cst = arith.constant dense<0.000000e+00> : vector<16xf32>
    %1 = vector.multi_reduction <add>, %0, %cst [1] : vector<16x32xf32> to vector<16xf32>
    %2 = vector.shape_cast %1 : vector<16xf32> to vector<16x1xf32>
    %cst_1 = arith.constant 3.200000e+01 : f32
    %3 = vector.broadcast %cst_1 : f32 to vector<16x1xf32>
    %4 = arith.divf %2, %3 : vector<16x1xf32>
    %5 = vector.broadcast %4 : vector<16x1xf32> to vector<16x32xf32>
    %6 = arith.subf %0, %5 : vector<16x32xf32>
    %7 = arith.mulf %6, %6 : vector<16x32xf32>
    %cst_2 = arith.constant dense<0.000000e+00> : vector<16xf32>
    %8 = vector.multi_reduction <add>, %7, %cst_2 [1] : vector<16x32xf32> to vector<16xf32>
    %9 = vector.shape_cast %8 : vector<16xf32> to vector<16x1xf32>
    %cst_3 = arith.constant 3.200000e+01 : f32
    %10 = vector.broadcast %cst_3 : f32 to vector<16x1xf32>
    %11 = arith.divf %9, %10 : vector<16x1xf32>
    %12 = vector.broadcast %4 : vector<16x1xf32> to vector<16x32xf32>
    %13 = arith.subf %0, %12 : vector<16x32xf32>
    %cst_4 = arith.constant 9.99999974E-6 : f32
    %14 = vector.broadcast %cst_4 : f32 to vector<16x1xf32>
    %15 = arith.addf %11, %14 : vector<16x1xf32>
    %16 = math.rsqrt %15 : vector<16x1xf32>
    %17 = vector.broadcast %16 : vector<16x1xf32> to vector<16x32xf32>
    %18 = arith.mulf %13, %17 : vector<16x32xf32>
    %c0_5 = arith.constant 0 : index
    %c0_6 = arith.constant 0 : index
    %19 = vector.load %arg3[%c0_5, %c0_6] : memref<1x32xf32, #tpu.memory_space<vmem>>, vector<1x32xf32>
    %20 = vector.broadcast %19 : vector<1x32xf32> to vector<16x32xf32>
    %21 = arith.mulf %18, %20 : vector<16x32xf32>
    %c0_7 = arith.constant 0 : index
    %c0_8 = arith.constant 0 : index
    %22 = vector.load %arg4[%c0_7, %c0_8] : memref<1x32xf32, #tpu.memory_space<vmem>>, vector<1x32xf32>
    %23 = vector.broadcast %22 : vector<1x32xf32> to vector<16x32xf32>
    %24 = arith.addf %21, %23 : vector<16x32xf32>
    %c0_9 = arith.constant 0 : index
    %c0_10 = arith.constant 0 : index
    %25 = vector.load %arg5[%c0_9, %c0_10] : memref<16x32xf32, #tpu.memory_space<vmem>>, vector<16x32xf32>
    tpu.vector_store %arg5[%c0_9, %c0_10], %24 {strides = array<i32>} : memref<16x32xf32, #tpu.memory_space<vmem>>, vector<16x32xf32>,
    %c0_11 = arith.constant 0 : index
    %c0_12 = arith.constant 0 : index
    %26 = vector.load %arg2[%c0_11, %c0_12] : memref<16x12xf32, #tpu.memory_space<vmem>>, vector<16x12xf32>
    %27 = arith.mulf %26, %26 : vector<16x12xf32>
    %cst_13 = arith.constant dense<0.000000e+00> : vector<16xf32>
    %28 = vector.multi_reduction <add>, %27, %cst_13 [1] : vector<16x12xf32> to vector<16xf32>
    %29 = vector.shape_cast %28 : vector<16xf32> to vector<16x1xf32>
    %cst_14 = arith.constant 4.000000e+00 : f32
    %30 = vector.broadcast %cst_14 : f32 to vector<16x1xf32>
    %31 = arith.divf %29, %30 : vector<16x1xf32>
    %cst_15 = arith.constant 9.99999993E-9 : f32
    %32 = vector.broadcast %cst_15 : f32 to vector<16x1xf32>
    %33 = arith.addf %31, %32 : vector<16x1xf32>
    %34 = math.rsqrt %33 : vector<16x1xf32>
    %35 = vector.broadcast %34 : vector<16x1xf32> to vector<16x12xf32>
    %36 = arith.mulf %26, %35 : vector<16x12xf32>
    %c0_16 = arith.constant 0 : index
    %c0_17 = arith.constant 0 : index
    %37 = vector.load %arg6[%c0_16, %c0_17] : memref<16x12xf32, #tpu.memory_space<vmem>>, vector<16x12xf32>
    tpu.vector_store %arg6[%c0_16, %c0_17], %36 {strides = array<i32>} : memref<16x12xf32, #tpu.memory_space<vmem>>, vector<16x12xf32>,
    return
  }
  func.func @transform_0(%arg0: i32) -> (i32, i32) {
    %c0_i32 = arith.constant 0 : i32
    %c0_i32_0 = arith.constant 0 : i32
    return %arg0, %c0_i32 : i32, i32
  }
  func.func @transform_1(%arg0: i32) -> (i32, i32) {
    %c0_i32 = arith.constant 0 : i32
    %c0_i32_0 = arith.constant 0 : i32
    return %arg0, %c0_i32 : i32, i32
  }
  func.func @transform_2(%arg0: i32) -> (i32, i32) {
    %c0_i32 = arith.constant 0 : i32
    %c0_i32_0 = arith.constant 0 : i32
    %c0_i32_1 = arith.constant 0 : i32
    return %c0_i32, %c0_i32_0 : i32, i32
  }
  func.func @transform_3(%arg0: i32) -> (i32, i32) {
    %c0_i32 = arith.constant 0 : i32
    %c0_i32_0 = arith.constant 0 : i32
    %c0_i32_1 = arith.constant 0 : i32
    return %c0_i32, %c0_i32_0 : i32, i32
  }
  func.func @transform_4(%arg0: i32) -> (i32, i32) {
    %c0_i32 = arith.constant 0 : i32
    %c0_i32_0 = arith.constant 0 : i32
    return %arg0, %c0_i32 : i32, i32
  }
  func.func @transform_5(%arg0: i32) -> (i32, i32) {
    %c0_i32 = arith.constant 0 : i32
    %c0_i32_0 = arith.constant 0 : i32
    return %arg0, %c0_i32 : i32, i32
  }
}

module attributes {stable_mosaic.version = 11 : i64} {
  func.func @_message_kernel(%arg0: i32, %arg1: memref<32x32xf32, #tpu.memory_space<vmem>>, %arg2: memref<32x16xf32, #tpu.memory_space<vmem>>, %arg3: memref<32x32xf32, #tpu.memory_space<vmem>>, %arg4: memref<32x12xf32, #tpu.memory_space<vmem>>, %arg5: memref<32x6xf32, #tpu.memory_space<vmem>>, %arg6: memref<32x12xf32, #tpu.memory_space<vmem>>, %arg7: memref<10x10xf32, #tpu.memory_space<vmem>>, %arg8: memref<80x32xf32, #tpu.memory_space<vmem>>, %arg9: memref<10x32xf32, #tpu.memory_space<vmem>>, %arg10: memref<1x32xf32, #tpu.memory_space<vmem>>, %arg11: memref<10x4xf32, #tpu.memory_space<vmem>>, %arg12: memref<32x4xf32, #tpu.memory_space<vmem>>, %arg13: memref<1x4xf32, #tpu.memory_space<vmem>>, %arg14: memref<4x4xf32, #tpu.memory_space<vmem>>, %arg15: memref<32x32xf32, #tpu.memory_space<vmem>>, %arg16: memref<4x32xf32, #tpu.memory_space<vmem>>, %arg17: memref<1x32xf32, #tpu.memory_space<vmem>>, %arg18: memref<4x4xf32, #tpu.memory_space<vmem>>, %arg19: memref<32x4xf32, #tpu.memory_space<vmem>>, %arg20: memref<1x4xf32, #tpu.memory_space<vmem>>, %arg21: memref<1x32xf32, #tpu.memory_space<vmem>>, %arg22: memref<1x1xf32, #tpu.memory_space<vmem>>, %arg23: memref<32x44xf32, #tpu.memory_space<vmem>>) attributes {dimension_semantics = [#tpu.dimension_semantics<parallel>], iteration_bounds = array<i64: 1>, scalar_prefetch = 0 : i64, scratch_operands = 0 : i64, tpu.core_type = #tpu.core_type<tc>, window_params = [{transform_indices = @transform_0, window_bounds = array<i64: 32, 32>}, {transform_indices = @transform_1, window_bounds = array<i64: 32, 16>}, {transform_indices = @transform_2, window_bounds = array<i64: 32, 32>}, {transform_indices = @transform_3, window_bounds = array<i64: 32, 12>}, {transform_indices = @transform_4, window_bounds = array<i64: 32, 6>}, {transform_indices = @transform_5, window_bounds = array<i64: 32, 12>}, {pipeline_mode = #tpu.pipeline_mode<synchronous>, transform_indices = @transform_6, window_bounds = array<i64: 10, 10>}, {pipeline_mode = #tpu.pipeline_mode<synchronous>, transform_indices = @transform_7, window_bounds = array<i64: 80, 32>}, {pipeline_mode = #tpu.pipeline_mode<synchronous>, transform_indices = @transform_8, window_bounds = array<i64: 10, 32>}, {pipeline_mode = #tpu.pipeline_mode<synchronous>, transform_indices = @transform_9, window_bounds = array<i64: 1, 32>}, {pipeline_mode = #tpu.pipeline_mode<synchronous>, transform_indices = @transform_10, window_bounds = array<i64: 10, 4>}, {pipeline_mode = #tpu.pipeline_mode<synchronous>, transform_indices = @transform_11, window_bounds = array<i64: 32, 4>}, {pipeline_mode = #tpu.pipeline_mode<synchronous>, transform_indices = @transform_12, window_bounds = array<i64: 1, 4>}, {pipeline_mode = #tpu.pipeline_mode<synchronous>, transform_indices = @transform_13, window_bounds = array<i64: 4, 4>}, {pipeline_mode = #tpu.pipeline_mode<synchronous>, transform_indices = @transform_14, window_bounds = array<i64: 32, 32>}, {pipeline_mode = #tpu.pipeline_mode<synchronous>, transform_indices = @transform_15, window_bounds = array<i64: 4, 32>}, {pipeline_mode = #tpu.pipeline_mode<synchronous>, transform_indices = @transform_16, window_bounds = array<i64: 1, 32>}, {pipeline_mode = #tpu.pipeline_mode<synchronous>, transform_indices = @transform_17, window_bounds = array<i64: 4, 4>}, {pipeline_mode = #tpu.pipeline_mode<synchronous>, transform_indices = @transform_18, window_bounds = array<i64: 32, 4>}, {pipeline_mode = #tpu.pipeline_mode<synchronous>, transform_indices = @transform_19, window_bounds = array<i64: 1, 4>}, {pipeline_mode = #tpu.pipeline_mode<synchronous>, transform_indices = @transform_20, window_bounds = array<i64: 1, 32>}, {pipeline_mode = #tpu.pipeline_mode<synchronous>, transform_indices = @transform_21, window_bounds = array<i64: 1, 1>}, {transform_indices = @transform_22, window_bounds = array<i64: 32, 44>}]} {
    %c0 = arith.constant 0 : index
    %c0_0 = arith.constant 0 : index
    %0 = vector.load %arg1[%c0, %c0_0] : memref<32x32xf32, #tpu.memory_space<vmem>>, vector<32x32xf32>
    %c0_1 = arith.constant 0 : index
    %c0_2 = arith.constant 0 : index
    %1 = vector.load %arg2[%c0_1, %c0_2] : memref<32x16xf32, #tpu.memory_space<vmem>>, vector<32x16xf32>
    %c0_3 = arith.constant 0 : index
    %c0_4 = arith.constant 0 : index
    %2 = vector.load %arg3[%c0_3, %c0_4] : memref<32x32xf32, #tpu.memory_space<vmem>>, vector<32x32xf32>
    %3 = tpu.concatenate %0, %1, %2 in 1 : vector<32x32xf32>, vector<32x16xf32>, vector<32x32xf32> -> vector<32x80xf32>
    %c0_5 = arith.constant 0 : index
    %c0_6 = arith.constant 0 : index
    %4 = vector.load %arg4[%c0_5, %c0_6] : memref<32x12xf32, #tpu.memory_space<vmem>>, vector<32x12xf32>
    %c0_7 = arith.constant 0 : index
    %c0_8 = arith.constant 0 : index
    %5 = vector.load %arg5[%c0_7, %c0_8] : memref<32x6xf32, #tpu.memory_space<vmem>>, vector<32x6xf32>
    %c0_9 = arith.constant 0 : index
    %c0_10 = arith.constant 0 : index
    %6 = vector.load %arg6[%c0_9, %c0_10] : memref<32x12xf32, #tpu.memory_space<vmem>>, vector<32x12xf32>
    %7 = vector.extract_strided_slice %4 {offsets = [0, 0], sizes = [32, 4], strides = [1, 1]} : vector<32x12xf32> to vector<32x4xf32>
    %8 = vector.extract_strided_slice %5 {offsets = [0, 0], sizes = [32, 2], strides = [1, 1]} : vector<32x6xf32> to vector<32x2xf32>
    %9 = vector.extract_strided_slice %6 {offsets = [0, 0], sizes = [32, 4], strides = [1, 1]} : vector<32x12xf32> to vector<32x4xf32>
    %10 = tpu.concatenate %7, %8, %9 in 1 : vector<32x4xf32>, vector<32x2xf32>, vector<32x4xf32> -> vector<32x10xf32>
    %11 = vector.extract_strided_slice %4 {offsets = [0, 4], sizes = [32, 4], strides = [1, 1]} : vector<32x12xf32> to vector<32x4xf32>
    %12 = vector.extract_strided_slice %5 {offsets = [0, 2], sizes = [32, 2], strides = [1, 1]} : vector<32x6xf32> to vector<32x2xf32>
    %13 = vector.extract_strided_slice %6 {offsets = [0, 4], sizes = [32, 4], strides = [1, 1]} : vector<32x12xf32> to vector<32x4xf32>
    %14 = tpu.concatenate %11, %12, %13 in 1 : vector<32x4xf32>, vector<32x2xf32>, vector<32x4xf32> -> vector<32x10xf32>
    %15 = vector.extract_strided_slice %4 {offsets = [0, 8], sizes = [32, 4], strides = [1, 1]} : vector<32x12xf32> to vector<32x4xf32>
    %16 = vector.extract_strided_slice %5 {offsets = [0, 4], sizes = [32, 2], strides = [1, 1]} : vector<32x6xf32> to vector<32x2xf32>
    %17 = vector.extract_strided_slice %6 {offsets = [0, 8], sizes = [32, 4], strides = [1, 1]} : vector<32x12xf32> to vector<32x4xf32>
    %18 = tpu.concatenate %15, %16, %17 in 1 : vector<32x4xf32>, vector<32x2xf32>, vector<32x4xf32> -> vector<32x10xf32>
    %c0_11 = arith.constant 0 : index
    %c0_12 = arith.constant 0 : index
    %19 = vector.load %arg7[%c0_11, %c0_12] : memref<10x10xf32, #tpu.memory_space<vmem>>, vector<10x10xf32>
    %c0_13 = arith.constant 0 : index
    %c0_14 = arith.constant 0 : index
    %20 = vector.load %arg8[%c0_13, %c0_14] : memref<80x32xf32, #tpu.memory_space<vmem>>, vector<80x32xf32>
    %c0_15 = arith.constant 0 : index
    %c0_16 = arith.constant 0 : index
    %21 = vector.load %arg9[%c0_15, %c0_16] : memref<10x32xf32, #tpu.memory_space<vmem>>, vector<10x32xf32>
    %c0_17 = arith.constant 0 : index
    %c0_18 = arith.constant 0 : index
    %22 = vector.load %arg10[%c0_17, %c0_18] : memref<1x32xf32, #tpu.memory_space<vmem>>, vector<1x32xf32>
    %c0_19 = arith.constant 0 : index
    %c0_20 = arith.constant 0 : index
    %23 = vector.load %arg11[%c0_19, %c0_20] : memref<10x4xf32, #tpu.memory_space<vmem>>, vector<10x4xf32>
    %c0_21 = arith.constant 0 : index
    %c0_22 = arith.constant 0 : index
    %24 = vector.load %arg12[%c0_21, %c0_22] : memref<32x4xf32, #tpu.memory_space<vmem>>, vector<32x4xf32>
    %c0_23 = arith.constant 0 : index
    %c0_24 = arith.constant 0 : index
    %25 = vector.load %arg13[%c0_23, %c0_24] : memref<1x4xf32, #tpu.memory_space<vmem>>, vector<1x4xf32>
    %26 = tpu.concatenate %10, %14, %18 in 0 : vector<32x10xf32>, vector<32x10xf32>, vector<32x10xf32> -> vector<96x10xf32>
    %cst = arith.constant dense<0.000000e+00> : vector<96x10xf32>
    %27 = tpu.matmul %26, %19, %cst {dimension_numbers = #tpu.dot_dimension_numbers<[1], [0], [0], [1], [0, 0, 1, 1], [], []>} : vector<96x10xf32>, vector<10x10xf32>, vector<96x10xf32> -> vector<96x10xf32>
    %28 = vector.extract_strided_slice %27 {offsets = [0, 0], sizes = [32, 10], strides = [1, 1]} : vector<96x10xf32> to vector<32x10xf32>
    %29 = vector.extract_strided_slice %27 {offsets = [32, 0], sizes = [32, 10], strides = [1, 1]} : vector<96x10xf32> to vector<32x10xf32>
    %30 = vector.extract_strided_slice %27 {offsets = [64, 0], sizes = [32, 10], strides = [1, 1]} : vector<96x10xf32> to vector<32x10xf32>
    %31 = arith.mulf %28, %28 : vector<32x10xf32>
    %32 = arith.mulf %29, %29 : vector<32x10xf32>
    %33 = arith.addf %31, %32 : vector<32x10xf32>
    %34 = arith.mulf %30, %30 : vector<32x10xf32>
    %35 = arith.addf %33, %34 : vector<32x10xf32>
    %cst_25 = arith.constant 9.99999993E-9 : f32
    %36 = vector.broadcast %cst_25 : f32 to vector<32x10xf32>
    %37 = arith.addf %35, %36 : vector<32x10xf32>
    %38 = math.sqrt %37 : vector<32x10xf32>
    %cst_26 = arith.constant dense<0.000000e+00> : vector<32x32xf32>
    %39 = tpu.matmul %3, %20, %cst_26 {dimension_numbers = #tpu.dot_dimension_numbers<[1], [0], [0], [1], [0, 0, 1, 1], [], []>} : vector<32x80xf32>, vector<80x32xf32>, vector<32x32xf32> -> vector<32x32xf32>
    %cst_27 = arith.constant dense<0.000000e+00> : vector<32x32xf32>
    %40 = tpu.matmul %38, %21, %cst_27 {dimension_numbers = #tpu.dot_dimension_numbers<[1], [0], [0], [1], [0, 0, 1, 1], [], []>} : vector<32x10xf32>, vector<10x32xf32>, vector<32x32xf32> -> vector<32x32xf32>
    %41 = arith.addf %39, %40 : vector<32x32xf32>
    %42 = vector.broadcast %22 : vector<1x32xf32> to vector<32x32xf32>
    %43 = arith.addf %41, %42 : vector<32x32xf32>
    %cst_28 = arith.constant dense<0.000000e+00> : vector<96x4xf32>
    %44 = tpu.matmul %27, %23, %cst_28 {dimension_numbers = #tpu.dot_dimension_numbers<[1], [0], [0], [1], [0, 0, 1, 1], [], []>} : vector<96x10xf32>, vector<10x4xf32>, vector<96x4xf32> -> vector<96x4xf32>
    %cst_29 = arith.constant dense<0.000000e+00> : vector<32x4xf32>
    %45 = tpu.matmul %43, %24, %cst_29 {dimension_numbers = #tpu.dot_dimension_numbers<[1], [0], [0], [1], [0, 0, 1, 1], [], []>} : vector<32x32xf32>, vector<32x4xf32>, vector<32x4xf32> -> vector<32x4xf32>
    %46 = vector.broadcast %25 : vector<1x4xf32> to vector<32x4xf32>
    %47 = arith.addf %45, %46 : vector<32x4xf32>
    %48 = arith.negf %47 : vector<32x4xf32>
    %49 = math.exp %48 : vector<32x4xf32>
    %cst_30 = arith.constant 1.000000e+00 : f32
    %50 = vector.broadcast %cst_30 : f32 to vector<32x4xf32>
    %51 = arith.addf %50, %49 : vector<32x4xf32>
    %52 = arith.divf %50, %51 : vector<32x4xf32>
    %53 = vector.extract_strided_slice %44 {offsets = [0, 0], sizes = [32, 4], strides = [1, 1]} : vector<96x4xf32> to vector<32x4xf32>
    %54 = arith.mulf %53, %52 : vector<32x4xf32>
    %55 = vector.extract_strided_slice %44 {offsets = [32, 0], sizes = [32, 4], strides = [1, 1]} : vector<96x4xf32> to vector<32x4xf32>
    %56 = arith.mulf %55, %52 : vector<32x4xf32>
    %57 = vector.extract_strided_slice %44 {offsets = [64, 0], sizes = [32, 4], strides = [1, 1]} : vector<96x4xf32> to vector<32x4xf32>
    %58 = arith.mulf %57, %52 : vector<32x4xf32>
    %59 = arith.negf %43 : vector<32x32xf32>
    %60 = math.exp %59 : vector<32x32xf32>
    %cst_31 = arith.constant 1.000000e+00 : f32
    %61 = vector.broadcast %cst_31 : f32 to vector<32x32xf32>
    %62 = arith.addf %61, %60 : vector<32x32xf32>
    %63 = arith.divf %61, %62 : vector<32x32xf32>
    %64 = arith.mulf %43, %63 : vector<32x32xf32>
    %c0_32 = arith.constant 0 : index
    %c0_33 = arith.constant 0 : index
    %65 = vector.load %arg14[%c0_32, %c0_33] : memref<4x4xf32, #tpu.memory_space<vmem>>, vector<4x4xf32>
    %c0_34 = arith.constant 0 : index
    %c0_35 = arith.constant 0 : index
    %66 = vector.load %arg15[%c0_34, %c0_35] : memref<32x32xf32, #tpu.memory_space<vmem>>, vector<32x32xf32>
    %c0_36 = arith.constant 0 : index
    %c0_37 = arith.constant 0 : index
    %67 = vector.load %arg16[%c0_36, %c0_37] : memref<4x32xf32, #tpu.memory_space<vmem>>, vector<4x32xf32>
    %c0_38 = arith.constant 0 : index
    %c0_39 = arith.constant 0 : index
    %68 = vector.load %arg17[%c0_38, %c0_39] : memref<1x32xf32, #tpu.memory_space<vmem>>, vector<1x32xf32>
    %c0_40 = arith.constant 0 : index
    %c0_41 = arith.constant 0 : index
    %69 = vector.load %arg18[%c0_40, %c0_41] : memref<4x4xf32, #tpu.memory_space<vmem>>, vector<4x4xf32>
    %c0_42 = arith.constant 0 : index
    %c0_43 = arith.constant 0 : index
    %70 = vector.load %arg19[%c0_42, %c0_43] : memref<32x4xf32, #tpu.memory_space<vmem>>, vector<32x4xf32>
    %c0_44 = arith.constant 0 : index
    %c0_45 = arith.constant 0 : index
    %71 = vector.load %arg20[%c0_44, %c0_45] : memref<1x4xf32, #tpu.memory_space<vmem>>, vector<1x4xf32>
    %72 = tpu.concatenate %54, %56, %58 in 0 : vector<32x4xf32>, vector<32x4xf32>, vector<32x4xf32> -> vector<96x4xf32>
    %cst_46 = arith.constant dense<0.000000e+00> : vector<96x4xf32>
    %73 = tpu.matmul %72, %65, %cst_46 {dimension_numbers = #tpu.dot_dimension_numbers<[1], [0], [0], [1], [0, 0, 1, 1], [], []>} : vector<96x4xf32>, vector<4x4xf32>, vector<96x4xf32> -> vector<96x4xf32>
    %74 = vector.extract_strided_slice %73 {offsets = [0, 0], sizes = [32, 4], strides = [1, 1]} : vector<96x4xf32> to vector<32x4xf32>
    %75 = vector.extract_strided_slice %73 {offsets = [32, 0], sizes = [32, 4], strides = [1, 1]} : vector<96x4xf32> to vector<32x4xf32>
    %76 = vector.extract_strided_slice %73 {offsets = [64, 0], sizes = [32, 4], strides = [1, 1]} : vector<96x4xf32> to vector<32x4xf32>
    %77 = arith.mulf %74, %74 : vector<32x4xf32>
    %78 = arith.mulf %75, %75 : vector<32x4xf32>
    %79 = arith.addf %77, %78 : vector<32x4xf32>
    %80 = arith.mulf %76, %76 : vector<32x4xf32>
    %81 = arith.addf %79, %80 : vector<32x4xf32>
    %cst_47 = arith.constant 9.99999993E-9 : f32
    %82 = vector.broadcast %cst_47 : f32 to vector<32x4xf32>
    %83 = arith.addf %81, %82 : vector<32x4xf32>
    %84 = math.sqrt %83 : vector<32x4xf32>
    %cst_48 = arith.constant dense<0.000000e+00> : vector<32x32xf32>
    %85 = tpu.matmul %64, %66, %cst_48 {dimension_numbers = #tpu.dot_dimension_numbers<[1], [0], [0], [1], [0, 0, 1, 1], [], []>} : vector<32x32xf32>, vector<32x32xf32>, vector<32x32xf32> -> vector<32x32xf32>
    %cst_49 = arith.constant dense<0.000000e+00> : vector<32x32xf32>
    %86 = tpu.matmul %84, %67, %cst_49 {dimension_numbers = #tpu.dot_dimension_numbers<[1], [0], [0], [1], [0, 0, 1, 1], [], []>} : vector<32x4xf32>, vector<4x32xf32>, vector<32x32xf32> -> vector<32x32xf32>
    %87 = arith.addf %85, %86 : vector<32x32xf32>
    %88 = vector.broadcast %68 : vector<1x32xf32> to vector<32x32xf32>
    %89 = arith.addf %87, %88 : vector<32x32xf32>
    %cst_50 = arith.constant dense<0.000000e+00> : vector<96x4xf32>
    %90 = tpu.matmul %73, %69, %cst_50 {dimension_numbers = #tpu.dot_dimension_numbers<[1], [0], [0], [1], [0, 0, 1, 1], [], []>} : vector<96x4xf32>, vector<4x4xf32>, vector<96x4xf32> -> vector<96x4xf32>
    %cst_51 = arith.constant dense<0.000000e+00> : vector<32x4xf32>
    %91 = tpu.matmul %89, %70, %cst_51 {dimension_numbers = #tpu.dot_dimension_numbers<[1], [0], [0], [1], [0, 0, 1, 1], [], []>} : vector<32x32xf32>, vector<32x4xf32>, vector<32x4xf32> -> vector<32x4xf32>
    %92 = vector.broadcast %71 : vector<1x4xf32> to vector<32x4xf32>
    %93 = arith.addf %91, %92 : vector<32x4xf32>
    %94 = arith.negf %93 : vector<32x4xf32>
    %95 = math.exp %94 : vector<32x4xf32>
    %cst_52 = arith.constant 1.000000e+00 : f32
    %96 = vector.broadcast %cst_52 : f32 to vector<32x4xf32>
    %97 = arith.addf %96, %95 : vector<32x4xf32>
    %98 = arith.divf %96, %97 : vector<32x4xf32>
    %99 = vector.extract_strided_slice %90 {offsets = [0, 0], sizes = [32, 4], strides = [1, 1]} : vector<96x4xf32> to vector<32x4xf32>
    %100 = arith.mulf %99, %98 : vector<32x4xf32>
    %101 = vector.extract_strided_slice %90 {offsets = [32, 0], sizes = [32, 4], strides = [1, 1]} : vector<96x4xf32> to vector<32x4xf32>
    %102 = arith.mulf %101, %98 : vector<32x4xf32>
    %103 = vector.extract_strided_slice %90 {offsets = [64, 0], sizes = [32, 4], strides = [1, 1]} : vector<96x4xf32> to vector<32x4xf32>
    %104 = arith.mulf %103, %98 : vector<32x4xf32>
    %105 = arith.negf %89 : vector<32x32xf32>
    %106 = math.exp %105 : vector<32x32xf32>
    %cst_53 = arith.constant 1.000000e+00 : f32
    %107 = vector.broadcast %cst_53 : f32 to vector<32x32xf32>
    %108 = arith.addf %107, %106 : vector<32x32xf32>
    %109 = arith.divf %107, %108 : vector<32x32xf32>
    %110 = arith.mulf %89, %109 : vector<32x32xf32>
    %111 = arith.addf %64, %110 : vector<32x32xf32>
    %112 = arith.addf %54, %100 : vector<32x4xf32>
    %113 = arith.addf %56, %102 : vector<32x4xf32>
    %114 = arith.addf %58, %104 : vector<32x4xf32>
    %c0_54 = arith.constant 0 : index
    %c0_55 = arith.constant 0 : index
    %115 = vector.load %arg21[%c0_54, %c0_55] : memref<1x32xf32, #tpu.memory_space<vmem>>, vector<1x32xf32>
    %116 = vector.broadcast %115 : vector<1x32xf32> to vector<32x32xf32>
    %117 = arith.mulf %111, %116 : vector<32x32xf32>
    %cst_56 = arith.constant dense<0.000000e+00> : vector<32xf32>
    %118 = vector.multi_reduction <add>, %117, %cst_56 [1] : vector<32x32xf32> to vector<32xf32>
    %119 = vector.shape_cast %118 : vector<32xf32> to vector<32x1xf32>
    %c0_57 = arith.constant 0 : index
    %c0_58 = arith.constant 0 : index
    %120 = vector.load %arg22[%c0_57, %c0_58] : memref<1x1xf32, #tpu.memory_space<vmem>>, vector<1x1xf32>
    %121 = vector.broadcast %120 : vector<1x1xf32> to vector<32x1xf32>
    %122 = arith.addf %119, %121 : vector<32x1xf32>
    %123 = arith.negf %122 : vector<32x1xf32>
    %124 = math.exp %123 : vector<32x1xf32>
    %cst_59 = arith.constant 1.000000e+00 : f32
    %125 = vector.broadcast %cst_59 : f32 to vector<32x1xf32>
    %126 = arith.addf %125, %124 : vector<32x1xf32>
    %127 = arith.divf %125, %126 : vector<32x1xf32>
    %128 = vector.broadcast %127 : vector<32x1xf32> to vector<32x32xf32>
    %129 = arith.mulf %111, %128 : vector<32x32xf32>
    %130 = tpu.concatenate %129, %112, %113, %114 in 1 : vector<32x32xf32>, vector<32x4xf32>, vector<32x4xf32>, vector<32x4xf32> -> vector<32x44xf32>
    %c0_60 = arith.constant 0 : index
    %c0_61 = arith.constant 0 : index
    %131 = vector.load %arg23[%c0_60, %c0_61] : memref<32x44xf32, #tpu.memory_space<vmem>>, vector<32x44xf32>
    tpu.vector_store %arg23[%c0_60, %c0_61], %130 {strides = array<i32>} : memref<32x44xf32, #tpu.memory_space<vmem>>, vector<32x44xf32>,
    return
  }
  func.func @transform_0(%arg0: i32) -> (i32, i32) {
    %c0_i32 = arith.constant 0 : i32
    %c0_i32_0 = arith.constant 0 : i32
    return %arg0, %c0_i32 : i32, i32
  }
  func.func @transform_1(%arg0: i32) -> (i32, i32) {
    %c0_i32 = arith.constant 0 : i32
    %c0_i32_0 = arith.constant 0 : i32
    return %arg0, %c0_i32 : i32, i32
  }
  func.func @transform_2(%arg0: i32) -> (i32, i32) {
    %c0_i32 = arith.constant 0 : i32
    %c0_i32_0 = arith.constant 0 : i32
    return %arg0, %c0_i32 : i32, i32
  }
  func.func @transform_3(%arg0: i32) -> (i32, i32) {
    %c0_i32 = arith.constant 0 : i32
    %c0_i32_0 = arith.constant 0 : i32
    return %arg0, %c0_i32 : i32, i32
  }
  func.func @transform_4(%arg0: i32) -> (i32, i32) {
    %c0_i32 = arith.constant 0 : i32
    %c0_i32_0 = arith.constant 0 : i32
    return %arg0, %c0_i32 : i32, i32
  }
  func.func @transform_5(%arg0: i32) -> (i32, i32) {
    %c0_i32 = arith.constant 0 : i32
    %c0_i32_0 = arith.constant 0 : i32
    return %arg0, %c0_i32 : i32, i32
  }
  func.func @transform_6(%arg0: i32) -> (i32, i32) {
    %c0_i32 = arith.constant 0 : i32
    %c0_i32_0 = arith.constant 0 : i32
    %c0_i32_1 = arith.constant 0 : i32
    return %c0_i32, %c0_i32_0 : i32, i32
  }
  func.func @transform_7(%arg0: i32) -> (i32, i32) {
    %c0_i32 = arith.constant 0 : i32
    %c0_i32_0 = arith.constant 0 : i32
    %c0_i32_1 = arith.constant 0 : i32
    return %c0_i32, %c0_i32_0 : i32, i32
  }
  func.func @transform_8(%arg0: i32) -> (i32, i32) {
    %c0_i32 = arith.constant 0 : i32
    %c0_i32_0 = arith.constant 0 : i32
    %c0_i32_1 = arith.constant 0 : i32
    return %c0_i32, %c0_i32_0 : i32, i32
  }
  func.func @transform_9(%arg0: i32) -> (i32, i32) {
    %c0_i32 = arith.constant 0 : i32
    %c0_i32_0 = arith.constant 0 : i32
    %c0_i32_1 = arith.constant 0 : i32
    return %c0_i32, %c0_i32_0 : i32, i32
  }
  func.func @transform_10(%arg0: i32) -> (i32, i32) {
    %c0_i32 = arith.constant 0 : i32
    %c0_i32_0 = arith.constant 0 : i32
    %c0_i32_1 = arith.constant 0 : i32
    return %c0_i32, %c0_i32_0 : i32, i32
  }
  func.func @transform_11(%arg0: i32) -> (i32, i32) {
    %c0_i32 = arith.constant 0 : i32
    %c0_i32_0 = arith.constant 0 : i32
    %c0_i32_1 = arith.constant 0 : i32
    return %c0_i32, %c0_i32_0 : i32, i32
  }
  func.func @transform_12(%arg0: i32) -> (i32, i32) {
    %c0_i32 = arith.constant 0 : i32
    %c0_i32_0 = arith.constant 0 : i32
    %c0_i32_1 = arith.constant 0 : i32
    return %c0_i32, %c0_i32_0 : i32, i32
  }
  func.func @transform_13(%arg0: i32) -> (i32, i32) {
    %c0_i32 = arith.constant 0 : i32
    %c0_i32_0 = arith.constant 0 : i32
    %c0_i32_1 = arith.constant 0 : i32
    return %c0_i32, %c0_i32_0 : i32, i32
  }
  func.func @transform_14(%arg0: i32) -> (i32, i32) {
    %c0_i32 = arith.constant 0 : i32
    %c0_i32_0 = arith.constant 0 : i32
    %c0_i32_1 = arith.constant 0 : i32
    return %c0_i32, %c0_i32_0 : i32, i32
  }
  func.func @transform_15(%arg0: i32) -> (i32, i32) {
    %c0_i32 = arith.constant 0 : i32
    %c0_i32_0 = arith.constant 0 : i32
    %c0_i32_1 = arith.constant 0 : i32
    return %c0_i32, %c0_i32_0 : i32, i32
  }
  func.func @transform_16(%arg0: i32) -> (i32, i32) {
    %c0_i32 = arith.constant 0 : i32
    %c0_i32_0 = arith.constant 0 : i32
    %c0_i32_1 = arith.constant 0 : i32
    return %c0_i32, %c0_i32_0 : i32, i32
  }
  func.func @transform_17(%arg0: i32) -> (i32, i32) {
    %c0_i32 = arith.constant 0 : i32
    %c0_i32_0 = arith.constant 0 : i32
    %c0_i32_1 = arith.constant 0 : i32
    return %c0_i32, %c0_i32_0 : i32, i32
  }
  func.func @transform_18(%arg0: i32) -> (i32, i32) {
    %c0_i32 = arith.constant 0 : i32
    %c0_i32_0 = arith.constant 0 : i32
    %c0_i32_1 = arith.constant 0 : i32
    return %c0_i32, %c0_i32_0 : i32, i32
  }
  func.func @transform_19(%arg0: i32) -> (i32, i32) {
    %c0_i32 = arith.constant 0 : i32
    %c0_i32_0 = arith.constant 0 : i32
    %c0_i32_1 = arith.constant 0 : i32
    return %c0_i32, %c0_i32_0 : i32, i32
  }
  func.func @transform_20(%arg0: i32) -> (i32, i32) {
    %c0_i32 = arith.constant 0 : i32
    %c0_i32_0 = arith.constant 0 : i32
    %c0_i32_1 = arith.constant 0 : i32
    return %c0_i32, %c0_i32_0 : i32, i32
  }
  func.func @transform_21(%arg0: i32) -> (i32, i32) {
    %c0_i32 = arith.constant 0 : i32
    %c0_i32_0 = arith.constant 0 : i32
    %c0_i32_1 = arith.constant 0 : i32
    return %c0_i32, %c0_i32_0 : i32, i32
  }
  func.func @transform_22(%arg0: i32) -> (i32, i32) {
    %c0_i32 = arith.constant 0 : i32
    %c0_i32_0 = arith.constant 0 : i32
    return %arg0, %c0_i32 : i32, i32
  }
}

module attributes {stable_mosaic.version = 11 : i64} {
  func.func @_scatter_sum_kernel(%arg0: i32, %arg1: memref<1x32xi32, #tpu.memory_space<vmem>>, %arg2: memref<32x44xf32, #tpu.memory_space<vmem>>, %arg3: memref<16x44xf32, #tpu.memory_space<vmem>>) attributes {dimension_semantics = [#tpu.dimension_semantics<arbitrary>], iteration_bounds = array<i64: 1>, scalar_prefetch = 0 : i64, scratch_operands = 0 : i64, tpu.core_type = #tpu.core_type<tc>, window_params = [{transform_indices = @transform_0, window_bounds = array<i64: 1, 32>}, {transform_indices = @transform_1, window_bounds = array<i64: 32, 44>}, {pipeline_mode = #tpu.pipeline_mode<synchronous>, transform_indices = @transform_2, window_bounds = array<i64: 16, 44>}]} {
    %c0_i32 = arith.constant 0 : i32
    %0 = arith.cmpi eq, %arg0, %c0_i32 : i32
    %1 = arith.extui %0 : i1 to i32
    %c0_i32_0 = arith.constant 0 : i32
    %2 = arith.cmpi ne, %1, %c0_i32_0 : i32
    scf.if %2 {
      %cst_8 = arith.constant 0.000000e+00 : f32
      %14 = vector.broadcast %cst_8 : f32 to vector<16x44xf32>
      %c0_9 = arith.constant 0 : index
      %c0_10 = arith.constant 0 : index
      %15 = vector.load %arg3[%c0_9, %c0_10] : memref<16x44xf32, #tpu.memory_space<vmem>>, vector<16x44xf32>
      tpu.vector_store %arg3[%c0_9, %c0_10], %14 {strides = array<i32>} : memref<16x44xf32, #tpu.memory_space<vmem>>, vector<16x44xf32>,
    } else {
    }
    %3 = tpu.iota {dimensions = array<i32: 0>} : vector<16x32xi32>
    %c0 = arith.constant 0 : index
    %c0_1 = arith.constant 0 : index
    %4 = vector.load %arg1[%c0, %c0_1] : memref<1x32xi32, #tpu.memory_space<vmem>>, vector<1x32xi32>
    %5 = vector.broadcast %4 : vector<1x32xi32> to vector<16x32xi32>
    %6 = arith.cmpi eq, %3, %5 : vector<16x32xi32>
    %7 = arith.extui %6 : vector<16x32xi1> to vector<16x32xi32>
    %8 = arith.sitofp %7 : vector<16x32xi32> to vector<16x32xf32>
    %c0_2 = arith.constant 0 : index
    %c0_3 = arith.constant 0 : index
    %9 = vector.load %arg3[%c0_2, %c0_3] : memref<16x44xf32, #tpu.memory_space<vmem>>, vector<16x44xf32>
    %c0_4 = arith.constant 0 : index
    %c0_5 = arith.constant 0 : index
    %10 = vector.load %arg2[%c0_4, %c0_5] : memref<32x44xf32, #tpu.memory_space<vmem>>, vector<32x44xf32>
    %cst = arith.constant dense<0.000000e+00> : vector<16x44xf32>
    %11 = tpu.matmul %8, %10, %cst {dimension_numbers = #tpu.dot_dimension_numbers<[1], [0], [0], [1], [0, 0, 1, 1], [], []>} : vector<16x32xf32>, vector<32x44xf32>, vector<16x44xf32> -> vector<16x44xf32>
    %12 = arith.addf %9, %11 : vector<16x44xf32>
    %c0_6 = arith.constant 0 : index
    %c0_7 = arith.constant 0 : index
    %13 = vector.load %arg3[%c0_6, %c0_7] : memref<16x44xf32, #tpu.memory_space<vmem>>, vector<16x44xf32>
    tpu.vector_store %arg3[%c0_6, %c0_7], %12 {strides = array<i32>} : memref<16x44xf32, #tpu.memory_space<vmem>>, vector<16x44xf32>,
    return
  }
  func.func @transform_0(%arg0: i32) -> (i32, i32) {
    %c0_i32 = arith.constant 0 : i32
    %c0_i32_0 = arith.constant 0 : i32
    return %c0_i32, %arg0 : i32, i32
  }
  func.func @transform_1(%arg0: i32) -> (i32, i32) {
    %c0_i32 = arith.constant 0 : i32
    %c0_i32_0 = arith.constant 0 : i32
    return %arg0, %c0_i32 : i32, i32
  }
  func.func @transform_2(%arg0: i32) -> (i32, i32) {
    %c0_i32 = arith.constant 0 : i32
    %c0_i32_0 = arith.constant 0 : i32
    %c0_i32_1 = arith.constant 0 : i32
    return %c0_i32, %c0_i32_0 : i32, i32
  }
}

module attributes {stable_mosaic.version = 11 : i64} {
  func.func @_node_update_kernel(%arg0: i32, %arg1: memref<16x44xf32, #tpu.memory_space<vmem>>, %arg2: memref<16x32xf32, #tpu.memory_space<vmem>>, %arg3: memref<16x12xf32, #tpu.memory_space<vmem>>, %arg4: memref<8x8xf32, #tpu.memory_space<vmem>>, %arg5: memref<64x32xf32, #tpu.memory_space<vmem>>, %arg6: memref<8x32xf32, #tpu.memory_space<vmem>>, %arg7: memref<1x32xf32, #tpu.memory_space<vmem>>, %arg8: memref<8x4xf32, #tpu.memory_space<vmem>>, %arg9: memref<32x4xf32, #tpu.memory_space<vmem>>, %arg10: memref<1x4xf32, #tpu.memory_space<vmem>>, %arg11: memref<64x32xf32, #tpu.memory_space<vmem>>, %arg12: memref<1x32xf32, #tpu.memory_space<vmem>>, %arg13: memref<16x32xf32, #tpu.memory_space<vmem>>, %arg14: memref<16x12xf32, #tpu.memory_space<vmem>>) attributes {dimension_semantics = [#tpu.dimension_semantics<parallel>], iteration_bounds = array<i64: 1>, scalar_prefetch = 0 : i64, scratch_operands = 0 : i64, tpu.core_type = #tpu.core_type<tc>, window_params = [{transform_indices = @transform_0, window_bounds = array<i64: 16, 44>}, {transform_indices = @transform_1, window_bounds = array<i64: 16, 32>}, {transform_indices = @transform_2, window_bounds = array<i64: 16, 12>}, {pipeline_mode = #tpu.pipeline_mode<synchronous>, transform_indices = @transform_3, window_bounds = array<i64: 8, 8>}, {pipeline_mode = #tpu.pipeline_mode<synchronous>, transform_indices = @transform_4, window_bounds = array<i64: 64, 32>}, {pipeline_mode = #tpu.pipeline_mode<synchronous>, transform_indices = @transform_5, window_bounds = array<i64: 8, 32>}, {pipeline_mode = #tpu.pipeline_mode<synchronous>, transform_indices = @transform_6, window_bounds = array<i64: 1, 32>}, {pipeline_mode = #tpu.pipeline_mode<synchronous>, transform_indices = @transform_7, window_bounds = array<i64: 8, 4>}, {pipeline_mode = #tpu.pipeline_mode<synchronous>, transform_indices = @transform_8, window_bounds = array<i64: 32, 4>}, {pipeline_mode = #tpu.pipeline_mode<synchronous>, transform_indices = @transform_9, window_bounds = array<i64: 1, 4>}, {pipeline_mode = #tpu.pipeline_mode<synchronous>, transform_indices = @transform_10, window_bounds = array<i64: 64, 32>}, {pipeline_mode = #tpu.pipeline_mode<synchronous>, transform_indices = @transform_11, window_bounds = array<i64: 1, 32>}, {transform_indices = @transform_12, window_bounds = array<i64: 16, 32>}, {transform_indices = @transform_13, window_bounds = array<i64: 16, 12>}]} {
    %c0 = arith.constant 0 : index
    %c0_0 = arith.constant 0 : index
    %0 = vector.load %arg1[%c0, %c0_0] : memref<16x44xf32, #tpu.memory_space<vmem>>, vector<16x44xf32>
    %1 = vector.extract_strided_slice %0 {offsets = [0, 0], sizes = [16, 32], strides = [1, 1]} : vector<16x44xf32> to vector<16x32xf32>
    %2 = vector.extract_strided_slice %0 {offsets = [0, 32], sizes = [16, 12], strides = [1, 1]} : vector<16x44xf32> to vector<16x12xf32>
    %c0_1 = arith.constant 0 : index
    %c0_2 = arith.constant 0 : index
    %3 = vector.load %arg2[%c0_1, %c0_2] : memref<16x32xf32, #tpu.memory_space<vmem>>, vector<16x32xf32>
    %c0_3 = arith.constant 0 : index
    %c0_4 = arith.constant 0 : index
    %4 = vector.load %arg3[%c0_3, %c0_4] : memref<16x12xf32, #tpu.memory_space<vmem>>, vector<16x12xf32>
    %5 = tpu.concatenate %1, %3 in 1 : vector<16x32xf32>, vector<16x32xf32> -> vector<16x64xf32>
    %6 = vector.extract_strided_slice %2 {offsets = [0, 0], sizes = [16, 4], strides = [1, 1]} : vector<16x12xf32> to vector<16x4xf32>
    %7 = vector.extract_strided_slice %4 {offsets = [0, 0], sizes = [16, 4], strides = [1, 1]} : vector<16x12xf32> to vector<16x4xf32>
    %8 = tpu.concatenate %6, %7 in 1 : vector<16x4xf32>, vector<16x4xf32> -> vector<16x8xf32>
    %9 = vector.extract_strided_slice %2 {offsets = [0, 4], sizes = [16, 4], strides = [1, 1]} : vector<16x12xf32> to vector<16x4xf32>
    %10 = vector.extract_strided_slice %4 {offsets = [0, 4], sizes = [16, 4], strides = [1, 1]} : vector<16x12xf32> to vector<16x4xf32>
    %11 = tpu.concatenate %9, %10 in 1 : vector<16x4xf32>, vector<16x4xf32> -> vector<16x8xf32>
    %12 = vector.extract_strided_slice %2 {offsets = [0, 8], sizes = [16, 4], strides = [1, 1]} : vector<16x12xf32> to vector<16x4xf32>
    %13 = vector.extract_strided_slice %4 {offsets = [0, 8], sizes = [16, 4], strides = [1, 1]} : vector<16x12xf32> to vector<16x4xf32>
    %14 = tpu.concatenate %12, %13 in 1 : vector<16x4xf32>, vector<16x4xf32> -> vector<16x8xf32>
    %c0_5 = arith.constant 0 : index
    %c0_6 = arith.constant 0 : index
    %15 = vector.load %arg4[%c0_5, %c0_6] : memref<8x8xf32, #tpu.memory_space<vmem>>, vector<8x8xf32>
    %c0_7 = arith.constant 0 : index
    %c0_8 = arith.constant 0 : index
    %16 = vector.load %arg5[%c0_7, %c0_8] : memref<64x32xf32, #tpu.memory_space<vmem>>, vector<64x32xf32>
    %c0_9 = arith.constant 0 : index
    %c0_10 = arith.constant 0 : index
    %17 = vector.load %arg6[%c0_9, %c0_10] : memref<8x32xf32, #tpu.memory_space<vmem>>, vector<8x32xf32>
    %c0_11 = arith.constant 0 : index
    %c0_12 = arith.constant 0 : index
    %18 = vector.load %arg7[%c0_11, %c0_12] : memref<1x32xf32, #tpu.memory_space<vmem>>, vector<1x32xf32>
    %c0_13 = arith.constant 0 : index
    %c0_14 = arith.constant 0 : index
    %19 = vector.load %arg8[%c0_13, %c0_14] : memref<8x4xf32, #tpu.memory_space<vmem>>, vector<8x4xf32>
    %c0_15 = arith.constant 0 : index
    %c0_16 = arith.constant 0 : index
    %20 = vector.load %arg9[%c0_15, %c0_16] : memref<32x4xf32, #tpu.memory_space<vmem>>, vector<32x4xf32>
    %c0_17 = arith.constant 0 : index
    %c0_18 = arith.constant 0 : index
    %21 = vector.load %arg10[%c0_17, %c0_18] : memref<1x4xf32, #tpu.memory_space<vmem>>, vector<1x4xf32>
    %22 = tpu.concatenate %8, %11, %14 in 0 : vector<16x8xf32>, vector<16x8xf32>, vector<16x8xf32> -> vector<48x8xf32>
    %cst = arith.constant dense<0.000000e+00> : vector<48x8xf32>
    %23 = tpu.matmul %22, %15, %cst {dimension_numbers = #tpu.dot_dimension_numbers<[1], [0], [0], [1], [0, 0, 1, 1], [], []>} : vector<48x8xf32>, vector<8x8xf32>, vector<48x8xf32> -> vector<48x8xf32>
    %24 = vector.extract_strided_slice %23 {offsets = [0, 0], sizes = [16, 8], strides = [1, 1]} : vector<48x8xf32> to vector<16x8xf32>
    %25 = vector.extract_strided_slice %23 {offsets = [16, 0], sizes = [16, 8], strides = [1, 1]} : vector<48x8xf32> to vector<16x8xf32>
    %26 = vector.extract_strided_slice %23 {offsets = [32, 0], sizes = [16, 8], strides = [1, 1]} : vector<48x8xf32> to vector<16x8xf32>
    %27 = arith.mulf %24, %24 : vector<16x8xf32>
    %28 = arith.mulf %25, %25 : vector<16x8xf32>
    %29 = arith.addf %27, %28 : vector<16x8xf32>
    %30 = arith.mulf %26, %26 : vector<16x8xf32>
    %31 = arith.addf %29, %30 : vector<16x8xf32>
    %cst_19 = arith.constant 9.99999993E-9 : f32
    %32 = vector.broadcast %cst_19 : f32 to vector<16x8xf32>
    %33 = arith.addf %31, %32 : vector<16x8xf32>
    %34 = math.sqrt %33 : vector<16x8xf32>
    %cst_20 = arith.constant dense<0.000000e+00> : vector<16x32xf32>
    %35 = tpu.matmul %5, %16, %cst_20 {dimension_numbers = #tpu.dot_dimension_numbers<[1], [0], [0], [1], [0, 0, 1, 1], [], []>} : vector<16x64xf32>, vector<64x32xf32>, vector<16x32xf32> -> vector<16x32xf32>
    %cst_21 = arith.constant dense<0.000000e+00> : vector<16x32xf32>
    %36 = tpu.matmul %34, %17, %cst_21 {dimension_numbers = #tpu.dot_dimension_numbers<[1], [0], [0], [1], [0, 0, 1, 1], [], []>} : vector<16x8xf32>, vector<8x32xf32>, vector<16x32xf32> -> vector<16x32xf32>
    %37 = arith.addf %35, %36 : vector<16x32xf32>
    %38 = vector.broadcast %18 : vector<1x32xf32> to vector<16x32xf32>
    %39 = arith.addf %37, %38 : vector<16x32xf32>
    %cst_22 = arith.constant dense<0.000000e+00> : vector<48x4xf32>
    %40 = tpu.matmul %23, %19, %cst_22 {dimension_numbers = #tpu.dot_dimension_numbers<[1], [0], [0], [1], [0, 0, 1, 1], [], []>} : vector<48x8xf32>, vector<8x4xf32>, vector<48x4xf32> -> vector<48x4xf32>
    %cst_23 = arith.constant dense<0.000000e+00> : vector<16x4xf32>
    %41 = tpu.matmul %39, %20, %cst_23 {dimension_numbers = #tpu.dot_dimension_numbers<[1], [0], [0], [1], [0, 0, 1, 1], [], []>} : vector<16x32xf32>, vector<32x4xf32>, vector<16x4xf32> -> vector<16x4xf32>
    %42 = vector.broadcast %21 : vector<1x4xf32> to vector<16x4xf32>
    %43 = arith.addf %41, %42 : vector<16x4xf32>
    %44 = arith.negf %43 : vector<16x4xf32>
    %45 = math.exp %44 : vector<16x4xf32>
    %cst_24 = arith.constant 1.000000e+00 : f32
    %46 = vector.broadcast %cst_24 : f32 to vector<16x4xf32>
    %47 = arith.addf %46, %45 : vector<16x4xf32>
    %48 = arith.divf %46, %47 : vector<16x4xf32>
    %49 = vector.extract_strided_slice %40 {offsets = [0, 0], sizes = [16, 4], strides = [1, 1]} : vector<48x4xf32> to vector<16x4xf32>
    %50 = arith.mulf %49, %48 : vector<16x4xf32>
    %51 = vector.extract_strided_slice %40 {offsets = [16, 0], sizes = [16, 4], strides = [1, 1]} : vector<48x4xf32> to vector<16x4xf32>
    %52 = arith.mulf %51, %48 : vector<16x4xf32>
    %53 = vector.extract_strided_slice %40 {offsets = [32, 0], sizes = [16, 4], strides = [1, 1]} : vector<48x4xf32> to vector<16x4xf32>
    %54 = arith.mulf %53, %48 : vector<16x4xf32>
    %55 = tpu.concatenate %3, %39 in 1 : vector<16x32xf32>, vector<16x32xf32> -> vector<16x64xf32>
    %c0_25 = arith.constant 0 : index
    %c0_26 = arith.constant 0 : index
    %56 = vector.load %arg11[%c0_25, %c0_26] : memref<64x32xf32, #tpu.memory_space<vmem>>, vector<64x32xf32>
    %cst_27 = arith.constant dense<0.000000e+00> : vector<16x32xf32>
    %57 = tpu.matmul %55, %56, %cst_27 {dimension_numbers = #tpu.dot_dimension_numbers<[1], [0], [0], [1], [0, 0, 1, 1], [], []>} : vector<16x64xf32>, vector<64x32xf32>, vector<16x32xf32> -> vector<16x32xf32>
    %c0_28 = arith.constant 0 : index
    %c0_29 = arith.constant 0 : index
    %58 = vector.load %arg12[%c0_28, %c0_29] : memref<1x32xf32, #tpu.memory_space<vmem>>, vector<1x32xf32>
    %59 = vector.broadcast %58 : vector<1x32xf32> to vector<16x32xf32>
    %60 = arith.addf %57, %59 : vector<16x32xf32>
    %c0_30 = arith.constant 0 : index
    %c0_31 = arith.constant 0 : index
    %61 = vector.load %arg13[%c0_30, %c0_31] : memref<16x32xf32, #tpu.memory_space<vmem>>, vector<16x32xf32>
    tpu.vector_store %arg13[%c0_30, %c0_31], %60 {strides = array<i32>} : memref<16x32xf32, #tpu.memory_space<vmem>>, vector<16x32xf32>,
    %62 = vector.extract_strided_slice %4 {offsets = [0, 0], sizes = [16, 4], strides = [1, 1]} : vector<16x12xf32> to vector<16x4xf32>
    %63 = arith.addf %62, %50 : vector<16x4xf32>
    %64 = vector.extract_strided_slice %4 {offsets = [0, 4], sizes = [16, 4], strides = [1, 1]} : vector<16x12xf32> to vector<16x4xf32>
    %65 = arith.addf %64, %52 : vector<16x4xf32>
    %66 = vector.extract_strided_slice %4 {offsets = [0, 8], sizes = [16, 4], strides = [1, 1]} : vector<16x12xf32> to vector<16x4xf32>
    %67 = arith.addf %66, %54 : vector<16x4xf32>
    %68 = tpu.concatenate %63, %65, %67 in 1 : vector<16x4xf32>, vector<16x4xf32>, vector<16x4xf32> -> vector<16x12xf32>
    %c0_32 = arith.constant 0 : index
    %c0_33 = arith.constant 0 : index
    %69 = vector.load %arg14[%c0_32, %c0_33] : memref<16x12xf32, #tpu.memory_space<vmem>>, vector<16x12xf32>
    tpu.vector_store %arg14[%c0_32, %c0_33], %68 {strides = array<i32>} : memref<16x12xf32, #tpu.memory_space<vmem>>, vector<16x12xf32>,
    return
  }
  func.func @transform_0(%arg0: i32) -> (i32, i32) {
    %c0_i32 = arith.constant 0 : i32
    %c0_i32_0 = arith.constant 0 : i32
    return %arg0, %c0_i32 : i32, i32
  }
  func.func @transform_1(%arg0: i32) -> (i32, i32) {
    %c0_i32 = arith.constant 0 : i32
    %c0_i32_0 = arith.constant 0 : i32
    return %arg0, %c0_i32 : i32, i32
  }
  func.func @transform_2(%arg0: i32) -> (i32, i32) {
    %c0_i32 = arith.constant 0 : i32
    %c0_i32_0 = arith.constant 0 : i32
    return %arg0, %c0_i32 : i32, i32
  }
  func.func @transform_3(%arg0: i32) -> (i32, i32) {
    %c0_i32 = arith.constant 0 : i32
    %c0_i32_0 = arith.constant 0 : i32
    %c0_i32_1 = arith.constant 0 : i32
    return %c0_i32, %c0_i32_0 : i32, i32
  }
  func.func @transform_4(%arg0: i32) -> (i32, i32) {
    %c0_i32 = arith.constant 0 : i32
    %c0_i32_0 = arith.constant 0 : i32
    %c0_i32_1 = arith.constant 0 : i32
    return %c0_i32, %c0_i32_0 : i32, i32
  }
  func.func @transform_5(%arg0: i32) -> (i32, i32) {
    %c0_i32 = arith.constant 0 : i32
    %c0_i32_0 = arith.constant 0 : i32
    %c0_i32_1 = arith.constant 0 : i32
    return %c0_i32, %c0_i32_0 : i32, i32
  }
  func.func @transform_6(%arg0: i32) -> (i32, i32) {
    %c0_i32 = arith.constant 0 : i32
    %c0_i32_0 = arith.constant 0 : i32
    %c0_i32_1 = arith.constant 0 : i32
    return %c0_i32, %c0_i32_0 : i32, i32
  }
  func.func @transform_7(%arg0: i32) -> (i32, i32) {
    %c0_i32 = arith.constant 0 : i32
    %c0_i32_0 = arith.constant 0 : i32
    %c0_i32_1 = arith.constant 0 : i32
    return %c0_i32, %c0_i32_0 : i32, i32
  }
  func.func @transform_8(%arg0: i32) -> (i32, i32) {
    %c0_i32 = arith.constant 0 : i32
    %c0_i32_0 = arith.constant 0 : i32
    %c0_i32_1 = arith.constant 0 : i32
    return %c0_i32, %c0_i32_0 : i32, i32
  }
  func.func @transform_9(%arg0: i32) -> (i32, i32) {
    %c0_i32 = arith.constant 0 : i32
    %c0_i32_0 = arith.constant 0 : i32
    %c0_i32_1 = arith.constant 0 : i32
    return %c0_i32, %c0_i32_0 : i32, i32
  }
  func.func @transform_10(%arg0: i32) -> (i32, i32) {
    %c0_i32 = arith.constant 0 : i32
    %c0_i32_0 = arith.constant 0 : i32
    %c0_i32_1 = arith.constant 0 : i32
    return %c0_i32, %c0_i32_0 : i32, i32
  }
  func.func @transform_11(%arg0: i32) -> (i32, i32) {
    %c0_i32 = arith.constant 0 : i32
    %c0_i32_0 = arith.constant 0 : i32
    %c0_i32_1 = arith.constant 0 : i32
    return %c0_i32, %c0_i32_0 : i32, i32
  }
  func.func @transform_12(%arg0: i32) -> (i32, i32) {
    %c0_i32 = arith.constant 0 : i32
    %c0_i32_0 = arith.constant 0 : i32
    return %arg0, %c0_i32 : i32, i32
  }
  func.func @transform_13(%arg0: i32) -> (i32, i32) {
    %c0_i32 = arith.constant 0 : i32
    %c0_i32_0 = arith.constant 0 : i32
    return %arg0, %c0_i32 : i32, i32
  }
}

</mosaic_0001>

<llo_original>
// kernel: _lambda_.4
$region0: #{_lambda_.4}
  #allocation0 [shape = 'u32[]', space=smem, size = 0x4, offset = 0x4, fixed_abs, tag = 'smem constant byte address 0x4 - core index']
  #allocation1 [shape = 'u32[72,128]{1,0:T(1,128)}', space=vmem, size = 0x9000, scoped, tag = 'internal scratch']
  %s0 = inlined_call_operand.vmem [shape: f32[16,32], index: 0, kind: input, shape index: {}]
  %s1 = inlined_call_operand.vmem [shape: f32[16,12], index: 1, kind: input, shape index: {}]
  %s2 = inlined_call_operand.vmem [shape: f32[1,32], index: 2, kind: input, shape index: {}]
  %s3 = inlined_call_operand.vmem [shape: f32[1,32], index: 3, kind: input, shape index: {}]
  %s4 = inlined_call_operand.vmem [shape: f32[16,32], index: 4, kind: output, shape index: {0}]
  %s5 = inlined_call_operand.vmem [shape: f32[16,12], index: 5, kind: output, shape index: {1}]
  %6 = xla_tuple %s4, %s5
  %s7 = sld [smem:[#allocation0]]
  $region34: #{_lambda_.4} parent=0
    _
  %s9 = ssub.s32 1, %s7
  %s10 = scalar_select 0, %s9, %s7
  // Predicated region
  $region2: #{_lambda_.4} parent=0 // pred_check
    _
  $region3: #{_lambda_.4} parent=0 // pred_check_branch
    %12 = sbr.rel (0) target = $region5
  $region4: #{_lambda_.4} parent=0 // pred_region
    _
  $region5: #{_lambda_.4} parent=0 // pred_fallthru
    _
  // Predicated region
  $region6: #{_lambda_.4} parent=0 // pred_check
    _
  $region7: #{_lambda_.4} parent=0 // pred_check_branch
    %14 = sbr.rel (0) target = $region9
  $region8: #{_lambda_.4} parent=0 // pred_region
    _
  $region9: #{_lambda_.4} parent=0 // pred_fallthru
    _
  // Predicated region
  $region10: #{_lambda_.4} parent=0 // pred_check
    _
  $region11: #{_lambda_.4} parent=0 // pred_check_branch
    %16 = sbr.rel (0) target = $region13
  $region12: #{_lambda_.4} parent=0 // pred_region
    _
  $region13: #{_lambda_.4} parent=0 // pred_fallthru
    _
  // Predicated region
  $region14: #{_lambda_.4} parent=0 // pred_check
    _
  $region15: #{_lambda_.4} parent=0 // pred_check_branch
    %18 = sbr.rel (0) target = $region17
  $region16: #{_lambda_.4} parent=0 // pred_region
    _
  $region17: #{_lambda_.4} parent=0 // pred_fallthru
    _
  %v19 = vld [vmem:[%s0] sm:$0xff]
  %v20 = vld [vmem:[%s0 + $0x8] sm:$0xff]
  %vm21 = vcmask 261120
  %v22 = vsel %vm21, %v19, 0.0
  %23 = vadd.xlane.f32.xlu0 %v22
  %v24 = vpop.xlane.xlu0 %23
  %v25 = vsel %vm21, %v20, 0.0
  %26 = vadd.xlane.f32.xlu0 %v25
  %v27 = vpop.xlane.xlu0 %26
  %v28 = vrcp.pop 32.0
  %v29 = vmul.f32 32.0, %v28
  %v30 = vsub.f32 1.0, %v29
  %v31 = vmul.f32 %v28, %v30
  %v32 = vadd.f32 %v28, %v31
  %vm33 = vweird.f32 %v28
  %v34 = vsel %vm33, %v28, %v32
  %v35 = vmul.f32 %v24, %v34
  %v36 = vmul.f32 %v27, %v34
  %v37 = vsub.f32 %v19, %v35
  %v38 = vsub.f32 %v20, %v36
  %v39 = vmul.f32 %v37, %v37
  %v40 = vmul.f32 %v38, %v38
  %v41 = vsel %vm21, %v39, 0.0
  %42 = vadd.xlane.f32.xlu0 %v41
  %v43 = vpop.xlane.xlu0 %42
  %v44 = vsel %vm21, %v40, 0.0
  %45 = vadd.xlane.f32.xlu0 %v44
  %v46 = vpop.xlane.xlu0 %45
  %v47 = vmul.f32 %v43, %v34
  %v48 = vmul.f32 %v46, %v34
  %v49 = vadd.f32 %v47, 1e-05
  %v50 = vadd.f32 %v48, 1e-05
  %v51 = vrsqrt.pop %v49
  %v52 = vmul.f32 %v51, %v49
  %v53 = vmul.f32 %v52, %v51
  %v54 = vmul.f32 0.5, %v53
  %v55 = vsub.f32 1.5, %v54
  %v56 = vmul.f32 %v51, %v55
  %vm57 = vweird.f32 %v49
  %vm58 = vweird.f32 %v51
  %vm59 = vmor %vm57, %vm58
  %v60 = vsel %vm59, %v51, %v56
  %v61 = vrsqrt.pop %v50
  %v62 = vmul.f32 %v61, %v50
  %v63 = vmul.f32 %v62, %v61
  %v64 = vmul.f32 0.5, %v63
  %v65 = vsub.f32 1.5, %v64
  %v66 = vmul.f32 %v61, %v65
  %vm67 = vweird.f32 %v50
  %vm68 = vweird.f32 %v61
  %vm69 = vmor %vm67, %vm68
  %v70 = vsel %vm69, %v61, %v66
  %v71 = vmul.f32 %v37, %v60
  %v72 = vmul.f32 %v38, %v70
  %v73 = vld [vmem:[%s2] sm:$0x1]
  %v75 = vperm.slane %v73, 0
  %v77 = vmul.f32 %v71, %v75
  %v78 = vmul.f32 %v72, %v75
  %v79 = vld [vmem:[%s3] sm:$0x1]
  %v81 = vperm.slane %v79, 0
  %v83 = vadd.f32 %v77, %v81
  %v84 = vadd.f32 %v78, %v81
  %85 = vst.msk [vmem:[%s4] sm:$0xff] %vm21, %v83
  %86 = vst.msk [vmem:[%s4 + $0x8] sm:$0xff] %vm21, %v84
  %v87 = vld [vmem:[%s1] sm:$0xff]
  %v88 = vld [vmem:[%s1 + $0x8] sm:$0xff]
  %v89 = vmul.f32 %v87, %v87
  %v90 = vmul.f32 %v88, %v88
  %vm91 = vcmask 97280
  %v92 = vsel %vm91, %v89, 0.0
  %93 = vadd.xlane.f32.xlu0 %v92
  %v94 = vpop.xlane.xlu0 %93
  %v95 = vsel %vm91, %v90, 0.0
  %96 = vadd.xlane.f32.xlu0 %v95
  %v97 = vpop.xlane.xlu0 %96
  %v98 = vrcp.pop 4.0
  %v99 = vmul.f32 4.0, %v98
  %v100 = vsub.f32 1.0, %v99
  %v101 = vmul.f32 %v98, %v100
  %v102 = vadd.f32 %v98, %v101
  %vm103 = vweird.f32 %v98
  %v104 = vsel %vm103, %v98, %v102
  %v105 = vmul.f32 %v94, %v104
  %v106 = vmul.f32 %v97, %v104
  %v107 = vadd.f32 %v105, 1e-08
  %v108 = vadd.f32 %v106, 1e-08
  %v109 = vrsqrt.pop %v107
  %v110 = vmul.f32 %v109, %v107
  %v111 = vmul.f32 %v110, %v109
  %v112 = vmul.f32 0.5, %v111
  %v113 = vsub.f32 1.5, %v112
  %v114 = vmul.f32 %v109, %v113
  %vm115 = vweird.f32 %v107
  %vm116 = vweird.f32 %v109
  %vm117 = vmor %vm115, %vm116
  %v118 = vsel %vm117, %v109, %v114
  %v119 = vrsqrt.pop %v108
  %v120 = vmul.f32 %v119, %v108
  %v121 = vmul.f32 %v120, %v119
  %v122 = vmul.f32 0.5, %v121
  %v123 = vsub.f32 1.5, %v122
  %v124 = vmul.f32 %v119, %v123
  %vm125 = vweird.f32 %v108
  %vm126 = vweird.f32 %v119
  %vm127 = vmor %vm125, %vm126
  %v128 = vsel %vm127, %v119, %v124
  %v129 = vmul.f32 %v87, %v118
  %v130 = vmul.f32 %v88, %v128
  %131 = vst.msk [vmem:[%s5] sm:$0xff] %vm91, %v129
  %132 = vst.msk [vmem:[%s5 + $0x8] sm:$0xff] %vm91, %v130
  // Predicated region
  $region18: #{_lambda_.4} parent=0 // pred_check
    _
  $region19: #{_lambda_.4} parent=0 // pred_check_branch
    %134 = sbr.rel (0) target = $region21
  $region20: #{_lambda_.4} parent=0 // pred_region
    _
  $region21: #{_lambda_.4} parent=0 // pred_fallthru
    _
  // Predicated region
  $region22: #{_lambda_.4} parent=0 // pred_check
    _
  $region23: #{_lambda_.4} parent=0 // pred_check_branch
    %136 = sbr.rel (0) target = $region25
  $region24: #{_lambda_.4} parent=0 // pred_region
    _
  $region25: #{_lambda_.4} parent=0 // pred_fallthru
    _
  // Predicated region
  $region26: #{_lambda_.4} parent=0 // pred_check
    _
  $region27: #{_lambda_.4} parent=0 // pred_check_branch
    %138 = sbr.rel (0) target = $region29
  $region28: #{_lambda_.4} parent=0 // pred_region
    _
  $region29: #{_lambda_.4} parent=0 // pred_fallthru
    _
  // Predicated region
  $region30: #{_lambda_.4} parent=0 // pred_check
    _
  $region31: #{_lambda_.4} parent=0 // pred_check_branch
    %140 = sbr.rel (0) target = $region33
  $region32: #{_lambda_.4} parent=0 // pred_region
    _
  $region33: #{_lambda_.4} parent=0 // pred_fallthru
    _

// kernel: _lambda_.6
$region0: #{_lambda_.6}
  #allocation0 [shape = 'u32[]', space=smem, size = 0x4, offset = 0x4, fixed_abs, tag = 'smem constant byte address 0x4 - core index']
  #allocation1 [shape = 'u32[72,128]{1,0:T(1,128)}', space=vmem, size = 0x9000, scoped, tag = 'internal scratch']
  %s0 = inlined_call_operand.vmem [shape: s32[1,32], index: 0, kind: input, shape index: {}]
  %s1 = inlined_call_operand.vmem [shape: f32[32,44], index: 1, kind: input, shape index: {}]
  %s2 = inlined_call_operand.vmem [shape: f32[16,44], index: 2, kind: output, shape index: {}]
  %s3 = sld [smem:[#allocation0]]
  $region22: #{_lambda_.6} parent=0
    _
  %s5 = ssub.s32 1, %s3
  %s6 = scalar_select 0, %s5, %s3
  // Predicated region
  $region2: #{_lambda_.6} parent=0 // pred_check
    _
  $region3: #{_lambda_.6} parent=0 // pred_check_branch
    %8 = sbr.rel (0) target = $region5
  $region4: #{_lambda_.6} parent=0 // pred_region
    _
  $region5: #{_lambda_.6} parent=0 // pred_fallthru
    _
  // Predicated region
  $region6: #{_lambda_.6} parent=0 // pred_check
    _
  $region7: #{_lambda_.6} parent=0 // pred_check_branch
    %10 = sbr.rel (0) target = $region9
  $region8: #{_lambda_.6} parent=0 // pred_region
    _
  $region9: #{_lambda_.6} parent=0 // pred_fallthru
    _
  %p11 = scmp.eq.s32.totalorder 0, 0
  // Predicated region
  $region10: #{_lambda_.6} parent=0 // pred_check
    %p12 = pneg %p11
  $region11: #{_lambda_.6} parent=0 // pred_check_branch
    %14 = sbr.rel (%p12) target = $region13
  $region12: #{_lambda_.6} parent=0 // pred_region
    %vm15 = vcmask 359424
    %16 = vst.msk [vmem:[%s2] sm:$0xff] %vm15, 0.0
    %17 = vst.msk [vmem:[%s2 + $0x8] sm:$0xff] %vm15, 0.0
  $region13: #{_lambda_.6} parent=0 // pred_fallthru
    _
  %v18 = vlaneseq
  %v19 = vshrl.u32 %v18, 7
  %v20 = vadd.s32 %v19, 8
  %v21 = vld [vmem:[%s0] sm:$0x1]
  %v22 = vperm.slane %v21, 0
  %vm23 = vcmp.eq.s32.totalorder %v19, %v22
  %vm24 = vcmp.eq.s32.totalorder %v20, %v22
  %v25 = vsel %vm23, 1, 0
  %v26 = vsel %vm24, 1, 0
  %v27 = vcvt.s32.f32 %v25
  %v28 = vcvt.s32.f32 %v26
  %v29 = vld [vmem:[%s2] sm:$0xff]
  %v30 = vld [vmem:[%s2 + $0x8] sm:$0xff]
  %v31 = vld [vmem:[%s1] sm:$0xff]
  %v32 = vld [vmem:[%s1 + $0x8] sm:$0xff]
  %v33 = vld [vmem:[%s1 + $0x10] sm:$0xff]
  %v34 = vld [vmem:[%s1 + $0x18] sm:$0xff]
  %vm35 = vcmask 261120
  %v37 = vsel %vm35, %v27, 0
  %v40 = vsel %vm35, %v28, 0
  %42 = vmatpush.msra.mxu0 0.0
  %43 = vmatpush.msra.mxu0 0.0
  %44 = vmatpush.msra.mxu0 0.0
  %45 = vmatpush.msra.mxu0 0.0
  %46 = vmatpush.msra.mxu0 0.0
  %47 = vmatpush.msra.mxu0 0.0
  %48 = vmatpush.msra.mxu0 0.0
  %49 = vmatpush.msra.mxu0 0.0
  %50 = vmatpush.msra.mxu0 0.0
  %51 = vmatpush.msra.mxu0 0.0
  %52 = vmatpush.msra.mxu0 0.0
  %53 = vmatpush.msra.mxu0 0.0
  %54 = vmatpush.msra.mxu0 %v34
  %55 = vmatpush.msra.mxu0 %v33
  %56 = vmatpush.msra.mxu0 %v32
  %57 = vmatpush.msra.mxu0 %v31
  %58 = vmatmul.f32.gmra.mxu0 %v37
  %v59 = vpop.f32.mrf.mxu0
  %v60 = vadd.f32 0.0, %v59
  %61 = vmatmul.f32.gmra.mxu0 %v40
  %v62 = vpop.f32.mrf.mxu0
  %v63 = vadd.f32 0.0, %v62
  %64 = vdwg.mxu0
  %v65 = vadd.f32 %v29, %v60
  %v66 = vadd.f32 %v30, %v63
  %vm67 = vcmask 359424
  %68 = vst.msk [vmem:[%s2] sm:$0xff] %vm67, %v65
  %69 = vst.msk [vmem:[%s2 + $0x8] sm:$0xff] %vm67, %v66
  // Predicated region
  $region14: #{_lambda_.6} parent=0 // pred_check
    _
  $region15: #{_lambda_.6} parent=0 // pred_check_branch
    %71 = sbr.rel (0) target = $region17
  $region16: #{_lambda_.6} parent=0 // pred_region
    _
  $region17: #{_lambda_.6} parent=0 // pred_fallthru
    _
  // Predicated region
  $region18: #{_lambda_.6} parent=0 // pred_check
    _
  $region19: #{_lambda_.6} parent=0 // pred_check_branch
    %73 = sbr.rel (0) target = $region21
  $region20: #{_lambda_.6} parent=0 // pred_region
    _
  $region21: #{_lambda_.6} parent=0 // pred_fallthru
    _

// kernel: _lambda_.7
$region0: #{_lambda_.7}
  #allocation0 [shape = 'u32[]', space=smem, size = 0x4, offset = 0x4, fixed_abs, tag = 'smem constant byte address 0x4 - core index']
  #allocation1 [shape = 'u32[72,128]{1,0:T(1,128)}', space=vmem, size = 0x9000, scoped, tag = 'internal scratch']
  %s0 = inlined_call_operand.vmem [shape: f32[16,44], index: 0, kind: input, shape index: {}]
  %s1 = inlined_call_operand.vmem [shape: f32[16,32], index: 1, kind: input, shape index: {}]
  %s2 = inlined_call_operand.vmem [shape: f32[16,12], index: 2, kind: input, shape index: {}]
  %s3 = inlined_call_operand.vmem [shape: f32[8,8], index: 3, kind: input, shape index: {}]
  %s4 = inlined_call_operand.vmem [shape: f32[64,32], index: 4, kind: input, shape index: {}]
  %s5 = inlined_call_operand.vmem [shape: f32[8,32], index: 5, kind: input, shape index: {}]
  %s6 = inlined_call_operand.vmem [shape: f32[1,32], index: 6, kind: input, shape index: {}, may-alias: {6,11}]
  %s7 = inlined_call_operand.vmem [shape: f32[8,4], index: 7, kind: input, shape index: {}]
  %s8 = inlined_call_operand.vmem [shape: f32[32,4], index: 8, kind: input, shape index: {}]
  %s9 = inlined_call_operand.vmem [shape: f32[1,4], index: 9, kind: input, shape index: {}]
  %s10 = inlined_call_operand.vmem [shape: f32[64,32], index: 10, kind: input, shape index: {}]
  %s11 = inlined_call_operand.vmem [shape: f32[1,32], index: 11, kind: input, shape index: {}, may-alias: {6,11}]
  %s12 = inlined_call_operand.hbm [shape: f32[16,32], index: 12, kind: output, shape index: {0}]
  %s13 = inlined_call_operand.vmem [shape: f32[16,12], index: 13, kind: output, shape index: {1}]
  %14 = xla_tuple %s12, %s13
  %s15 = sld [smem:[#allocation0]]
  $region66: #{_lambda_.7} parent=0
    _
  %s17 = ssub.s32 1, %s15
  %s18 = scalar_select 0, %s17, %s15
  $region1: #{_lambda_.7} parent=0
    #allocation2 [shape = 'u8[8192]{0}', space=vmem, size = 0x2000, scoped, tag = 'output window, operand 0, single buffered']
    #allocation3 [shape = 's32[1]{0}', space=sflag, size = 0x4, scoped, tag = 'scoped memory for _lambda_.7']
    %19 = vsyncpa [#allocation3], 0
    // Predicated region
    $region2: #{_lambda_.7} parent=1 // pred_check
      _
    $region3: #{_lambda_.7} parent=1 // pred_check_branch
      %21 = sbr.rel (0) target = $region5
    $region4: #{_lambda_.7} parent=1 // pred_region
      _
    $region5: #{_lambda_.7} parent=1 // pred_fallthru
      _
    // Predicated region
    $region6: #{_lambda_.7} parent=1 // pred_check
      _
    $region7: #{_lambda_.7} parent=1 // pred_check_branch
      %23 = sbr.rel (0) target = $region9
    $region8: #{_lambda_.7} parent=1 // pred_region
      _
    $region9: #{_lambda_.7} parent=1 // pred_fallthru
      _
    // Predicated region
    $region10: #{_lambda_.7} parent=1 // pred_check
      _
    $region11: #{_lambda_.7} parent=1 // pred_check_branch
      %25 = sbr.rel (0) target = $region13
    $region12: #{_lambda_.7} parent=1 // pred_region
      _
    $region13: #{_lambda_.7} parent=1 // pred_fallthru
      _
    // Predicated region
    $region14: #{_lambda_.7} parent=1 // pred_check
      _
    $region15: #{_lambda_.7} parent=1 // pred_check_branch
      %27 = sbr.rel (0) target = $region17
    $region16: #{_lambda_.7} parent=1 // pred_region
      _
    $region17: #{_lambda_.7} parent=1 // pred_fallthru
      _
    // Predicated region
    $region18: #{_lambda_.7} parent=1 // pred_check
      _
    $region19: #{_lambda_.7} parent=1 // pred_check_branch
      %29 = sbr.rel (0) target = $region21
    $region20: #{_lambda_.7} parent=1 // pred_region
      _
    $region21: #{_lambda_.7} parent=1 // pred_fallthru
      _
    // Predicated region
    $region22: #{_lambda_.7} parent=1 // pred_check
      _
    $region23: #{_lambda_.7} parent=1 // pred_check_branch
      %31 = sbr.rel (0) target = $region25
    $region24: #{_lambda_.7} parent=1 // pred_region
      _
    $region25: #{_lambda_.7} parent=1 // pred_fallthru
      _
    // Predicated region
    $region26: #{_lambda_.7} parent=1 // pred_check
      _
    $region27: #{_lambda_.7} parent=1 // pred_check_branch
      %33 = sbr.rel (0) target = $region29
    $region28: #{_lambda_.7} parent=1 // pred_region
      _
    $region29: #{_lambda_.7} parent=1 // pred_fallthru
      _
    // Predicated region
    $region30: #{_lambda_.7} parent=1 // pred_check
      _
    $region31: #{_lambda_.7} parent=1 // pred_check_branch
      %35 = sbr.rel (0) target = $region33
    $region32: #{_lambda_.7} parent=1 // pred_region
      _
    $region33: #{_lambda_.7} parent=1 // pred_fallthru
      _
    // Predicated region
    $region34: #{_lambda_.7} parent=1 // pred_check
      _
    $region35: #{_lambda_.7} parent=1 // pred_check_branch
      %37 = sbr.rel (0) target = $region37
    $region36: #{_lambda_.7} parent=1 // pred_region
      _
    $region37: #{_lambda_.7} parent=1 // pred_fallthru
      _
    // Predicated region
    $region38: #{_lambda_.7} parent=1 // pred_check
      _
    $region39: #{_lambda_.7} parent=1 // pred_check_branch
      %39 = sbr.rel (0) target = $region41
    $region40: #{_lambda_.7} parent=1 // pred_region
      _
    $region41: #{_lambda_.7} parent=1 // pred_fallthru
      _
    // Predicated region
    $region42: #{_lambda_.7} parent=1 // pred_check
      _
    $region43: #{_lambda_.7} parent=1 // pred_check_branch
      %41 = sbr.rel (0) target = $region45
    $region44: #{_lambda_.7} parent=1 // pred_region
      _
    $region45: #{_lambda_.7} parent=1 // pred_fallthru
      _
    // Predicated region
    $region46: #{_lambda_.7} parent=1 // pred_check
      _
    $region47: #{_lambda_.7} parent=1 // pred_check_branch
      %43 = sbr.rel (0) target = $region49
    $region48: #{_lambda_.7} parent=1 // pred_region
      _
    $region49: #{_lambda_.7} parent=1 // pred_fallthru
      _
    %v44 = vld [vmem:[%s0] sm:$0xff]
    %v45 = vld [vmem:[%s0 + $0x8] sm:$0xff]
    %v46 = vld [vmem:[%s1] sm:$0xff]
    %v47 = vld [vmem:[%s1 + $0x8] sm:$0xff]
    %v48 = vld [vmem:[%s2] sm:$0xff]
    %v49 = vld [vmem:[%s2 + $0x8] sm:$0xff]
    %52 = vrot.lane.b32.xlu0 %v46, 32
    %v53 = vpop.permute.xlu0 %52
    %54 = vrot.lane.b32.xlu0 %v47, 32
    %v55 = vpop.permute.xlu0 %54
    %vm58 = vcmask 261120
    %v59 = vsel %vm58, %v44, %v53
    %v60 = vsel %vm58, %v45, %v55
    %63 = vrot.lane.b32.xlu0 %v44, 96
    %v64 = vpop.permute.xlu0 %63
    %65 = vrot.lane.b32.xlu0 %v45, 96
    %v66 = vpop.permute.xlu0 %65
    %71 = vrot.lane.b32.xlu0 %v48, 4
    %v72 = vpop.permute.xlu0 %71
    %73 = vrot.lane.b32.xlu0 %v49, 4
    %v74 = vpop.permute.xlu0 %73
    %vm77 = vcmask 31744
    %v78 = vsel %vm77, %v64, %v72
    %v79 = vsel %vm77, %v66, %v74
    %80 = vrot.lane.b32.xlu0 %v44, 92
    %v81 = vpop.permute.xlu0 %80
    %82 = vrot.lane.b32.xlu0 %v45, 92
    %v83 = vpop.permute.xlu0 %82
    %v86 = vsel %vm77, %v81, %v48
    %v87 = vsel %vm77, %v83, %v49
    %88 = vrot.lane.b32.xlu0 %v44, 88
    %v89 = vpop.permute.xlu0 %88
    %90 = vrot.lane.b32.xlu0 %v45, 88
    %v91 = vpop.permute.xlu0 %90
    %94 = vrot.lane.b32.xlu0 %v48, 124
    %v95 = vpop.permute.xlu0 %94
    %96 = vrot.lane.b32.xlu0 %v49, 124
    %v97 = vpop.permute.xlu0 %96
    %v100 = vsel %vm77, %v89, %v95
    %v101 = vsel %vm77, %v91, %v97
    %v102 = vld [vmem:[%s3] sm:$0xff]
    %v103 = vld [vmem:[%s4] sm:$0xff]
    %v104 = vld [vmem:[%s4 + $0x8] sm:$0xff]
    %v105 = vld [vmem:[%s4 + $0x10] sm:$0xff]
    %v106 = vld [vmem:[%s4 + $0x18] sm:$0xff]
    %v107 = vld [vmem:[%s4 + $0x20] sm:$0xff]
    %v108 = vld [vmem:[%s4 + $0x28] sm:$0xff]
    %v109 = vld [vmem:[%s4 + $0x30] sm:$0xff]
    %v110 = vld [vmem:[%s4 + $0x38] sm:$0xff]
    %v111 = vld [vmem:[%s5] sm:$0xff]
    %v112 = vld [vmem:[%s6] sm:$0x1]
    %v113 = vld [vmem:[%s7] sm:$0xff]
    %v114 = vld [vmem:[%s8] sm:$0xff]
    %v115 = vld [vmem:[%s8 + $0x8] sm:$0xff]
    %v116 = vld [vmem:[%s8 + $0x10] sm:$0xff]
    %v117 = vld [vmem:[%s8 + $0x18] sm:$0xff]
    %v118 = vld [vmem:[%s9] sm:$0x1]
    %vm119 = vcmask 64512
    %v121 = vsel %vm119, %v78, 0
    %v124 = vsel %vm119, %v79, 0
    %v127 = vsel %vm119, %v86, 0
    %v130 = vsel %vm119, %v87, 0
    %v133 = vsel %vm119, %v100, 0
    %v136 = vsel %vm119, %v101, 0
    %138 = vmatpush.msra.mxu0 0.0
    %139 = vmatpush.msra.mxu0 0.0
    %140 = vmatpush.msra.mxu0 0.0
    %141 = vmatpush.msra.mxu0 0.0
    %142 = vmatpush.msra.mxu0 0.0
    %143 = vmatpush.msra.mxu0 0.0
    %144 = vmatpush.msra.mxu0 0.0
    %145 = vmatpush.msra.mxu0 0.0
    %146 = vmatpush.msra.mxu0 0.0
    %147 = vmatpush.msra.mxu0 0.0
    %148 = vmatpush.msra.mxu0 0.0
    %149 = vmatpush.msra.mxu0 0.0
    %150 = vmatpush.msra.mxu0 0.0
    %151 = vmatpush.msra.mxu0 0.0
    %152 = vmatpush.msra.mxu0 0.0
    %153 = vmatpush.msra.mxu0 %v102
    %154 = vmatmul.f32.gmra.mxu0 %v121
    %v155 = vpop.f32.mrf.mxu0
    %v156 = vadd.f32 0.0, %v155
    %157 = vmatmul.f32.gmra.mxu0 %v124
    %v158 = vpop.f32.mrf.mxu0
    %v159 = vadd.f32 0.0, %v158
    %160 = vmatmul.f32.gmra.mxu0 %v127
    %v161 = vpop.f32.mrf.mxu0
    %v162 = vadd.f32 0.0, %v161
    %163 = vmatmul.f32.gmra.mxu0 %v130
    %v164 = vpop.f32.mrf.mxu0
    %v165 = vadd.f32 0.0, %v164
    %166 = vmatmul.f32.gmra.mxu0 %v133
    %v167 = vpop.f32.mrf.mxu0
    %v168 = vadd.f32 0.0, %v167
    %169 = vmatmul.f32.gmra.mxu0 %v136
    %v170 = vpop.f32.mrf.mxu0
    %v171 = vadd.f32 0.0, %v170
    %172 = vdwg.mxu0
    %v173 = vmul.f32 %v156, %v156
    %v174 = vmul.f32 %v159, %v159
    %v175 = vmul.f32 %v162, %v162
    %v176 = vmul.f32 %v165, %v165
    %v177 = vadd.f32 %v173, %v175
    %v178 = vadd.f32 %v174, %v176
    %v179 = vmul.f32 %v168, %v168
    %v180 = vmul.f32 %v171, %v171
    %v181 = vadd.f32 %v177, %v179
    %v182 = vadd.f32 %v178, %v180
    %v183 = vadd.f32 %v181, 1e-08
    %v184 = vadd.f32 %v182, 1e-08
    %v185 = vrsqrt.pop %v183
    %v186 = vmul.f32 %v185, %v183
    %v187 = vmul.f32 %v186, %v185
    %v188 = vmul.f32 0.5, %v187
    %v189 = vsub.f32 1.5, %v188
    %v190 = vmul.f32 %v185, %v189
    %v191 = vmul.f32 %v183, %v190
    %vm192 = vcmp.eq.f32.partialorder %v183, inf
    %v193 = vsel %vm192, %v183, %v191
    %vm194 = vcmp.eq.f32.partialorder %v183, 0.0
    %v195 = vand.u32 %v183, 2147483648
    %v196 = vsel %vm194, %v195, %v193
    %v197 = vrsqrt.pop %v184
    %v198 = vmul.f32 %v197, %v184
    %v199 = vmul.f32 %v198, %v197
    %v200 = vmul.f32 0.5, %v199
    %v201 = vsub.f32 1.5, %v200
    %v202 = vmul.f32 %v197, %v201
    %v203 = vmul.f32 %v184, %v202
    %vm204 = vcmp.eq.f32.partialorder %v184, inf
    %v205 = vsel %vm204, %v184, %v203
    %vm206 = vcmp.eq.f32.partialorder %v184, 0.0
    %v207 = vand.u32 %v184, 2147483648
    %v208 = vsel %vm206, %v207, %v205
    %v210 = vsel %vm119, %v196, 0
    %v213 = vsel %vm119, %v208, 0
    %215 = vmatpush.msra.mxu0 0.0
    %216 = vmatpush.msra.mxu0 0.0
    %217 = vmatpush.msra.mxu0 0.0
    %218 = vmatpush.msra.mxu0 0.0
    %219 = vmatpush.msra.mxu0 0.0
    %220 = vmatpush.msra.mxu0 0.0
    %221 = vmatpush.msra.mxu0 0.0
    %222 = vmatpush.msra.mxu0 0.0
    %223 = vmatpush.msra.mxu0 0.0
    %224 = vmatpush.msra.mxu0 0.0
    %225 = vmatpush.msra.mxu0 0.0
    %226 = vmatpush.msra.mxu0 0.0
    %227 = vmatpush.msra.mxu0 0.0
    %228 = vmatpush.msra.mxu0 0.0
    %229 = vmatpush.msra.mxu0 0.0
    %230 = vmatpush.msra.mxu0 %v111
    %231 = vmatmul.f32.gmra.mxu0 %v210
    %v232 = vpop.f32.mrf.mxu0
    %v233 = vadd.f32 0.0, %v232
    %234 = vmatmul.f32.gmra.mxu0 %v213
    %v235 = vpop.f32.mrf.mxu0
    %v236 = vadd.f32 0.0, %v235
    %237 = vdwg.mxu0
    %vm238 = vcmask 523264
    %v240 = vsel %vm238, %v59, 0
    %v243 = vsel %vm238, %v60, 0
    %245 = vmatpush.msra.mxu0 0.0
    %246 = vmatpush.msra.mxu0 0.0
    %247 = vmatpush.msra.mxu0 0.0
    %248 = vmatpush.msra.mxu0 0.0
    %249 = vmatpush.msra.mxu0 0.0
    %250 = vmatpush.msra.mxu0 0.0
    %251 = vmatpush.msra.mxu0 0.0
    %252 = vmatpush.msra.mxu0 0.0
    %253 = vmatpush.msra.mxu0 %v110
    %254 = vmatpush.msra.mxu0 %v109
    %255 = vmatpush.msra.mxu0 %v108
    %256 = vmatpush.msra.mxu0 %v107
    %257 = vmatpush.msra.mxu0 %v106
    %258 = vmatpush.msra.mxu0 %v105
    %259 = vmatpush.msra.mxu0 %v104
    %260 = vmatpush.msra.mxu0 %v103
    %261 = vmatmul.f32.gmra.mxu0 %v240
    %v262 = vpop.f32.mrf.mxu0
    %v263 = vadd.f32 %v233, %v262
    %264 = vmatmul.f32.gmra.mxu0 %v243
    %v265 = vpop.f32.mrf.mxu0
    %v266 = vadd.f32 %v236, %v265
    %267 = vdwg.mxu0
    %v269 = vperm.slane %v112, 0
    %v271 = vadd.f32 %v263, %v269
    %v272 = vadd.f32 %v266, %v269
    %v274 = vsel %vm119, %v156, 0
    %v277 = vsel %vm119, %v159, 0
    %v280 = vsel %vm119, %v162, 0
    %v283 = vsel %vm119, %v165, 0
    %v286 = vsel %vm119, %v168, 0
    %v289 = vsel %vm119, %v171, 0
    %291 = vmatpush.msra.mxu0 0.0
    %292 = vmatpush.msra.mxu0 0.0
    %293 = vmatpush.msra.mxu0 0.0
    %294 = vmatpush.msra.mxu0 0.0
    %295 = vmatpush.msra.mxu0 0.0
    %296 = vmatpush.msra.mxu0 0.0
    %297 = vmatpush.msra.mxu0 0.0
    %298 = vmatpush.msra.mxu0 0.0
    %299 = vmatpush.msra.mxu0 0.0
    %300 = vmatpush.msra.mxu0 0.0
    %301 = vmatpush.msra.mxu0 0.0
    %302 = vmatpush.msra.mxu0 0.0
    %303 = vmatpush.msra.mxu0 0.0
    %304 = vmatpush.msra.mxu0 0.0
    %305 = vmatpush.msra.mxu0 0.0
    %306 = vmatpush.msra.mxu0 %v113
    %307 = vmatmul.f32.gmra.mxu0 %v274
    %v308 = vpop.f32.mrf.mxu0
    %v309 = vadd.f32 0.0, %v308
    %310 = vmatmul.f32.gmra.mxu0 %v277
    %v311 = vpop.f32.mrf.mxu0
    %v312 = vadd.f32 0.0, %v311
    %313 = vmatmul.f32.gmra.mxu0 %v280
    %v314 = vpop.f32.mrf.mxu0
    %v315 = vadd.f32 0.0, %v314
    %316 = vmatmul.f32.gmra.mxu0 %v283
    %v317 = vpop.f32.mrf.mxu0
    %v318 = vadd.f32 0.0, %v317
    %319 = vmatmul.f32.gmra.mxu0 %v286
    %v320 = vpop.f32.mrf.mxu0
    %v321 = vadd.f32 0.0, %v320
    %322 = vmatmul.f32.gmra.mxu0 %v289
    %v323 = vpop.f32.mrf.mxu0
    %v324 = vadd.f32 0.0, %v323
    %325 = vdwg.mxu0
    %v327 = vperm.slane %v118, 0
    %v330 = vsel %vm58, %v271, 0
    %v333 = vsel %vm58, %v272, 0
    %335 = vmatpush.msra.mxu0 0.0
    %336 = vmatpush.msra.mxu0 0.0
    %337 = vmatpush.msra.mxu0 0.0
    %338 = vmatpush.msra.mxu0 0.0
    %339 = vmatpush.msra.mxu0 0.0
    %340 = vmatpush.msra.mxu0 0.0
    %341 = vmatpush.msra.mxu0 0.0
    %342 = vmatpush.msra.mxu0 0.0
    %343 = vmatpush.msra.mxu0 0.0
    %344 = vmatpush.msra.mxu0 0.0
    %345 = vmatpush.msra.mxu0 0.0
    %346 = vmatpush.msra.mxu0 0.0
    %347 = vmatpush.msra.mxu0 %v117
    %348 = vmatpush.msra.mxu0 %v116
    %349 = vmatpush.msra.mxu0 %v115
    %350 = vmatpush.msra.mxu0 %v114
    %351 = vmatmul.f32.gmra.mxu0 %v330
    %v352 = vpop.f32.mrf.mxu0
    %v353 = vadd.f32 %v327, %v352
    %354 = vmatmul.f32.gmra.mxu0 %v333
    %v355 = vpop.f32.mrf.mxu0
    %v356 = vadd.f32 %v327, %v355
    %357 = vdwg.mxu0
    %v358 = vxor.u32 %v353, 2147483648
    %v359 = vxor.u32 %v356, 2147483648
    %v360 = vmul.f32 %v358, 1.442695
    %v361 = vpow.pop %v360
    %v362 = vmul.f32 %v359, 1.442695
    %v363 = vpow.pop %v362
    %v364 = vadd.f32 %v361, 1.0
    %v365 = vadd.f32 %v363, 1.0
    %v366 = vrcp.pop %v364
    %v367 = vmul.f32 %v364, %v366
    %v368 = vsub.f32 1.0, %v367
    %v369 = vmul.f32 %v366, %v368
    %v370 = vadd.f32 %v366, %v369
    %vm371 = vweird.f32 %v364
    %vm372 = vweird.f32 %v366
    %vm373 = vmor %vm371, %vm372
    %v374 = vsel %vm373, %v366, %v370
    %v375 = vand.u32 2147483647, %v364
    %vm376 = vcmp.eq.f32.partialorder %v375, 8.507059e+37
    %v377 = vand.u32 %v364, 2147483648
    %v378 = vor.u32 1.1754944e-38, %v377
    %v379 = vsel %vm376, %v378, %v374
    %v380 = vmul.f32 1.0, %v379
    %v381 = vrcp.pop %v365
    %v382 = vmul.f32 %v365, %v381
    %v383 = vsub.f32 1.0, %v382
    %v384 = vmul.f32 %v381, %v383
    %v385 = vadd.f32 %v381, %v384
    %vm386 = vweird.f32 %v365
    %vm387 = vweird.f32 %v381
    %vm388 = vmor %vm386, %vm387
    %v389 = vsel %vm388, %v381, %v385
    %v390 = vand.u32 2147483647, %v365
    %vm391 = vcmp.eq.f32.partialorder %v390, 8.507059e+37
    %v392 = vand.u32 %v365, 2147483648
    %v393 = vor.u32 1.1754944e-38, %v392
    %v394 = vsel %vm391, %v393, %v389
    %v395 = vmul.f32 1.0, %v394
    %v396 = vmul.f32 %v309, %v380
    %v397 = vmul.f32 %v312, %v395
    %v398 = vmul.f32 %v315, %v380
    %v399 = vmul.f32 %v318, %v395
    %v400 = vmul.f32 %v321, %v380
    %v401 = vmul.f32 %v324, %v395
    %402 = vrot.lane.b32.xlu0 %v271, 32
    %v403 = vpop.permute.xlu0 %402
    %404 = vrot.lane.b32.xlu0 %v272, 32
    %v405 = vpop.permute.xlu0 %404
    %v408 = vsel %vm58, %v46, %v403
    %v409 = vsel %vm58, %v47, %v405
    %v410 = vld [vmem:[%s10] sm:$0xff]
    %v411 = vld [vmem:[%s10 + $0x8] sm:$0xff]
    %v412 = vld [vmem:[%s10 + $0x10] sm:$0xff]
    %v413 = vld [vmem:[%s10 + $0x18] sm:$0xff]
    %v414 = vld [vmem:[%s10 + $0x20] sm:$0xff]
    %v415 = vld [vmem:[%s10 + $0x28] sm:$0xff]
    %v416 = vld [vmem:[%s10 + $0x30] sm:$0xff]
    %v417 = vld [vmem:[%s10 + $0x38] sm:$0xff]
    %v418 = vld [vmem:[%s11] sm:$0x1]
    %v420 = vperm.slane %v418, 0
    %v423 = vsel %vm238, %v408, 0
    %v426 = vsel %vm238, %v409, 0
    %428 = vmatpush.msra.mxu0 0.0
    %429 = vmatpush.msra.mxu0 0.0
    %430 = vmatpush.msra.mxu0 0.0
    %431 = vmatpush.msra.mxu0 0.0
    %432 = vmatpush.msra.mxu0 0.0
    %433 = vmatpush.msra.mxu0 0.0
    %434 = vmatpush.msra.mxu0 0.0
    %435 = vmatpush.msra.mxu0 0.0
    %436 = vmatpush.msra.mxu0 %v417
    %437 = vmatpush.msra.mxu0 %v416
    %438 = vmatpush.msra.mxu0 %v415
    %439 = vmatpush.msra.mxu0 %v414
    %440 = vmatpush.msra.mxu0 %v413
    %441 = vmatpush.msra.mxu0 %v412
    %442 = vmatpush.msra.mxu0 %v411
    %443 = vmatpush.msra.mxu0 %v410
    %444 = vmatmul.f32.gmra.mxu0 %v423
    %v445 = vpop.f32.mrf.mxu0
    %v446 = vadd.f32 %v420, %v445
    %447 = vmatmul.f32.gmra.mxu0 %v426
    %v448 = vpop.f32.mrf.mxu0
    %v449 = vadd.f32 %v420, %v448
    %450 = vdwg.mxu0
    %451 = vst.msk [vmem:[#allocation2] sm:$0xff] %vm58, %v446
    %452 = vst.msk [vmem:[#allocation2 + $0x8] sm:$0xff] %vm58, %v449
    %v453 = vadd.f32 %v48, %v396
    %v454 = vadd.f32 %v49, %v397
    %457 = vrot.lane.b32.xlu0 %v398, 4
    %v458 = vpop.permute.xlu0 %457
    %459 = vrot.lane.b32.xlu0 %v399, 4
    %v460 = vpop.permute.xlu0 %459
    %v463 = vadd.f32 %v48, %v458
    %v464 = vadd.f32 %v49, %v460
    %467 = vrot.lane.b32.xlu0 %v400, 8
    %v468 = vpop.permute.xlu0 %467
    %469 = vrot.lane.b32.xlu0 %v401, 8
    %v470 = vpop.permute.xlu0 %469
    %v473 = vadd.f32 %v48, %v468
    %v474 = vadd.f32 %v49, %v470
    %v475 = vsel %vm77, %v453, %v463
    %v476 = vsel %vm77, %v454, %v464
    %v477 = vsel %vm119, %v475, %v473
    %v478 = vsel %vm119, %v476, %v474
    %vm479 = vcmask 97280
    %480 = vst.msk [vmem:[%s13] sm:$0xff] %vm479, %v477
    %481 = vst.msk [vmem:[%s13 + $0x8] sm:$0xff] %vm479, %v478
    // Predicated region
    $region50: #{_lambda_.7} parent=1 // pred_check
      _
    $region51: #{_lambda_.7} parent=1 // pred_check_branch
      %483 = sbr.rel (0) target = $region53
    $region52: #{_lambda_.7} parent=1 // pred_region
      %485 = vsyncadd [#allocation3], 0
      %s486 = sshll.u32 [#allocation2], 4
      %s487 = int_to_ptr.vmem [resolvable:$true] %s486
      %s488 = sshll.u32 %s12, 4
      %s489 = int_to_ptr.hbm [resolvable:$true] %s488
      %494 = dma.vmem_to_hbm [thread:$0]  %s487, 256, %s489, [#allocation3], 128, 128, 8
    $region53: #{_lambda_.7} parent=1 // pred_fallthru
      _
    // Predicated region
    $region54: #{_lambda_.7} parent=1 // pred_check
      _
    $region55: #{_lambda_.7} parent=1 // pred_check_branch
      %496 = sbr.rel (0) target = $region57
    $region56: #{_lambda_.7} parent=1 // pred_region
      _
    $region57: #{_lambda_.7} parent=1 // pred_fallthru
      _
    // Predicated region
    $region58: #{_lambda_.7} parent=1 // pred_check
      _
    $region59: #{_lambda_.7} parent=1 // pred_check_branch
      %498 = sbr.rel (0) target = $region61
    $region60: #{_lambda_.7} parent=1 // pred_region
      %500 = dma.done [#allocation3], 256
    $region61: #{_lambda_.7} parent=1 // pred_fallthru
      _
    // Predicated region
    $region62: #{_lambda_.7} parent=1 // pred_check
      _
    $region63: #{_lambda_.7} parent=1 // pred_check_branch
      %502 = sbr.rel (0) target = $region65
    $region64: #{_lambda_.7} parent=1 // pred_region
      _
    $region65: #{_lambda_.7} parent=1 // pred_fallthru
      _
    %503 = vsyncpa [#allocation3], 1

// kernel: _lambda_.5
$region0: #{_lambda_.5}
  #allocation0 [shape = 'u32[]', space=smem, size = 0x4, offset = 0x4, fixed_abs, tag = 'smem constant byte address 0x4 - core index']
  #allocation1 [shape = 'u32[72,128]{1,0:T(1,128)}', space=vmem, size = 0x9000, scoped, tag = 'internal scratch']
  #allocation2 [shape = 'f32[1,1]{1,0:T(1,128)S(1)}', space=vmem, size = 0x200, scoped, tag = 'scoped memory for _lambda_.5']
  %s0 = inlined_call_operand.vmem [shape: f32[32,32], index: 0, kind: input, shape index: {}]
  %s1 = inlined_call_operand.vmem [shape: f32[32,16], index: 1, kind: input, shape index: {}]
  %s2 = inlined_call_operand.vmem [shape: f32[32,32], index: 2, kind: input, shape index: {}]
  %s3 = inlined_call_operand.vmem [shape: f32[32,12], index: 3, kind: input, shape index: {}]
  %s4 = inlined_call_operand.vmem [shape: f32[32,6], index: 4, kind: input, shape index: {}]
  %s5 = inlined_call_operand.vmem [shape: f32[32,12], index: 5, kind: input, shape index: {}]
  %s6 = inlined_call_operand.vmem [shape: f32[10,10], index: 6, kind: input, shape index: {}]
  %s7 = inlined_call_operand.vmem [shape: f32[80,32], index: 7, kind: input, shape index: {}]
  %s8 = inlined_call_operand.vmem [shape: f32[10,32], index: 8, kind: input, shape index: {}]
  %s9 = inlined_call_operand.vmem [shape: f32[1,32], index: 9, kind: input, shape index: {}, may-alias: {9,16}]
  %s10 = inlined_call_operand.vmem [shape: f32[10,4], index: 10, kind: input, shape index: {}]
  %s11 = inlined_call_operand.vmem [shape: f32[32,4], index: 11, kind: input, shape index: {}]
  %s12 = inlined_call_operand.vmem [shape: f32[1,4], index: 12, kind: input, shape index: {}, may-alias: {12,19}]
  %s13 = inlined_call_operand.vmem [shape: f32[4,4], index: 13, kind: input, shape index: {}]
  %s14 = inlined_call_operand.vmem [shape: f32[32,32], index: 14, kind: input, shape index: {}]
  %s15 = inlined_call_operand.vmem [shape: f32[4,32], index: 15, kind: input, shape index: {}]
  %s16 = inlined_call_operand.vmem [shape: f32[1,32], index: 16, kind: input, shape index: {}, may-alias: {9,16}]
  %s17 = inlined_call_operand.vmem [shape: f32[4,4], index: 17, kind: input, shape index: {}]
  %s18 = inlined_call_operand.vmem [shape: f32[32,4], index: 18, kind: input, shape index: {}]
  %s19 = inlined_call_operand.vmem [shape: f32[1,4], index: 19, kind: input, shape index: {}, may-alias: {12,19}]
  %s20 = inlined_call_operand.vmem [shape: f32[1,32], index: 20, kind: input, shape index: {}]
  %s21 = inlined_call_operand.<no memory space> [shape: f32[1,1], index: 21, kind: input, shape index: {}]
  %s22 = inlined_call_operand.vmem [shape: f32[32,44], index: 22, kind: output, shape index: {}]
  %s23 = sld [smem:[#allocation0]]
  $region98: #{_lambda_.5} parent=0
    _
  %s25 = ssub.s32 1, %s23
  %s26 = scalar_select 0, %s25, %s23
  %v27 = vstv %s21
  %28 = vst [vmem:[#allocation2] sm:$0x1] %v27
  // Predicated region
  $region2: #{_lambda_.5} parent=0 // pred_check
    _
  $region3: #{_lambda_.5} parent=0 // pred_check_branch
    %30 = sbr.rel (0) target = $region5
  $region4: #{_lambda_.5} parent=0 // pred_region
    _
  $region5: #{_lambda_.5} parent=0 // pred_fallthru
    _
  // Predicated region
  $region6: #{_lambda_.5} parent=0 // pred_check
    _
  $region7: #{_lambda_.5} parent=0 // pred_check_branch
    %32 = sbr.rel (0) target = $region9
  $region8: #{_lambda_.5} parent=0 // pred_region
    _
  $region9: #{_lambda_.5} parent=0 // pred_fallthru
    _
  // Predicated region
  $region10: #{_lambda_.5} parent=0 // pred_check
    _
  $region11: #{_lambda_.5} parent=0 // pred_check_branch
    %34 = sbr.rel (0) target = $region13
  $region12: #{_lambda_.5} parent=0 // pred_region
    _
  $region13: #{_lambda_.5} parent=0 // pred_fallthru
    _
  // Predicated region
  $region14: #{_lambda_.5} parent=0 // pred_check
    _
  $region15: #{_lambda_.5} parent=0 // pred_check_branch
    %36 = sbr.rel (0) target = $region17
  $region16: #{_lambda_.5} parent=0 // pred_region
    _
  $region17: #{_lambda_.5} parent=0 // pred_fallthru
    _
  // Predicated region
  $region18: #{_lambda_.5} parent=0 // pred_check
    _
  $region19: #{_lambda_.5} parent=0 // pred_check_branch
    %38 = sbr.rel (0) target = $region21
  $region20: #{_lambda_.5} parent=0 // pred_region
    _
  $region21: #{_lambda_.5} parent=0 // pred_fallthru
    _
  // Predicated region
  $region22: #{_lambda_.5} parent=0 // pred_check
    _
  $region23: #{_lambda_.5} parent=0 // pred_check_branch
    %40 = sbr.rel (0) target = $region25
  $region24: #{_lambda_.5} parent=0 // pred_region
    _
  $region25: #{_lambda_.5} parent=0 // pred_fallthru
    _
  // Predicated region
  $region26: #{_lambda_.5} parent=0 // pred_check
    _
  $region27: #{_lambda_.5} parent=0 // pred_check_branch
    %42 = sbr.rel (0) target = $region29
  $region28: #{_lambda_.5} parent=0 // pred_region
    _
  $region29: #{_lambda_.5} parent=0 // pred_fallthru
    _
  // Predicated region
  $region30: #{_lambda_.5} parent=0 // pred_check
    _
  $region31: #{_lambda_.5} parent=0 // pred_check_branch
    %44 = sbr.rel (0) target = $region33
  $region32: #{_lambda_.5} parent=0 // pred_region
    _
  $region33: #{_lambda_.5} parent=0 // pred_fallthru
    _
  // Predicated region
  $region34: #{_lambda_.5} parent=0 // pred_check
    _
  $region35: #{_lambda_.5} parent=0 // pred_check_branch
    %46 = sbr.rel (0) target = $region37
  $region36: #{_lambda_.5} parent=0 // pred_region
    _
  $region37: #{_lambda_.5} parent=0 // pred_fallthru
    _
  // Predicated region
  $region38: #{_lambda_.5} parent=0 // pred_check
    _
  $region39: #{_lambda_.5} parent=0 // pred_check_branch
    %48 = sbr.rel (0) target = $region41
  $region40: #{_lambda_.5} parent=0 // pred_region
    _
  $region41: #{_lambda_.5} parent=0 // pred_fallthru
    _
  // Predicated region
  $region42: #{_lambda_.5} parent=0 // pred_check
    _
  $region43: #{_lambda_.5} parent=0 // pred_check_branch
    %50 = sbr.rel (0) target = $region45
  $region44: #{_lambda_.5} parent=0 // pred_region
    _
  $region45: #{_lambda_.5} parent=0 // pred_fallthru
    _
  // Predicated region
  $region46: #{_lambda_.5} parent=0 // pred_check
    _
  $region47: #{_lambda_.5} parent=0 // pred_check_branch
    %52 = sbr.rel (0) target = $region49
  $region48: #{_lambda_.5} parent=0 // pred_region
    _
  $region49: #{_lambda_.5} parent=0 // pred_fallthru
    _
  // Predicated region
  $region50: #{_lambda_.5} parent=0 // pred_check
    _
  $region51: #{_lambda_.5} parent=0 // pred_check_branch
    %54 = sbr.rel (0) target = $region53
  $region52: #{_lambda_.5} parent=0 // pred_region
    _
  $region53: #{_lambda_.5} parent=0 // pred_fallthru
    _
  // Predicated region
  $region54: #{_lambda_.5} parent=0 // pred_check
    _
  $region55: #{_lambda_.5} parent=0 // pred_check_branch
    %56 = sbr.rel (0) target = $region57
  $region56: #{_lambda_.5} parent=0 // pred_region
    _
  $region57: #{_lambda_.5} parent=0 // pred_fallthru
    _
  // Predicated region
  $region58: #{_lambda_.5} parent=0 // pred_check
    _
  $region59: #{_lambda_.5} parent=0 // pred_check_branch
    %58 = sbr.rel (0) target = $region61
  $region60: #{_lambda_.5} parent=0 // pred_region
    _
  $region61: #{_lambda_.5} parent=0 // pred_fallthru
    _
  // Predicated region
  $region62: #{_lambda_.5} parent=0 // pred_check
    _
  $region63: #{_lambda_.5} parent=0 // pred_check_branch
    %60 = sbr.rel (0) target = $region65
  $region64: #{_lambda_.5} parent=0 // pred_region
    _
  $region65: #{_lambda_.5} parent=0 // pred_fallthru
    _
  // Predicated region
  $region66: #{_lambda_.5} parent=0 // pred_check
    _
  $region67: #{_lambda_.5} parent=0 // pred_check_branch
    %62 = sbr.rel (0) target = $region69
  $region68: #{_lambda_.5} parent=0 // pred_region
    _
  $region69: #{_lambda_.5} parent=0 // pred_fallthru
    _
  // Predicated region
  $region70: #{_lambda_.5} parent=0 // pred_check
    _
  $region71: #{_lambda_.5} parent=0 // pred_check_branch
    %64 = sbr.rel (0) target = $region73
  $region72: #{_lambda_.5} parent=0 // pred_region
    _
  $region73: #{_lambda_.5} parent=0 // pred_fallthru
    _
  // Predicated region
  $region74: #{_lambda_.5} parent=0 // pred_check
    _
  $region75: #{_lambda_.5} parent=0 // pred_check_branch
    %66 = sbr.rel (0) target = $region77
  $region76: #{_lambda_.5} parent=0 // pred_region
    _
  $region77: #{_lambda_.5} parent=0 // pred_fallthru
    _
  // Predicated region
  $region78: #{_lambda_.5} parent=0 // pred_check
    _
  $region79: #{_lambda_.5} parent=0 // pred_check_branch
    %68 = sbr.rel (0) target = $region81
  $region80: #{_lambda_.5} parent=0 // pred_region
    _
  $region81: #{_lambda_.5} parent=0 // pred_fallthru
    _
  // Predicated region
  $region82: #{_lambda_.5} parent=0 // pred_check
    _
  $region83: #{_lambda_.5} parent=0 // pred_check_branch
    %70 = sbr.rel (0) target = $region85
  $region84: #{_lambda_.5} parent=0 // pred_region
    _
  $region85: #{_lambda_.5} parent=0 // pred_fallthru
    _
  // Predicated region
  $region86: #{_lambda_.5} parent=0 // pred_check
    _
  $region87: #{_lambda_.5} parent=0 // pred_check_branch
    %72 = sbr.rel (0) target = $region89
  $region88: #{_lambda_.5} parent=0 // pred_region
    _
  $region89: #{_lambda_.5} parent=0 // pred_fallthru
    _
  %v73 = vld [vmem:[%s0] sm:$0xff]
  %v74 = vld [vmem:[%s0 + $0x8] sm:$0xff]
  %v75 = vld [vmem:[%s0 + $0x10] sm:$0xff]
  %v76 = vld [vmem:[%s0 + $0x18] sm:$0xff]
  %v77 = vld [vmem:[%s1] sm:$0xff]
  %v78 = vld [vmem:[%s1 + $0x8] sm:$0xff]
  %v79 = vld [vmem:[%s1 + $0x10] sm:$0xff]
  %v80 = vld [vmem:[%s1 + $0x18] sm:$0xff]
  %v81 = vld [vmem:[%s2] sm:$0xff]
  %v82 = vld [vmem:[%s2 + $0x8] sm:$0xff]
  %v83 = vld [vmem:[%s2 + $0x10] sm:$0xff]
  %v84 = vld [vmem:[%s2 + $0x18] sm:$0xff]
  %89 = vrot.lane.b32.xlu0 %v77, 32
  %v90 = vpop.permute.xlu0 %89
  %91 = vrot.lane.b32.xlu0 %v78, 32
  %v92 = vpop.permute.xlu0 %91
  %93 = vrot.lane.b32.xlu0 %v79, 32
  %v94 = vpop.permute.xlu0 %93
  %95 = vrot.lane.b32.xlu0 %v80, 32
  %v96 = vpop.permute.xlu0 %95
  %105 = vrot.lane.b32.xlu0 %v81, 48
  %v106 = vpop.permute.xlu0 %105
  %107 = vrot.lane.b32.xlu0 %v82, 48
  %v108 = vpop.permute.xlu0 %107
  %109 = vrot.lane.b32.xlu0 %v83, 48
  %v110 = vpop.permute.xlu0 %109
  %111 = vrot.lane.b32.xlu0 %v84, 48
  %v112 = vpop.permute.xlu0 %111
  %vm117 = vcmask 261120
  %v118 = vsel %vm117, %v73, %v90
  %v119 = vsel %vm117, %v74, %v92
  %v120 = vsel %vm117, %v75, %v94
  %v121 = vsel %vm117, %v76, %v96
  %vm122 = vcmask 392192
  %v123 = vsel %vm122, %v118, %v106
  %v124 = vsel %vm122, %v119, %v108
  %v125 = vsel %vm122, %v120, %v110
  %v126 = vsel %vm122, %v121, %v112
  %v127 = vld [vmem:[%s3] sm:$0xff]
  %v128 = vld [vmem:[%s3 + $0x8] sm:$0xff]
  %v129 = vld [vmem:[%s3 + $0x10] sm:$0xff]
  %v130 = vld [vmem:[%s3 + $0x18] sm:$0xff]
  %v131 = vld [vmem:[%s4] sm:$0xff]
  %v132 = vld [vmem:[%s4 + $0x8] sm:$0xff]
  %v133 = vld [vmem:[%s4 + $0x10] sm:$0xff]
  %v134 = vld [vmem:[%s4 + $0x18] sm:$0xff]
  %v135 = vld [vmem:[%s5] sm:$0xff]
  %v136 = vld [vmem:[%s5 + $0x8] sm:$0xff]
  %v137 = vld [vmem:[%s5 + $0x10] sm:$0xff]
  %v138 = vld [vmem:[%s5 + $0x18] sm:$0xff]
  %143 = vrot.lane.b32.xlu0 %v131, 4
  %v144 = vpop.permute.xlu0 %143
  %145 = vrot.lane.b32.xlu0 %v132, 4
  %v146 = vpop.permute.xlu0 %145
  %147 = vrot.lane.b32.xlu0 %v133, 4
  %v148 = vpop.permute.xlu0 %147
  %149 = vrot.lane.b32.xlu0 %v134, 4
  %v150 = vpop.permute.xlu0 %149
  %159 = vrot.lane.b32.xlu0 %v135, 6
  %v160 = vpop.permute.xlu0 %159
  %161 = vrot.lane.b32.xlu0 %v136, 6
  %v162 = vpop.permute.xlu0 %161
  %163 = vrot.lane.b32.xlu0 %v137, 6
  %v164 = vpop.permute.xlu0 %163
  %165 = vrot.lane.b32.xlu0 %v138, 6
  %v166 = vpop.permute.xlu0 %165
  %vm171 = vcmask 31744
  %v172 = vsel %vm171, %v127, %v144
  %v173 = vsel %vm171, %v128, %v146
  %v174 = vsel %vm171, %v129, %v148
  %v175 = vsel %vm171, %v130, %v150
  %vm176 = vcmask 48128
  %v177 = vsel %vm176, %v172, %v160
  %v178 = vsel %vm176, %v173, %v162
  %v179 = vsel %vm176, %v174, %v164
  %v180 = vsel %vm176, %v175, %v166
  %185 = vrot.lane.b32.xlu0 %v127, 124
  %v186 = vpop.permute.xlu0 %185
  %187 = vrot.lane.b32.xlu0 %v128, 124
  %v188 = vpop.permute.xlu0 %187
  %189 = vrot.lane.b32.xlu0 %v129, 124
  %v190 = vpop.permute.xlu0 %189
  %191 = vrot.lane.b32.xlu0 %v130, 124
  %v192 = vpop.permute.xlu0 %191
  %197 = vrot.lane.b32.xlu0 %v131, 2
  %v198 = vpop.permute.xlu0 %197
  %199 = vrot.lane.b32.xlu0 %v132, 2
  %v200 = vpop.permute.xlu0 %199
  %201 = vrot.lane.b32.xlu0 %v133, 2
  %v202 = vpop.permute.xlu0 %201
  %203 = vrot.lane.b32.xlu0 %v134, 2
  %v204 = vpop.permute.xlu0 %203
  %209 = vrot.lane.b32.xlu0 %v135, 2
  %v210 = vpop.permute.xlu0 %209
  %211 = vrot.lane.b32.xlu0 %v136, 2
  %v212 = vpop.permute.xlu0 %211
  %213 = vrot.lane.b32.xlu0 %v137, 2
  %v214 = vpop.permute.xlu0 %213
  %215 = vrot.lane.b32.xlu0 %v138, 2
  %v216 = vpop.permute.xlu0 %215
  %v221 = vsel %vm171, %v186, %v198
  %v222 = vsel %vm171, %v188, %v200
  %v223 = vsel %vm171, %v190, %v202
  %v224 = vsel %vm171, %v192, %v204
  %v225 = vsel %vm176, %v221, %v210
  %v226 = vsel %vm176, %v222, %v212
  %v227 = vsel %vm176, %v223, %v214
  %v228 = vsel %vm176, %v224, %v216
  %229 = vrot.lane.b32.xlu0 %v127, 120
  %v230 = vpop.permute.xlu0 %229
  %231 = vrot.lane.b32.xlu0 %v128, 120
  %v232 = vpop.permute.xlu0 %231
  %233 = vrot.lane.b32.xlu0 %v129, 120
  %v234 = vpop.permute.xlu0 %233
  %235 = vrot.lane.b32.xlu0 %v130, 120
  %v236 = vpop.permute.xlu0 %235
  %241 = vrot.lane.b32.xlu0 %v135, 126
  %v242 = vpop.permute.xlu0 %241
  %243 = vrot.lane.b32.xlu0 %v136, 126
  %v244 = vpop.permute.xlu0 %243
  %245 = vrot.lane.b32.xlu0 %v137, 126
  %v246 = vpop.permute.xlu0 %245
  %247 = vrot.lane.b32.xlu0 %v138, 126
  %v248 = vpop.permute.xlu0 %247
  %v253 = vsel %vm171, %v230, %v131
  %v254 = vsel %vm171, %v232, %v132
  %v255 = vsel %vm171, %v234, %v133
  %v256 = vsel %vm171, %v236, %v134
  %v257 = vsel %vm176, %v253, %v242
  %v258 = vsel %vm176, %v254, %v244
  %v259 = vsel %vm176, %v255, %v246
  %v260 = vsel %vm176, %v256, %v248
  %v261 = vld [vmem:[%s6] sm:$0xff]
  %v262 = vld [vmem:[%s6 + $0x8] sm:$0x3]
  %v263 = vld [vmem:[%s7] sm:$0xff]
  %v264 = vld [vmem:[%s7 + $0x8] sm:$0xff]
  %v265 = vld [vmem:[%s7 + $0x10] sm:$0xff]
  %v266 = vld [vmem:[%s7 + $0x18] sm:$0xff]
  %v267 = vld [vmem:[%s7 + $0x20] sm:$0xff]
  %v268 = vld [vmem:[%s7 + $0x28] sm:$0xff]
  %v269 = vld [vmem:[%s7 + $0x30] sm:$0xff]
  %v270 = vld [vmem:[%s7 + $0x38] sm:$0xff]
  %v271 = vld [vmem:[%s7 + $0x40] sm:$0xff]
  %v272 = vld [vmem:[%s7 + $0x48] sm:$0xff]
  %v273 = vld [vmem:[%s8] sm:$0xff]
  %v274 = vld [vmem:[%s8 + $0x8] sm:$0x3]
  %v275 = vld [vmem:[%s9] sm:$0x1]
  %v276 = vld [vmem:[%s10] sm:$0xff]
  %v277 = vld [vmem:[%s10 + $0x8] sm:$0x3]
  %v278 = vld [vmem:[%s11] sm:$0xff]
  %v279 = vld [vmem:[%s11 + $0x8] sm:$0xff]
  %v280 = vld [vmem:[%s11 + $0x10] sm:$0xff]
  %v281 = vld [vmem:[%s11 + $0x18] sm:$0xff]
  %v282 = vld [vmem:[%s12] sm:$0x1]
  %vm283 = vcmask 80896
  %v285 = vsel %vm283, %v177, 0
  %v288 = vsel %vm283, %v178, 0
  %v291 = vsel %vm283, %v179, 0
  %v294 = vsel %vm283, %v180, 0
  %v297 = vsel %vm283, %v225, 0
  %v300 = vsel %vm283, %v226, 0
  %v303 = vsel %vm283, %v227, 0
  %v306 = vsel %vm283, %v228, 0
  %v309 = vsel %vm283, %v257, 0
  %v312 = vsel %vm283, %v258, 0
  %v315 = vsel %vm283, %v259, 0
  %v318 = vsel %vm283, %v260, 0
  %vm320 = vcmask 1041408
  %v322 = vsel %vm320, %v262, 0
  %324 = vmatpush.msra.mxu0 0.0
  %325 = vmatpush.msra.mxu0 0.0
  %326 = vmatpush.msra.mxu0 0.0
  %327 = vmatpush.msra.mxu0 0.0
  %328 = vmatpush.msra.mxu0 0.0
  %329 = vmatpush.msra.mxu0 0.0
  %330 = vmatpush.msra.mxu0 0.0
  %331 = vmatpush.msra.mxu0 0.0
  %332 = vmatpush.msra.mxu0 0.0
  %333 = vmatpush.msra.mxu0 0.0
  %334 = vmatpush.msra.mxu0 0.0
  %335 = vmatpush.msra.mxu0 0.0
  %336 = vmatpush.msra.mxu0 0.0
  %337 = vmatpush.msra.mxu0 0.0
  %338 = vmatpush.msra.mxu0 %v322
  %339 = vmatpush.msra.mxu0 %v261
  %340 = vmatmul.f32.gmra.mxu0 %v285
  %v341 = vpop.f32.mrf.mxu0
  %v342 = vadd.f32 0.0, %v341
  %343 = vmatmul.f32.gmra.mxu0 %v288
  %v344 = vpop.f32.mrf.mxu0
  %v345 = vadd.f32 0.0, %v344
  %346 = vmatmul.f32.gmra.mxu0 %v291
  %v347 = vpop.f32.mrf.mxu0
  %v348 = vadd.f32 0.0, %v347
  %349 = vmatmul.f32.gmra.mxu0 %v294
  %v350 = vpop.f32.mrf.mxu0
  %v351 = vadd.f32 0.0, %v350
  %352 = vmatmul.f32.gmra.mxu0 %v297
  %v353 = vpop.f32.mrf.mxu0
  %v354 = vadd.f32 0.0, %v353
  %355 = vmatmul.f32.gmra.mxu0 %v300
  %v356 = vpop.f32.mrf.mxu0
  %v357 = vadd.f32 0.0, %v356
  %358 = vmatmul.f32.gmra.mxu0 %v303
  %v359 = vpop.f32.mrf.mxu0
  %v360 = vadd.f32 0.0, %v359
  %361 = vmatmul.f32.gmra.mxu0 %v306
  %v362 = vpop.f32.mrf.mxu0
  %v363 = vadd.f32 0.0, %v362
  %364 = vmatmul.f32.gmra.mxu0 %v309
  %v365 = vpop.f32.mrf.mxu0
  %v366 = vadd.f32 0.0, %v365
  %367 = vmatmul.f32.gmra.mxu0 %v312
  %v368 = vpop.f32.mrf.mxu0
  %v369 = vadd.f32 0.0, %v368
  %370 = vmatmul.f32.gmra.mxu0 %v315
  %v371 = vpop.f32.mrf.mxu0
  %v372 = vadd.f32 0.0, %v371
  %373 = vmatmul.f32.gmra.mxu0 %v318
  %v374 = vpop.f32.mrf.mxu0
  %v375 = vadd.f32 0.0, %v374
  %376 = vdwg.mxu0
  %v377 = vmul.f32 %v342, %v342
  %v378 = vmul.f32 %v345, %v345
  %v379 = vmul.f32 %v348, %v348
  %v380 = vmul.f32 %v351, %v351
  %v381 = vmul.f32 %v354, %v354
  %v382 = vmul.f32 %v357, %v357
  %v383 = vmul.f32 %v360, %v360
  %v384 = vmul.f32 %v363, %v363
  %v385 = vadd.f32 %v377, %v381
  %v386 = vadd.f32 %v378, %v382
  %v387 = vadd.f32 %v379, %v383
  %v388 = vadd.f32 %v380, %v384
  %v389 = vmul.f32 %v366, %v366
  %v390 = vmul.f32 %v369, %v369
  %v391 = vmul.f32 %v372, %v372
  %v392 = vmul.f32 %v375, %v375
  %v393 = vadd.f32 %v385, %v389
  %v394 = vadd.f32 %v386, %v390
  %v395 = vadd.f32 %v387, %v391
  %v396 = vadd.f32 %v388, %v392
  %v397 = vadd.f32 %v393, 1e-08
  %v398 = vadd.f32 %v394, 1e-08
  %v399 = vadd.f32 %v395, 1e-08
  %v400 = vadd.f32 %v396, 1e-08
  %v401 = vrsqrt.pop %v397
  %v402 = vmul.f32 %v401, %v397
  %v403 = vmul.f32 %v402, %v401
  %v404 = vmul.f32 0.5, %v403
  %v405 = vsub.f32 1.5, %v404
  %v406 = vmul.f32 %v401, %v405
  %v407 = vmul.f32 %v397, %v406
  %vm408 = vcmp.eq.f32.partialorder %v397, inf
  %v409 = vsel %vm408, %v397, %v407
  %vm410 = vcmp.eq.f32.partialorder %v397, 0.0
  %v411 = vand.u32 %v397, 2147483648
  %v412 = vsel %vm410, %v411, %v409
  %v413 = vrsqrt.pop %v398
  %v414 = vmul.f32 %v413, %v398
  %v415 = vmul.f32 %v414, %v413
  %v416 = vmul.f32 0.5, %v415
  %v417 = vsub.f32 1.5, %v416
  %v418 = vmul.f32 %v413, %v417
  %v419 = vmul.f32 %v398, %v418
  %vm420 = vcmp.eq.f32.partialorder %v398, inf
  %v421 = vsel %vm420, %v398, %v419
  %vm422 = vcmp.eq.f32.partialorder %v398, 0.0
  %v423 = vand.u32 %v398, 2147483648
  %v424 = vsel %vm422, %v423, %v421
  %v425 = vrsqrt.pop %v399
  %v426 = vmul.f32 %v425, %v399
  %v427 = vmul.f32 %v426, %v425
  %v428 = vmul.f32 0.5, %v427
  %v429 = vsub.f32 1.5, %v428
  %v430 = vmul.f32 %v425, %v429
  %v431 = vmul.f32 %v399, %v430
  %vm432 = vcmp.eq.f32.partialorder %v399, inf
  %v433 = vsel %vm432, %v399, %v431
  %vm434 = vcmp.eq.f32.partialorder %v399, 0.0
  %v435 = vand.u32 %v399, 2147483648
  %v436 = vsel %vm434, %v435, %v433
  %v437 = vrsqrt.pop %v400
  %v438 = vmul.f32 %v437, %v400
  %v439 = vmul.f32 %v438, %v437
  %v440 = vmul.f32 0.5, %v439
  %v441 = vsub.f32 1.5, %v440
  %v442 = vmul.f32 %v437, %v441
  %v443 = vmul.f32 %v400, %v442
  %vm444 = vcmp.eq.f32.partialorder %v400, inf
  %v445 = vsel %vm444, %v400, %v443
  %vm446 = vcmp.eq.f32.partialorder %v400, 0.0
  %v447 = vand.u32 %v400, 2147483648
  %v448 = vsel %vm446, %v447, %v445
  %v450 = vsel %vm283, %v412, 0
  %v453 = vsel %vm283, %v424, 0
  %v456 = vsel %vm283, %v436, 0
  %v459 = vsel %vm283, %v448, 0
  %v462 = vsel %vm320, %v274, 0
  %464 = vmatpush.msra.mxu0 0.0
  %465 = vmatpush.msra.mxu0 0.0
  %466 = vmatpush.msra.mxu0 0.0
  %467 = vmatpush.msra.mxu0 0.0
  %468 = vmatpush.msra.mxu0 0.0
  %469 = vmatpush.msra.mxu0 0.0
  %470 = vmatpush.msra.mxu0 0.0
  %471 = vmatpush.msra.mxu0 0.0
  %472 = vmatpush.msra.mxu0 0.0
  %473 = vmatpush.msra.mxu0 0.0
  %474 = vmatpush.msra.mxu0 0.0
  %475 = vmatpush.msra.mxu0 0.0
  %476 = vmatpush.msra.mxu0 0.0
  %477 = vmatpush.msra.mxu0 0.0
  %478 = vmatpush.msra.mxu0 %v462
  %479 = vmatpush.msra.mxu0 %v273
  %480 = vmatmul.f32.gmra.mxu0 %v450
  %v481 = vpop.f32.mrf.mxu0
  %v482 = vadd.f32 0.0, %v481
  %483 = vmatmul.f32.gmra.mxu0 %v453
  %v484 = vpop.f32.mrf.mxu0
  %v485 = vadd.f32 0.0, %v484
  %486 = vmatmul.f32.gmra.mxu0 %v456
  %v487 = vpop.f32.mrf.mxu0
  %v488 = vadd.f32 0.0, %v487
  %489 = vmatmul.f32.gmra.mxu0 %v459
  %v490 = vpop.f32.mrf.mxu0
  %v491 = vadd.f32 0.0, %v490
  %492 = vdwg.mxu0
  %vm493 = vcmask 654336
  %v495 = vsel %vm493, %v123, 0
  %v498 = vsel %vm493, %v124, 0
  %v501 = vsel %vm493, %v125, 0
  %v504 = vsel %vm493, %v126, 0
  %506 = vmatpush.msra.mxu0 0.0
  %507 = vmatpush.msra.mxu0 0.0
  %508 = vmatpush.msra.mxu0 0.0
  %509 = vmatpush.msra.mxu0 0.0
  %510 = vmatpush.msra.mxu0 0.0
  %511 = vmatpush.msra.mxu0 0.0
  %512 = vmatpush.msra.mxu0 %v272
  %513 = vmatpush.msra.mxu0 %v271
  %514 = vmatpush.msra.mxu0 %v270
  %515 = vmatpush.msra.mxu0 %v269
  %516 = vmatpush.msra.mxu0 %v268
  %517 = vmatpush.msra.mxu0 %v267
  %518 = vmatpush.msra.mxu0 %v266
  %519 = vmatpush.msra.mxu0 %v265
  %520 = vmatpush.msra.mxu0 %v264
  %521 = vmatpush.msra.mxu0 %v263
  %522 = vmatmul.f32.gmra.mxu0 %v495
  %v523 = vpop.f32.mrf.mxu0
  %v524 = vadd.f32 %v482, %v523
  %525 = vmatmul.f32.gmra.mxu0 %v498
  %v526 = vpop.f32.mrf.mxu0
  %v527 = vadd.f32 %v485, %v526
  %528 = vmatmul.f32.gmra.mxu0 %v501
  %v529 = vpop.f32.mrf.mxu0
  %v530 = vadd.f32 %v488, %v529
  %531 = vmatmul.f32.gmra.mxu0 %v504
  %v532 = vpop.f32.mrf.mxu0
  %v533 = vadd.f32 %v491, %v532
  %534 = vdwg.mxu0
  %v536 = vperm.slane %v275, 0
  %v538 = vadd.f32 %v524, %v536
  %v539 = vadd.f32 %v527, %v536
  %v540 = vadd.f32 %v530, %v536
  %v541 = vadd.f32 %v533, %v536
  %v543 = vsel %vm283, %v342, 0
  %v546 = vsel %vm283, %v345, 0
  %v549 = vsel %vm283, %v348, 0
  %v552 = vsel %vm283, %v351, 0
  %v555 = vsel %vm283, %v354, 0
  %v558 = vsel %vm283, %v357, 0
  %v561 = vsel %vm283, %v360, 0
  %v564 = vsel %vm283, %v363, 0
  %v567 = vsel %vm283, %v366, 0
  %v570 = vsel %vm283, %v369, 0
  %v573 = vsel %vm283, %v372, 0
  %v576 = vsel %vm283, %v375, 0
  %v579 = vsel %vm320, %v277, 0
  %581 = vmatpush.msra.mxu0 0.0
  %582 = vmatpush.msra.mxu0 0.0
  %583 = vmatpush.msra.mxu0 0.0
  %584 = vmatpush.msra.mxu0 0.0
  %585 = vmatpush.msra.mxu0 0.0
  %586 = vmatpush.msra.mxu0 0.0
  %587 = vmatpush.msra.mxu0 0.0
  %588 = vmatpush.msra.mxu0 0.0
  %589 = vmatpush.msra.mxu0 0.0
  %590 = vmatpush.msra.mxu0 0.0
  %591 = vmatpush.msra.mxu0 0.0
  %592 = vmatpush.msra.mxu0 0.0
  %593 = vmatpush.msra.mxu0 0.0
  %594 = vmatpush.msra.mxu0 0.0
  %595 = vmatpush.msra.mxu0 %v579
  %596 = vmatpush.msra.mxu0 %v276
  %597 = vmatmul.f32.gmra.mxu0 %v543
  %v598 = vpop.f32.mrf.mxu0
  %v599 = vadd.f32 0.0, %v598
  %600 = vmatmul.f32.gmra.mxu0 %v546
  %v601 = vpop.f32.mrf.mxu0
  %v602 = vadd.f32 0.0, %v601
  %603 = vmatmul.f32.gmra.mxu0 %v549
  %v604 = vpop.f32.mrf.mxu0
  %v605 = vadd.f32 0.0, %v604
  %606 = vmatmul.f32.gmra.mxu0 %v552
  %v607 = vpop.f32.mrf.mxu0
  %v608 = vadd.f32 0.0, %v607
  %609 = vmatmul.f32.gmra.mxu0 %v555
  %v610 = vpop.f32.mrf.mxu0
  %v611 = vadd.f32 0.0, %v610
  %612 = vmatmul.f32.gmra.mxu0 %v558
  %v613 = vpop.f32.mrf.mxu0
  %v614 = vadd.f32 0.0, %v613
  %615 = vmatmul.f32.gmra.mxu0 %v561
  %v616 = vpop.f32.mrf.mxu0
  %v617 = vadd.f32 0.0, %v616
  %618 = vmatmul.f32.gmra.mxu0 %v564
  %v619 = vpop.f32.mrf.mxu0
  %v620 = vadd.f32 0.0, %v619
  %621 = vmatmul.f32.gmra.mxu0 %v567
  %v622 = vpop.f32.mrf.mxu0
  %v623 = vadd.f32 0.0, %v622
  %624 = vmatmul.f32.gmra.mxu0 %v570
  %v625 = vpop.f32.mrf.mxu0
  %v626 = vadd.f32 0.0, %v625
  %627 = vmatmul.f32.gmra.mxu0 %v573
  %v628 = vpop.f32.mrf.mxu0
  %v629 = vadd.f32 0.0, %v628
  %630 = vmatmul.f32.gmra.mxu0 %v576
  %v631 = vpop.f32.mrf.mxu0
  %v632 = vadd.f32 0.0, %v631
  %633 = vdwg.mxu0
  %v635 = vperm.slane %v282, 0
  %v638 = vsel %vm117, %v538, 0
  %v641 = vsel %vm117, %v539, 0
  %v644 = vsel %vm117, %v540, 0
  %v647 = vsel %vm117, %v541, 0
  %649 = vmatpush.msra.mxu0 0.0
  %650 = vmatpush.msra.mxu0 0.0
  %651 = vmatpush.msra.mxu0 0.0
  %652 = vmatpush.msra.mxu0 0.0
  %653 = vmatpush.msra.mxu0 0.0
  %654 = vmatpush.msra.mxu0 0.0
  %655 = vmatpush.msra.mxu0 0.0
  %656 = vmatpush.msra.mxu0 0.0
  %657 = vmatpush.msra.mxu0 0.0
  %658 = vmatpush.msra.mxu0 0.0
  %659 = vmatpush.msra.mxu0 0.0
  %660 = vmatpush.msra.mxu0 0.0
  %661 = vmatpush.msra.mxu0 %v281
  %662 = vmatpush.msra.mxu0 %v280
  %663 = vmatpush.msra.mxu0 %v279
  %664 = vmatpush.msra.mxu0 %v278
  %665 = vmatmul.f32.gmra.mxu0 %v638
  %v666 = vpop.f32.mrf.mxu0
  %v667 = vadd.f32 %v635, %v666
  %668 = vmatmul.f32.gmra.mxu0 %v641
  %v669 = vpop.f32.mrf.mxu0
  %v670 = vadd.f32 %v635, %v669
  %671 = vmatmul.f32.gmra.mxu0 %v644
  %v672 = vpop.f32.mrf.mxu0
  %v673 = vadd.f32 %v635, %v672
  %674 = vmatmul.f32.gmra.mxu0 %v647
  %v675 = vpop.f32.mrf.mxu0
  %v676 = vadd.f32 %v635, %v675
  %677 = vdwg.mxu0
  %v678 = vxor.u32 %v667, 2147483648
  %v679 = vxor.u32 %v670, 2147483648
  %v680 = vxor.u32 %v673, 2147483648
  %v681 = vxor.u32 %v676, 2147483648
  %v682 = vmul.f32 %v678, 1.442695
  %v683 = vpow.pop %v682
  %v684 = vmul.f32 %v679, 1.442695
  %v685 = vpow.pop %v684
  %v686 = vmul.f32 %v680, 1.442695
  %v687 = vpow.pop %v686
  %v688 = vmul.f32 %v681, 1.442695
  %v689 = vpow.pop %v688
  %v690 = vadd.f32 %v683, 1.0
  %v691 = vadd.f32 %v685, 1.0
  %v692 = vadd.f32 %v687, 1.0
  %v693 = vadd.f32 %v689, 1.0
  %v694 = vrcp.pop %v690
  %v695 = vmul.f32 %v690, %v694
  %v696 = vsub.f32 1.0, %v695
  %v697 = vmul.f32 %v694, %v696
  %v698 = vadd.f32 %v694, %v697
  %vm699 = vweird.f32 %v690
  %vm700 = vweird.f32 %v694
  %vm701 = vmor %vm699, %vm700
  %v702 = vsel %vm701, %v694, %v698
  %v703 = vand.u32 2147483647, %v690
  %vm704 = vcmp.eq.f32.partialorder %v703, 8.507059e+37
  %v705 = vand.u32 %v690, 2147483648
  %v706 = vor.u32 1.1754944e-38, %v705
  %v707 = vsel %vm704, %v706, %v702
  %v708 = vmul.f32 1.0, %v707
  %v709 = vrcp.pop %v691
  %v710 = vmul.f32 %v691, %v709
  %v711 = vsub.f32 1.0, %v710
  %v712 = vmul.f32 %v709, %v711
  %v713 = vadd.f32 %v709, %v712
  %vm714 = vweird.f32 %v691
  %vm715 = vweird.f32 %v709
  %vm716 = vmor %vm714, %vm715
  %v717 = vsel %vm716, %v709, %v713
  %v718 = vand.u32 2147483647, %v691
  %vm719 = vcmp.eq.f32.partialorder %v718, 8.507059e+37
  %v720 = vand.u32 %v691, 2147483648
  %v721 = vor.u32 1.1754944e-38, %v720
  %v722 = vsel %vm719, %v721, %v717
  %v723 = vmul.f32 1.0, %v722
  %v724 = vrcp.pop %v692
  %v725 = vmul.f32 %v692, %v724
  %v726 = vsub.f32 1.0, %v725
  %v727 = vmul.f32 %v724, %v726
  %v728 = vadd.f32 %v724, %v727
  %vm729 = vweird.f32 %v692
  %vm730 = vweird.f32 %v724
  %vm731 = vmor %vm729, %vm730
  %v732 = vsel %vm731, %v724, %v728
  %v733 = vand.u32 2147483647, %v692
  %vm734 = vcmp.eq.f32.partialorder %v733, 8.507059e+37
  %v735 = vand.u32 %v692, 2147483648
  %v736 = vor.u32 1.1754944e-38, %v735
  %v737 = vsel %vm734, %v736, %v732
  %v738 = vmul.f32 1.0, %v737
  %v739 = vrcp.pop %v693
  %v740 = vmul.f32 %v693, %v739
  %v741 = vsub.f32 1.0, %v740
  %v742 = vmul.f32 %v739, %v741
  %v743 = vadd.f32 %v739, %v742
  %vm744 = vweird.f32 %v693
  %vm745 = vweird.f32 %v739
  %vm746 = vmor %vm744, %vm745
  %v747 = vsel %vm746, %v739, %v743
  %v748 = vand.u32 2147483647, %v693
  %vm749 = vcmp.eq.f32.partialorder %v748, 8.507059e+37
  %v750 = vand.u32 %v693, 2147483648
  %v751 = vor.u32 1.1754944e-38, %v750
  %v752 = vsel %vm749, %v751, %v747
  %v753 = vmul.f32 1.0, %v752
  %v754 = vmul.f32 %v599, %v708
  %v755 = vmul.f32 %v602, %v723
  %v756 = vmul.f32 %v605, %v738
  %v757 = vmul.f32 %v608, %v753
  %v758 = vmul.f32 %v611, %v708
  %v759 = vmul.f32 %v614, %v723
  %v760 = vmul.f32 %v617, %v738
  %v761 = vmul.f32 %v620, %v753
  %v762 = vmul.f32 %v623, %v708
  %v763 = vmul.f32 %v626, %v723
  %v764 = vmul.f32 %v629, %v738
  %v765 = vmul.f32 %v632, %v753
  %v766 = vxor.u32 %v538, 2147483648
  %v767 = vxor.u32 %v539, 2147483648
  %v768 = vxor.u32 %v540, 2147483648
  %v769 = vxor.u32 %v541, 2147483648
  %v770 = vmul.f32 %v766, 1.442695
  %v771 = vpow.pop %v770
  %v772 = vmul.f32 %v767, 1.442695
  %v773 = vpow.pop %v772
  %v774 = vmul.f32 %v768, 1.442695
  %v775 = vpow.pop %v774
  %v776 = vmul.f32 %v769, 1.442695
  %v777 = vpow.pop %v776
  %v778 = vadd.f32 %v771, 1.0
  %v779 = vadd.f32 %v773, 1.0
  %v780 = vadd.f32 %v775, 1.0
  %v781 = vadd.f32 %v777, 1.0
  %v782 = vrcp.pop %v778
  %v783 = vmul.f32 %v778, %v782
  %v784 = vsub.f32 1.0, %v783
  %v785 = vmul.f32 %v782, %v784
  %v786 = vadd.f32 %v782, %v785
  %vm787 = vweird.f32 %v778
  %vm788 = vweird.f32 %v782
  %vm789 = vmor %vm787, %vm788
  %v790 = vsel %vm789, %v782, %v786
  %v791 = vand.u32 2147483647, %v778
  %vm792 = vcmp.eq.f32.partialorder %v791, 8.507059e+37
  %v793 = vand.u32 %v778, 2147483648
  %v794 = vor.u32 1.1754944e-38, %v793
  %v795 = vsel %vm792, %v794, %v790
  %v796 = vmul.f32 1.0, %v795
  %v797 = vrcp.pop %v779
  %v798 = vmul.f32 %v779, %v797
  %v799 = vsub.f32 1.0, %v798
  %v800 = vmul.f32 %v797, %v799
  %v801 = vadd.f32 %v797, %v800
  %vm802 = vweird.f32 %v779
  %vm803 = vweird.f32 %v797
  %vm804 = vmor %vm802, %vm803
  %v805 = vsel %vm804, %v797, %v801
  %v806 = vand.u32 2147483647, %v779
  %vm807 = vcmp.eq.f32.partialorder %v806, 8.507059e+37
  %v808 = vand.u32 %v779, 2147483648
  %v809 = vor.u32 1.1754944e-38, %v808
  %v810 = vsel %vm807, %v809, %v805
  %v811 = vmul.f32 1.0, %v810
  %v812 = vrcp.pop %v780
  %v813 = vmul.f32 %v780, %v812
  %v814 = vsub.f32 1.0, %v813
  %v815 = vmul.f32 %v812, %v814
  %v816 = vadd.f32 %v812, %v815
  %vm817 = vweird.f32 %v780
  %vm818 = vweird.f32 %v812
  %vm819 = vmor %vm817, %vm818
  %v820 = vsel %vm819, %v812, %v816
  %v821 = vand.u32 2147483647, %v780
  %vm822 = vcmp.eq.f32.partialorder %v821, 8.507059e+37
  %v823 = vand.u32 %v780, 2147483648
  %v824 = vor.u32 1.1754944e-38, %v823
  %v825 = vsel %vm822, %v824, %v820
  %v826 = vmul.f32 1.0, %v825
  %v827 = vrcp.pop %v781
  %v828 = vmul.f32 %v781, %v827
  %v829 = vsub.f32 1.0, %v828
  %v830 = vmul.f32 %v827, %v829
  %v831 = vadd.f32 %v827, %v830
  %vm832 = vweird.f32 %v781
  %vm833 = vweird.f32 %v827
  %vm834 = vmor %vm832, %vm833
  %v835 = vsel %vm834, %v827, %v831
  %v836 = vand.u32 2147483647, %v781
  %vm837 = vcmp.eq.f32.partialorder %v836, 8.507059e+37
  %v838 = vand.u32 %v781, 2147483648
  %v839 = vor.u32 1.1754944e-38, %v838
  %v840 = vsel %vm837, %v839, %v835
  %v841 = vmul.f32 1.0, %v840
  %v842 = vmul.f32 %v538, %v796
  %v843 = vmul.f32 %v539, %v811
  %v844 = vmul.f32 %v540, %v826
  %v845 = vmul.f32 %v541, %v841
  %v846 = vld [vmem:[%s13] sm:$0xf]
  %v847 = vld [vmem:[%s14] sm:$0xff]
  %v848 = vld [vmem:[%s14 + $0x8] sm:$0xff]
  %v849 = vld [vmem:[%s14 + $0x10] sm:$0xff]
  %v850 = vld [vmem:[%s14 + $0x18] sm:$0xff]
  %v851 = vld [vmem:[%s15] sm:$0xf]
  %v852 = vld [vmem:[%s16] sm:$0x1]
  %v853 = vld [vmem:[%s17] sm:$0xf]
  %v854 = vld [vmem:[%s18] sm:$0xff]
  %v855 = vld [vmem:[%s18 + $0x8] sm:$0xff]
  %v856 = vld [vmem:[%s18 + $0x10] sm:$0xff]
  %v857 = vld [vmem:[%s18 + $0x18] sm:$0xff]
  %v858 = vld [vmem:[%s19] sm:$0x1]
  %v860 = vsel %vm171, %v754, 0
  %v863 = vsel %vm171, %v755, 0
  %v866 = vsel %vm171, %v756, 0
  %v869 = vsel %vm171, %v757, 0
  %v872 = vsel %vm171, %v758, 0
  %v875 = vsel %vm171, %v759, 0
  %v878 = vsel %vm171, %v760, 0
  %v881 = vsel %vm171, %v761, 0
  %v884 = vsel %vm171, %v762, 0
  %v887 = vsel %vm171, %v763, 0
  %v890 = vsel %vm171, %v764, 0
  %v893 = vsel %vm171, %v765, 0
  %vm895 = vcmask 1043456
  %v897 = vsel %vm895, %v846, 0
  %899 = vmatpush.msra.mxu0 0.0
  %900 = vmatpush.msra.mxu0 0.0
  %901 = vmatpush.msra.mxu0 0.0
  %902 = vmatpush.msra.mxu0 0.0
  %903 = vmatpush.msra.mxu0 0.0
  %904 = vmatpush.msra.mxu0 0.0
  %905 = vmatpush.msra.mxu0 0.0
  %906 = vmatpush.msra.mxu0 0.0
  %907 = vmatpush.msra.mxu0 0.0
  %908 = vmatpush.msra.mxu0 0.0
  %909 = vmatpush.msra.mxu0 0.0
  %910 = vmatpush.msra.mxu0 0.0
  %911 = vmatpush.msra.mxu0 0.0
  %912 = vmatpush.msra.mxu0 0.0
  %913 = vmatpush.msra.mxu0 0.0
  %914 = vmatpush.msra.mxu0 %v897
  %915 = vmatmul.f32.gmra.mxu0 %v860
  %v916 = vpop.f32.mrf.mxu0
  %v917 = vadd.f32 0.0, %v916
  %918 = vmatmul.f32.gmra.mxu0 %v863
  %v919 = vpop.f32.mrf.mxu0
  %v920 = vadd.f32 0.0, %v919
  %921 = vmatmul.f32.gmra.mxu0 %v866
  %v922 = vpop.f32.mrf.mxu0
  %v923 = vadd.f32 0.0, %v922
  %924 = vmatmul.f32.gmra.mxu0 %v869
  %v925 = vpop.f32.mrf.mxu0
  %v926 = vadd.f32 0.0, %v925
  %927 = vmatmul.f32.gmra.mxu0 %v872
  %v928 = vpop.f32.mrf.mxu0
  %v929 = vadd.f32 0.0, %v928
  %930 = vmatmul.f32.gmra.mxu0 %v875
  %v931 = vpop.f32.mrf.mxu0
  %v932 = vadd.f32 0.0, %v931
  %933 = vmatmul.f32.gmra.mxu0 %v878
  %v934 = vpop.f32.mrf.mxu0
  %v935 = vadd.f32 0.0, %v934
  %936 = vmatmul.f32.gmra.mxu0 %v881
  %v937 = vpop.f32.mrf.mxu0
  %v938 = vadd.f32 0.0, %v937
  %939 = vmatmul.f32.gmra.mxu0 %v884
  %v940 = vpop.f32.mrf.mxu0
  %v941 = vadd.f32 0.0, %v940
  %942 = vmatmul.f32.gmra.mxu0 %v887
  %v943 = vpop.f32.mrf.mxu0
  %v944 = vadd.f32 0.0, %v943
  %945 = vmatmul.f32.gmra.mxu0 %v890
  %v946 = vpop.f32.mrf.mxu0
  %v947 = vadd.f32 0.0, %v946
  %948 = vmatmul.f32.gmra.mxu0 %v893
  %v949 = vpop.f32.mrf.mxu0
  %v950 = vadd.f32 0.0, %v949
  %951 = vdwg.mxu0
  %v952 = vmul.f32 %v917, %v917
  %v953 = vmul.f32 %v920, %v920
  %v954 = vmul.f32 %v923, %v923
  %v955 = vmul.f32 %v926, %v926
  %v956 = vmul.f32 %v929, %v929
  %v957 = vmul.f32 %v932, %v932
  %v958 = vmul.f32 %v935, %v935
  %v959 = vmul.f32 %v938, %v938
  %v960 = vadd.f32 %v952, %v956
  %v961 = vadd.f32 %v953, %v957
  %v962 = vadd.f32 %v954, %v958
  %v963 = vadd.f32 %v955, %v959
  %v964 = vmul.f32 %v941, %v941
  %v965 = vmul.f32 %v944, %v944
  %v966 = vmul.f32 %v947, %v947
  %v967 = vmul.f32 %v950, %v950
  %v968 = vadd.f32 %v960, %v964
  %v969 = vadd.f32 %v961, %v965
  %v970 = vadd.f32 %v962, %v966
  %v971 = vadd.f32 %v963, %v967
  %v972 = vadd.f32 %v968, 1e-08
  %v973 = vadd.f32 %v969, 1e-08
  %v974 = vadd.f32 %v970, 1e-08
  %v975 = vadd.f32 %v971, 1e-08
  %v976 = vrsqrt.pop %v972
  %v977 = vmul.f32 %v976, %v972
  %v978 = vmul.f32 %v977, %v976
  %v979 = vmul.f32 0.5, %v978
  %v980 = vsub.f32 1.5, %v979
  %v981 = vmul.f32 %v976, %v980
  %v982 = vmul.f32 %v972, %v981
  %vm983 = vcmp.eq.f32.partialorder %v972, inf
  %v984 = vsel %vm983, %v972, %v982
  %vm985 = vcmp.eq.f32.partialorder %v972, 0.0
  %v986 = vand.u32 %v972, 2147483648
  %v987 = vsel %vm985, %v986, %v984
  %v988 = vrsqrt.pop %v973
  %v989 = vmul.f32 %v988, %v973
  %v990 = vmul.f32 %v989, %v988
  %v991 = vmul.f32 0.5, %v990
  %v992 = vsub.f32 1.5, %v991
  %v993 = vmul.f32 %v988, %v992
  %v994 = vmul.f32 %v973, %v993
  %vm995 = vcmp.eq.f32.partialorder %v973, inf
  %v996 = vsel %vm995, %v973, %v994
  %vm997 = vcmp.eq.f32.partialorder %v973, 0.0
  %v998 = vand.u32 %v973, 2147483648
  %v999 = vsel %vm997, %v998, %v996
  %v1000 = vrsqrt.pop %v974
  %v1001 = vmul.f32 %v1000, %v974
  %v1002 = vmul.f32 %v1001, %v1000
  %v1003 = vmul.f32 0.5, %v1002
  %v1004 = vsub.f32 1.5, %v1003
  %v1005 = vmul.f32 %v1000, %v1004
  %v1006 = vmul.f32 %v974, %v1005
  %vm1007 = vcmp.eq.f32.partialorder %v974, inf
  %v1008 = vsel %vm1007, %v974, %v1006
  %vm1009 = vcmp.eq.f32.partialorder %v974, 0.0
  %v1010 = vand.u32 %v974, 2147483648
  %v1011 = vsel %vm1009, %v1010, %v1008
  %v1012 = vrsqrt.pop %v975
  %v1013 = vmul.f32 %v1012, %v975
  %v1014 = vmul.f32 %v1013, %v1012
  %v1015 = vmul.f32 0.5, %v1014
  %v1016 = vsub.f32 1.5, %v1015
  %v1017 = vmul.f32 %v1012, %v1016
  %v1018 = vmul.f32 %v975, %v1017
  %vm1019 = vcmp.eq.f32.partialorder %v975, inf
  %v1020 = vsel %vm1019, %v975, %v1018
  %vm1021 = vcmp.eq.f32.partialorder %v975, 0.0
  %v1022 = vand.u32 %v975, 2147483648
  %v1023 = vsel %vm1021, %v1022, %v1020
  %v1025 = vsel %vm171, %v987, 0
  %v1028 = vsel %vm171, %v999, 0
  %v1031 = vsel %vm171, %v1011, 0
  %v1034 = vsel %vm171, %v1023, 0
  %v1037 = vsel %vm895, %v851, 0
  %1039 = vmatpush.msra.mxu0 0.0
  %1040 = vmatpush.msra.mxu0 0.0
  %1041 = vmatpush.msra.mxu0 0.0
  %1042 = vmatpush.msra.mxu0 0.0
  %1043 = vmatpush.msra.mxu0 0.0
  %1044 = vmatpush.msra.mxu0 0.0
  %1045 = vmatpush.msra.mxu0 0.0
  %1046 = vmatpush.msra.mxu0 0.0
  %1047 = vmatpush.msra.mxu0 0.0
  %1048 = vmatpush.msra.mxu0 0.0
  %1049 = vmatpush.msra.mxu0 0.0
  %1050 = vmatpush.msra.mxu0 0.0
  %1051 = vmatpush.msra.mxu0 0.0
  %1052 = vmatpush.msra.mxu0 0.0
  %1053 = vmatpush.msra.mxu0 0.0
  %1054 = vmatpush.msra.mxu0 %v1037
  %1055 = vmatmul.f32.gmra.mxu0 %v1025
  %v1056 = vpop.f32.mrf.mxu0
  %v1057 = vadd.f32 0.0, %v1056
  %1058 = vmatmul.f32.gmra.mxu0 %v1028
  %v1059 = vpop.f32.mrf.mxu0
  %v1060 = vadd.f32 0.0, %v1059
  %1061 = vmatmul.f32.gmra.mxu0 %v1031
  %v1062 = vpop.f32.mrf.mxu0
  %v1063 = vadd.f32 0.0, %v1062
  %1064 = vmatmul.f32.gmra.mxu0 %v1034
  %v1065 = vpop.f32.mrf.mxu0
  %v1066 = vadd.f32 0.0, %v1065
  %1067 = vdwg.mxu0
  %v1069 = vsel %vm117, %v842, 0
  %v1072 = vsel %vm117, %v843, 0
  %v1075 = vsel %vm117, %v844, 0
  %v1078 = vsel %vm117, %v845, 0
  %1080 = vmatpush.msra.mxu0 0.0
  %1081 = vmatpush.msra.mxu0 0.0
  %1082 = vmatpush.msra.mxu0 0.0
  %1083 = vmatpush.msra.mxu0 0.0
  %1084 = vmatpush.msra.mxu0 0.0
  %1085 = vmatpush.msra.mxu0 0.0
  %1086 = vmatpush.msra.mxu0 0.0
  %1087 = vmatpush.msra.mxu0 0.0
  %1088 = vmatpush.msra.mxu0 0.0
  %1089 = vmatpush.msra.mxu0 0.0
  %1090 = vmatpush.msra.mxu0 0.0
  %1091 = vmatpush.msra.mxu0 0.0
  %1092 = vmatpush.msra.mxu0 %v850
  %1093 = vmatpush.msra.mxu0 %v849
  %1094 = vmatpush.msra.mxu0 %v848
  %1095 = vmatpush.msra.mxu0 %v847
  %1096 = vmatmul.f32.gmra.mxu0 %v1069
  %v1097 = vpop.f32.mrf.mxu0
  %v1098 = vadd.f32 %v1057, %v1097
  %1099 = vmatmul.f32.gmra.mxu0 %v1072
  %v1100 = vpop.f32.mrf.mxu0
  %v1101 = vadd.f32 %v1060, %v1100
  %1102 = vmatmul.f32.gmra.mxu0 %v1075
  %v1103 = vpop.f32.mrf.mxu0
  %v1104 = vadd.f32 %v1063, %v1103
  %1105 = vmatmul.f32.gmra.mxu0 %v1078
  %v1106 = vpop.f32.mrf.mxu0
  %v1107 = vadd.f32 %v1066, %v1106
  %1108 = vdwg.mxu0
  %v1110 = vperm.slane %v852, 0
  %v1112 = vadd.f32 %v1098, %v1110
  %v1113 = vadd.f32 %v1101, %v1110
  %v1114 = vadd.f32 %v1104, %v1110
  %v1115 = vadd.f32 %v1107, %v1110
  %v1117 = vsel %vm171, %v917, 0
  %v1120 = vsel %vm171, %v920, 0
  %v1123 = vsel %vm171, %v923, 0
  %v1126 = vsel %vm171, %v926, 0
  %v1129 = vsel %vm171, %v929, 0
  %v1132 = vsel %vm171, %v932, 0
  %v1135 = vsel %vm171, %v935, 0
  %v1138 = vsel %vm171, %v938, 0
  %v1141 = vsel %vm171, %v941, 0
  %v1144 = vsel %vm171, %v944, 0
  %v1147 = vsel %vm171, %v947, 0
  %v1150 = vsel %vm171, %v950, 0
  %v1153 = vsel %vm895, %v853, 0
  %1155 = vmatpush.msra.mxu0 0.0
  %1156 = vmatpush.msra.mxu0 0.0
  %1157 = vmatpush.msra.mxu0 0.0
  %1158 = vmatpush.msra.mxu0 0.0
  %1159 = vmatpush.msra.mxu0 0.0
  %1160 = vmatpush.msra.mxu0 0.0
  %1161 = vmatpush.msra.mxu0 0.0
  %1162 = vmatpush.msra.mxu0 0.0
  %1163 = vmatpush.msra.mxu0 0.0
  %1164 = vmatpush.msra.mxu0 0.0
  %1165 = vmatpush.msra.mxu0 0.0
  %1166 = vmatpush.msra.mxu0 0.0
  %1167 = vmatpush.msra.mxu0 0.0
  %1168 = vmatpush.msra.mxu0 0.0
  %1169 = vmatpush.msra.mxu0 0.0
  %1170 = vmatpush.msra.mxu0 %v1153
  %1171 = vmatmul.f32.gmra.mxu0 %v1117
  %v1172 = vpop.f32.mrf.mxu0
  %v1173 = vadd.f32 0.0, %v1172
  %1174 = vmatmul.f32.gmra.mxu0 %v1120
  %v1175 = vpop.f32.mrf.mxu0
  %v1176 = vadd.f32 0.0, %v1175
  %1177 = vmatmul.f32.gmra.mxu0 %v1123
  %v1178 = vpop.f32.mrf.mxu0
  %v1179 = vadd.f32 0.0, %v1178
  %1180 = vmatmul.f32.gmra.mxu0 %v1126
  %v1181 = vpop.f32.mrf.mxu0
  %v1182 = vadd.f32 0.0, %v1181
  %1183 = vmatmul.f32.gmra.mxu0 %v1129
  %v1184 = vpop.f32.mrf.mxu0
  %v1185 = vadd.f32 0.0, %v1184
  %1186 = vmatmul.f32.gmra.mxu0 %v1132
  %v1187 = vpop.f32.mrf.mxu0
  %v1188 = vadd.f32 0.0, %v1187
  %1189 = vmatmul.f32.gmra.mxu0 %v1135
  %v1190 = vpop.f32.mrf.mxu0
  %v1191 = vadd.f32 0.0, %v1190
  %1192 = vmatmul.f32.gmra.mxu0 %v1138
  %v1193 = vpop.f32.mrf.mxu0
  %v1194 = vadd.f32 0.0, %v1193
  %1195 = vmatmul.f32.gmra.mxu0 %v1141
  %v1196 = vpop.f32.mrf.mxu0
  %v1197 = vadd.f32 0.0, %v1196
  %1198 = vmatmul.f32.gmra.mxu0 %v1144
  %v1199 = vpop.f32.mrf.mxu0
  %v1200 = vadd.f32 0.0, %v1199
  %1201 = vmatmul.f32.gmra.mxu0 %v1147
  %v1202 = vpop.f32.mrf.mxu0
  %v1203 = vadd.f32 0.0, %v1202
  %1204 = vmatmul.f32.gmra.mxu0 %v1150
  %v1205 = vpop.f32.mrf.mxu0
  %v1206 = vadd.f32 0.0, %v1205
  %1207 = vdwg.mxu0
  %v1209 = vperm.slane %v858, 0
  %v1212 = vsel %vm117, %v1112, 0
  %v1215 = vsel %vm117, %v1113, 0
  %v1218 = vsel %vm117, %v1114, 0
  %v1221 = vsel %vm117, %v1115, 0
  %1223 = vmatpush.msra.mxu0 0.0
  %1224 = vmatpush.msra.mxu0 0.0
  %1225 = vmatpush.msra.mxu0 0.0
  %1226 = vmatpush.msra.mxu0 0.0
  %1227 = vmatpush.msra.mxu0 0.0
  %1228 = vmatpush.msra.mxu0 0.0
  %1229 = vmatpush.msra.mxu0 0.0
  %1230 = vmatpush.msra.mxu0 0.0
  %1231 = vmatpush.msra.mxu0 0.0
  %1232 = vmatpush.msra.mxu0 0.0
  %1233 = vmatpush.msra.mxu0 0.0
  %1234 = vmatpush.msra.mxu0 0.0
  %1235 = vmatpush.msra.mxu0 %v857
  %1236 = vmatpush.msra.mxu0 %v856
  %1237 = vmatpush.msra.mxu0 %v855
  %1238 = vmatpush.msra.mxu0 %v854
  %1239 = vmatmul.f32.gmra.mxu0 %v1212
  %v1240 = vpop.f32.mrf.mxu0
  %v1241 = vadd.f32 %v1209, %v1240
  %1242 = vmatmul.f32.gmra.mxu0 %v1215
  %v1243 = vpop.f32.mrf.mxu0
  %v1244 = vadd.f32 %v1209, %v1243
  %1245 = vmatmul.f32.gmra.mxu0 %v1218
  %v1246 = vpop.f32.mrf.mxu0
  %v1247 = vadd.f32 %v1209, %v1246
  %1248 = vmatmul.f32.gmra.mxu0 %v1221
  %v1249 = vpop.f32.mrf.mxu0
  %v1250 = vadd.f32 %v1209, %v1249
  %1251 = vdwg.mxu0
  %v1252 = vxor.u32 %v1241, 2147483648
  %v1253 = vxor.u32 %v1244, 2147483648
  %v1254 = vxor.u32 %v1247, 2147483648
  %v1255 = vxor.u32 %v1250, 2147483648
  %v1256 = vmul.f32 %v1252, 1.442695
  %v1257 = vpow.pop %v1256
  %v1258 = vmul.f32 %v1253, 1.442695
  %v1259 = vpow.pop %v1258
  %v1260 = vmul.f32 %v1254, 1.442695
  %v1261 = vpow.pop %v1260
  %v1262 = vmul.f32 %v1255, 1.442695
  %v1263 = vpow.pop %v1262
  %v1264 = vadd.f32 %v1257, 1.0
  %v1265 = vadd.f32 %v1259, 1.0
  %v1266 = vadd.f32 %v1261, 1.0
  %v1267 = vadd.f32 %v1263, 1.0
  %v1268 = vrcp.pop %v1264
  %v1269 = vmul.f32 %v1264, %v1268
  %v1270 = vsub.f32 1.0, %v1269
  %v1271 = vmul.f32 %v1268, %v1270
  %v1272 = vadd.f32 %v1268, %v1271
  %vm1273 = vweird.f32 %v1264
  %vm1274 = vweird.f32 %v1268
  %vm1275 = vmor %vm1273, %vm1274
  %v1276 = vsel %vm1275, %v1268, %v1272
  %v1277 = vand.u32 2147483647, %v1264
  %vm1278 = vcmp.eq.f32.partialorder %v1277, 8.507059e+37
  %v1279 = vand.u32 %v1264, 2147483648
  %v1280 = vor.u32 1.1754944e-38, %v1279
  %v1281 = vsel %vm1278, %v1280, %v1276
  %v1282 = vmul.f32 1.0, %v1281
  %v1283 = vrcp.pop %v1265
  %v1284 = vmul.f32 %v1265, %v1283
  %v1285 = vsub.f32 1.0, %v1284
  %v1286 = vmul.f32 %v1283, %v1285
  %v1287 = vadd.f32 %v1283, %v1286
  %vm1288 = vweird.f32 %v1265
  %vm1289 = vweird.f32 %v1283
  %vm1290 = vmor %vm1288, %vm1289
  %v1291 = vsel %vm1290, %v1283, %v1287
  %v1292 = vand.u32 2147483647, %v1265
  %vm1293 = vcmp.eq.f32.partialorder %v1292, 8.507059e+37
  %v1294 = vand.u32 %v1265, 2147483648
  %v1295 = vor.u32 1.1754944e-38, %v1294
  %v1296 = vsel %vm1293, %v1295, %v1291
  %v1297 = vmul.f32 1.0, %v1296
  %v1298 = vrcp.pop %v1266
  %v1299 = vmul.f32 %v1266, %v1298
  %v1300 = vsub.f32 1.0, %v1299
  %v1301 = vmul.f32 %v1298, %v1300
  %v1302 = vadd.f32 %v1298, %v1301
  %vm1303 = vweird.f32 %v1266
  %vm1304 = vweird.f32 %v1298
  %vm1305 = vmor %vm1303, %vm1304
  %v1306 = vsel %vm1305, %v1298, %v1302
  %v1307 = vand.u32 2147483647, %v1266
  %vm1308 = vcmp.eq.f32.partialorder %v1307, 8.507059e+37
  %v1309 = vand.u32 %v1266, 2147483648
  %v1310 = vor.u32 1.1754944e-38, %v1309
  %v1311 = vsel %vm1308, %v1310, %v1306
  %v1312 = vmul.f32 1.0, %v1311
  %v1313 = vrcp.pop %v1267
  %v1314 = vmul.f32 %v1267, %v1313
  %v1315 = vsub.f32 1.0, %v1314
  %v1316 = vmul.f32 %v1313, %v1315
  %v1317 = vadd.f32 %v1313, %v1316
  %vm1318 = vweird.f32 %v1267
  %vm1319 = vweird.f32 %v1313
  %vm1320 = vmor %vm1318, %vm1319
  %v1321 = vsel %vm1320, %v1313, %v1317
  %v1322 = vand.u32 2147483647, %v1267
  %vm1323 = vcmp.eq.f32.partialorder %v1322, 8.507059e+37
  %v1324 = vand.u32 %v1267, 2147483648
  %v1325 = vor.u32 1.1754944e-38, %v1324
  %v1326 = vsel %vm1323, %v1325, %v1321
  %v1327 = vmul.f32 1.0, %v1326
  %v1328 = vmul.f32 %v1173, %v1282
  %v1329 = vmul.f32 %v1176, %v1297
  %v1330 = vmul.f32 %v1179, %v1312
  %v1331 = vmul.f32 %v1182, %v1327
  %v1332 = vmul.f32 %v1185, %v1282
  %v1333 = vmul.f32 %v1188, %v1297
  %v1334 = vmul.f32 %v1191, %v1312
  %v1335 = vmul.f32 %v1194, %v1327
  %v1336 = vmul.f32 %v1197, %v1282
  %v1337 = vmul.f32 %v1200, %v1297
  %v1338 = vmul.f32 %v1203, %v1312
  %v1339 = vmul.f32 %v1206, %v1327
  %v1340 = vxor.u32 %v1112, 2147483648
  %v1341 = vxor.u32 %v1113, 2147483648
  %v1342 = vxor.u32 %v1114, 2147483648
  %v1343 = vxor.u32 %v1115, 2147483648
  %v1344 = vmul.f32 %v1340, 1.442695
  %v1345 = vpow.pop %v1344
  %v1346 = vmul.f32 %v1341, 1.442695
  %v1347 = vpow.pop %v1346
  %v1348 = vmul.f32 %v1342, 1.442695
  %v1349 = vpow.pop %v1348
  %v1350 = vmul.f32 %v1343, 1.442695
  %v1351 = vpow.pop %v1350
  %v1352 = vadd.f32 %v1345, 1.0
  %v1353 = vadd.f32 %v1347, 1.0
  %v1354 = vadd.f32 %v1349, 1.0
  %v1355 = vadd.f32 %v1351, 1.0
  %v1356 = vrcp.pop %v1352
  %v1357 = vmul.f32 %v1352, %v1356
  %v1358 = vsub.f32 1.0, %v1357
  %v1359 = vmul.f32 %v1356, %v1358
  %v1360 = vadd.f32 %v1356, %v1359
  %vm1361 = vweird.f32 %v1352
  %vm1362 = vweird.f32 %v1356
  %vm1363 = vmor %vm1361, %vm1362
  %v1364 = vsel %vm1363, %v1356, %v1360
  %v1365 = vand.u32 2147483647, %v1352
  %vm1366 = vcmp.eq.f32.partialorder %v1365, 8.507059e+37
  %v1367 = vand.u32 %v1352, 2147483648
  %v1368 = vor.u32 1.1754944e-38, %v1367
  %v1369 = vsel %vm1366, %v1368, %v1364
  %v1370 = vmul.f32 1.0, %v1369
  %v1371 = vrcp.pop %v1353
  %v1372 = vmul.f32 %v1353, %v1371
  %v1373 = vsub.f32 1.0, %v1372
  %v1374 = vmul.f32 %v1371, %v1373
  %v1375 = vadd.f32 %v1371, %v1374
  %vm1376 = vweird.f32 %v1353
  %vm1377 = vweird.f32 %v1371
  %vm1378 = vmor %vm1376, %vm1377
  %v1379 = vsel %vm1378, %v1371, %v1375
  %v1380 = vand.u32 2147483647, %v1353
  %vm1381 = vcmp.eq.f32.partialorder %v1380, 8.507059e+37
  %v1382 = vand.u32 %v1353, 2147483648
  %v1383 = vor.u32 1.1754944e-38, %v1382
  %v1384 = vsel %vm1381, %v1383, %v1379
  %v1385 = vmul.f32 1.0, %v1384
  %v1386 = vrcp.pop %v1354
  %v1387 = vmul.f32 %v1354, %v1386
  %v1388 = vsub.f32 1.0, %v1387
  %v1389 = vmul.f32 %v1386, %v1388
  %v1390 = vadd.f32 %v1386, %v1389
  %vm1391 = vweird.f32 %v1354
  %vm1392 = vweird.f32 %v1386
  %vm1393 = vmor %vm1391, %vm1392
  %v1394 = vsel %vm1393, %v1386, %v1390
  %v1395 = vand.u32 2147483647, %v1354
  %vm1396 = vcmp.eq.f32.partialorder %v1395, 8.507059e+37
  %v1397 = vand.u32 %v1354, 2147483648
  %v1398 = vor.u32 1.1754944e-38, %v1397
  %v1399 = vsel %vm1396, %v1398, %v1394
  %v1400 = vmul.f32 1.0, %v1399
  %v1401 = vrcp.pop %v1355
  %v1402 = vmul.f32 %v1355, %v1401
  %v1403 = vsub.f32 1.0, %v1402
  %v1404 = vmul.f32 %v1401, %v1403
  %v1405 = vadd.f32 %v1401, %v1404
  %vm1406 = vweird.f32 %v1355
  %vm1407 = vweird.f32 %v1401
  %vm1408 = vmor %vm1406, %vm1407
  %v1409 = vsel %vm1408, %v1401, %v1405
  %v1410 = vand.u32 2147483647, %v1355
  %vm1411 = vcmp.eq.f32.partialorder %v1410, 8.507059e+37
  %v1412 = vand.u32 %v1355, 2147483648
  %v1413 = vor.u32 1.1754944e-38, %v1412
  %v1414 = vsel %vm1411, %v1413, %v1409
  %v1415 = vmul.f32 1.0, %v1414
  %v1416 = vmul.f32 %v1112, %v1370
  %v1417 = vmul.f32 %v1113, %v1385
  %v1418 = vmul.f32 %v1114, %v1400
  %v1419 = vmul.f32 %v1115, %v1415
  %v1420 = vadd.f32 %v842, %v1416
  %v1421 = vadd.f32 %v843, %v1417
  %v1422 = vadd.f32 %v844, %v1418
  %v1423 = vadd.f32 %v845, %v1419
  %v1424 = vadd.f32 %v754, %v1328
  %v1425 = vadd.f32 %v755, %v1329
  %v1426 = vadd.f32 %v756, %v1330
  %v1427 = vadd.f32 %v757, %v1331
  %v1428 = vadd.f32 %v758, %v1332
  %v1429 = vadd.f32 %v759, %v1333
  %v1430 = vadd.f32 %v760, %v1334
  %v1431 = vadd.f32 %v761, %v1335
  %v1432 = vadd.f32 %v762, %v1336
  %v1433 = vadd.f32 %v763, %v1337
  %v1434 = vadd.f32 %v764, %v1338
  %v1435 = vadd.f32 %v765, %v1339
  %v1436 = vld [vmem:[%s20] sm:$0x1]
  %v1438 = vperm.slane %v1436, 0
  %v1440 = vmul.f32 %v1420, %v1438
  %v1441 = vmul.f32 %v1421, %v1438
  %v1442 = vmul.f32 %v1422, %v1438
  %v1443 = vmul.f32 %v1423, %v1438
  %v1444 = vsel %vm117, %v1440, 0.0
  %1445 = vadd.xlane.f32.xlu0 %v1444
  %v1446 = vpop.xlane.xlu0 %1445
  %v1447 = vsel %vm117, %v1441, 0.0
  %1448 = vadd.xlane.f32.xlu0 %v1447
  %v1449 = vpop.xlane.xlu0 %1448
  %v1450 = vsel %vm117, %v1442, 0.0
  %1451 = vadd.xlane.f32.xlu0 %v1450
  %v1452 = vpop.xlane.xlu0 %1451
  %v1453 = vsel %vm117, %v1443, 0.0
  %1454 = vadd.xlane.f32.xlu0 %v1453
  %v1455 = vpop.xlane.xlu0 %1454
  %v1456 = vld [vmem:[#allocation2] sm:$0x1]
  %v1458 = vperm.slane %v1456, 0
  %v1460 = vadd.f32 %v1446, %v1458
  %v1461 = vadd.f32 %v1449, %v1458
  %v1462 = vadd.f32 %v1452, %v1458
  %v1463 = vadd.f32 %v1455, %v1458
  %v1464 = vxor.u32 %v1460, 2147483648
  %v1465 = vxor.u32 %v1461, 2147483648
  %v1466 = vxor.u32 %v1462, 2147483648
  %v1467 = vxor.u32 %v1463, 2147483648
  %v1468 = vmul.f32 %v1464, 1.442695
  %v1469 = vpow.pop %v1468
  %v1470 = vmul.f32 %v1465, 1.442695
  %v1471 = vpow.pop %v1470
  %v1472 = vmul.f32 %v1466, 1.442695
  %v1473 = vpow.pop %v1472
  %v1474 = vmul.f32 %v1467, 1.442695
  %v1475 = vpow.pop %v1474
  %v1476 = vadd.f32 %v1469, 1.0
  %v1477 = vadd.f32 %v1471, 1.0
  %v1478 = vadd.f32 %v1473, 1.0
  %v1479 = vadd.f32 %v1475, 1.0
  %v1480 = vrcp.pop %v1476
  %v1481 = vmul.f32 %v1476, %v1480
  %v1482 = vsub.f32 1.0, %v1481
  %v1483 = vmul.f32 %v1480, %v1482
  %v1484 = vadd.f32 %v1480, %v1483
  %vm1485 = vweird.f32 %v1476
  %vm1486 = vweird.f32 %v1480
  %vm1487 = vmor %vm1485, %vm1486
  %v1488 = vsel %vm1487, %v1480, %v1484
  %v1489 = vand.u32 2147483647, %v1476
  %vm1490 = vcmp.eq.f32.partialorder %v1489, 8.507059e+37
  %v1491 = vand.u32 %v1476, 2147483648
  %v1492 = vor.u32 1.1754944e-38, %v1491
  %v1493 = vsel %vm1490, %v1492, %v1488
  %v1494 = vmul.f32 1.0, %v1493
  %v1495 = vrcp.pop %v1477
  %v1496 = vmul.f32 %v1477, %v1495
  %v1497 = vsub.f32 1.0, %v1496
  %v1498 = vmul.f32 %v1495, %v1497
  %v1499 = vadd.f32 %v1495, %v1498
  %vm1500 = vweird.f32 %v1477
  %vm1501 = vweird.f32 %v1495
  %vm1502 = vmor %vm1500, %vm1501
  %v1503 = vsel %vm1502, %v1495, %v1499
  %v1504 = vand.u32 2147483647, %v1477
  %vm1505 = vcmp.eq.f32.partialorder %v1504, 8.507059e+37
  %v1506 = vand.u32 %v1477, 2147483648
  %v1507 = vor.u32 1.1754944e-38, %v1506
  %v1508 = vsel %vm1505, %v1507, %v1503
  %v1509 = vmul.f32 1.0, %v1508
  %v1510 = vrcp.pop %v1478
  %v1511 = vmul.f32 %v1478, %v1510
  %v1512 = vsub.f32 1.0, %v1511
  %v1513 = vmul.f32 %v1510, %v1512
  %v1514 = vadd.f32 %v1510, %v1513
  %vm1515 = vweird.f32 %v1478
  %vm1516 = vweird.f32 %v1510
  %vm1517 = vmor %vm1515, %vm1516
  %v1518 = vsel %vm1517, %v1510, %v1514
  %v1519 = vand.u32 2147483647, %v1478
  %vm1520 = vcmp.eq.f32.partialorder %v1519, 8.507059e+37
  %v1521 = vand.u32 %v1478, 2147483648
  %v1522 = vor.u32 1.1754944e-38, %v1521
  %v1523 = vsel %vm1520, %v1522, %v1518
  %v1524 = vmul.f32 1.0, %v1523
  %v1525 = vrcp.pop %v1479
  %v1526 = vmul.f32 %v1479, %v1525
  %v1527 = vsub.f32 1.0, %v1526
  %v1528 = vmul.f32 %v1525, %v1527
  %v1529 = vadd.f32 %v1525, %v1528
  %vm1530 = vweird.f32 %v1479
  %vm1531 = vweird.f32 %v1525
  %vm1532 = vmor %vm1530, %vm1531
  %v1533 = vsel %vm1532, %v1525, %v1529
  %v1534 = vand.u32 2147483647, %v1479
  %vm1535 = vcmp.eq.f32.partialorder %v1534, 8.507059e+37
  %v1536 = vand.u32 %v1479, 2147483648
  %v1537 = vor.u32 1.1754944e-38, %v1536
  %v1538 = vsel %vm1535, %v1537, %v1533
  %v1539 = vmul.f32 1.0, %v1538
  %1541 = vset.pattern.permute.xlu0 0
  %1542 = vperm.xlu0 %1541, %v1494
  %v1543 = vpop.permute.xlu0 %1542
  %1546 = vset.pattern.permute.xlu0 0
  %1547 = vperm.xlu0 %1546, %v1509
  %v1548 = vpop.permute.xlu0 %1547
  %1551 = vset.pattern.permute.xlu0 0
  %1552 = vperm.xlu0 %1551, %v1524
  %v1553 = vpop.permute.xlu0 %1552
  %1556 = vset.pattern.permute.xlu0 0
  %1557 = vperm.xlu0 %1556, %v1539
  %v1558 = vpop.permute.xlu0 %1557
  %v1560 = vmul.f32 %v1420, %v1543
  %v1561 = vmul.f32 %v1421, %v1548
  %v1562 = vmul.f32 %v1422, %v1553
  %v1563 = vmul.f32 %v1423, %v1558
  %1568 = vrot.lane.b32.xlu0 %v1424, 32
  %v1569 = vpop.permute.xlu0 %1568
  %1570 = vrot.lane.b32.xlu0 %v1425, 32
  %v1571 = vpop.permute.xlu0 %1570
  %1572 = vrot.lane.b32.xlu0 %v1426, 32
  %v1573 = vpop.permute.xlu0 %1572
  %1574 = vrot.lane.b32.xlu0 %v1427, 32
  %v1575 = vpop.permute.xlu0 %1574
  %1584 = vrot.lane.b32.xlu0 %v1428, 36
  %v1585 = vpop.permute.xlu0 %1584
  %1586 = vrot.lane.b32.xlu0 %v1429, 36
  %v1587 = vpop.permute.xlu0 %1586
  %1588 = vrot.lane.b32.xlu0 %v1430, 36
  %v1589 = vpop.permute.xlu0 %1588
  %1590 = vrot.lane.b32.xlu0 %v1431, 36
  %v1591 = vpop.permute.xlu0 %1590
  %1600 = vrot.lane.b32.xlu0 %v1432, 40
  %v1601 = vpop.permute.xlu0 %1600
  %1602 = vrot.lane.b32.xlu0 %v1433, 40
  %v1603 = vpop.permute.xlu0 %1602
  %1604 = vrot.lane.b32.xlu0 %v1434, 40
  %v1605 = vpop.permute.xlu0 %1604
  %1606 = vrot.lane.b32.xlu0 %v1435, 40
  %v1607 = vpop.permute.xlu0 %1606
  %v1612 = vsel %vm117, %v1560, %v1569
  %v1613 = vsel %vm117, %v1561, %v1571
  %v1614 = vsel %vm117, %v1562, %v1573
  %v1615 = vsel %vm117, %v1563, %v1575
  %vm1616 = vcmask 293888
  %v1617 = vsel %vm1616, %v1612, %v1585
  %v1618 = vsel %vm1616, %v1613, %v1587
  %v1619 = vsel %vm1616, %v1614, %v1589
  %v1620 = vsel %vm1616, %v1615, %v1591
  %vm1621 = vcmask 326656
  %v1622 = vsel %vm1621, %v1617, %v1601
  %v1623 = vsel %vm1621, %v1618, %v1603
  %v1624 = vsel %vm1621, %v1619, %v1605
  %v1625 = vsel %vm1621, %v1620, %v1607
  %vm1626 = vcmask 359424
  %1627 = vst.msk [vmem:[%s22] sm:$0xff] %vm1626, %v1622
  %1628 = vst.msk [vmem:[%s22 + $0x8] sm:$0xff] %vm1626, %v1623
  %1629 = vst.msk [vmem:[%s22 + $0x10] sm:$0xff] %vm1626, %v1624
  %1630 = vst.msk [vmem:[%s22 + $0x18] sm:$0xff] %vm1626, %v1625
  // Predicated region
  $region90: #{_lambda_.5} parent=0 // pred_check
    _
  $region91: #{_lambda_.5} parent=0 // pred_check_branch
    %1632 = sbr.rel (0) target = $region93
  $region92: #{_lambda_.5} parent=0 // pred_region
    _
  $region93: #{_lambda_.5} parent=0 // pred_fallthru
    _
  // Predicated region
  $region94: #{_lambda_.5} parent=0 // pred_check
    _
  $region95: #{_lambda_.5} parent=0 // pred_check_branch
    %1634 = sbr.rel (0) target = $region97
  $region96: #{_lambda_.5} parent=0 // pred_region
    _
  $region97: #{_lambda_.5} parent=0 // pred_fallthru
    _

</llo_original>
